<compile_context>
chip_gen: v6e
topology: v6e:2x2x1
jax: 0.10.0
libtpu: 0.0.40
codegen_flags: <defaults>
</compile_context>

<pallas_src>
import functools

import numpy as np

import jax
import jax.numpy as jnp
from jax.experimental import pallas as pl
from jax.experimental.pallas import tpu as pltpu

# ----------------------------- configuration -------------------------------
MAX_EDGE_SET_SIZE = 8
MAX_NODE_SET_SIZE = 8
RAW_NODE_DIM = 8
RAW_EDGE_DIM = 4
NODE_STATE_DIM = 16
EDGE_ENC_DIM = 16          # encoder_config.edge_feature_dim
MESSAGE_DIM = 16           # propagation_layer_config.edge_hidden_sizes[-1]
EDGE_EMBEDDING_DIM = 16    # interaction encoder output dim
SINKHORN_DIM = 16
PROP_STEPS = 3
TIME_UPDATE_STEPS = 1
SINKHORN_TEMPERATURE = 0.1
SINKHORN_ITERS = 10

_NEG_INF = -1e30           # additive mask for off-pair sinkhorn blocks


def _round_up(x, m):
    return ((x + m - 1) // m) * m


def _dot(a, b):
    return jnp.dot(a, b, preferred_element_type=jnp.float32)


def _lse(x, axis):
    m = jnp.max(x, axis=axis, keepdims=True)
    return m + jnp.log(jnp.sum(jnp.exp(x - m), axis=axis, keepdims=True))


# ------------------------------ Pallas kernel --------------------------------
def _fused_forward_kernel(data_ref, gmat_ref, w16_ref, w32_ref, sink_ref, o_ref,
                          *, pad, bm, bp):
    relu = lambda x: jnp.maximum(x, 0.0)
    d = NODE_STATE_DIM

    # ---- unpack the 5 slabs with aligned static slices (5 DMAs total) ----
    raw = data_ref[pl.ds(0, 2 * pad), :]
    mask_qc = data_ref[pl.ds(2 * pad, 2 * bm), :]

    g_ft = gmat_ref[pl.ds(0, 2 * pad), :]          # [g_from; g_to]   (2P, P)
    g_to_t = gmat_ref[pl.ds(2 * pad, pad), :]      # scatter by to    (P, P)
    g_from_t = gmat_ref[pl.ds(3 * pad, pad), :]    # scatter by from  (P, P)
    sel_qc = gmat_ref[pl.ds(4 * pad, 2 * bm), :]   # split_and_stack  (2BM, P)

    w_enc = w16_ref[pl.ds(0, d), :]
    nw1a = w16_ref[pl.ds(d, d), :]
    nw1b = w16_ref[pl.ds(2 * d, d), :]
    nw2 = w16_ref[pl.ds(3 * d, d), :]
    w2_m = w16_ref[pl.ds(4 * d, 2 * d), :]
    w2_r = w16_ref[pl.ds(6 * d, 2 * d), :]
    w2_s = w16_ref[pl.ds(8 * d, 2 * d), :]
    sw1 = w16_ref[pl.ds(10 * d, d), :]
    sw2 = w16_ref[pl.ds(11 * d, d), :]
    boff = 12 * d
    nb1 = w16_ref[pl.ds(boff + 0, 1), :]
    nb2 = w16_ref[pl.ds(boff + 1, 1), :]
    mb2 = w16_ref[pl.ds(boff + 2, 1), :]
    rb2 = w16_ref[pl.ds(boff + 3, 1), :]
    b2s = w16_ref[pl.ds(boff + 4, 1), :]
    sb1 = w16_ref[pl.ds(boff + 5, 1), :]
    sb2 = w16_ref[pl.ds(boff + 6, 1), :]

    iw1e = w32_ref[pl.ds(0, d), :]
    w_hf = w32_ref[pl.ds(d, d), :]                 # multiplies h_from
    w_ht = w32_ref[pl.ds(2 * d, d), :]             # multiplies h_to
    w_ec = w32_ref[pl.ds(3 * d, 2 * d), :]         # interaction-encoder fold
    ib1 = w32_ref[pl.ds(5 * d, 1), :]
    b1c = w32_ref[pl.ds(5 * d + 1, 1), :]

    la_mask = sink_ref[pl.ds(0, bm), :]            # 0 on-pair / -1e30 off-pair
    blk_neg = sink_ref[pl.ds(bm, bp), :]           # -1 per pair row block

    # Hoisted bias broadcasts (JAX does not CSE broadcast_in_dim and the prop
    # loop is unrolled 3x, so each of these would otherwise re-materialize).
    ib1_b = jnp.broadcast_to(ib1, (pad, 2 * d))
    b1c_b = jnp.broadcast_to(b1c, (pad, 2 * d))
    mb2_b = jnp.broadcast_to(mb2, (pad, d))
    rb2_b = jnp.broadcast_to(rb2, (pad, d))
    b2s_b = jnp.broadcast_to(b2s, (pad, d))
    nb1_b = jnp.broadcast_to(nb1, (pad, d))
    nb2_b = jnp.broadcast_to(nb2, (pad, d))

    # --- GraphEncoder: node + edge encoders fused into one matmul through
    #     disjoint input-lane blocks and bias-indicator lanes ---
    enc = _dot(raw, w_enc)                 # (2P, 16)
    h = enc[0:pad]                         # encoded node states (padded rows 0)
    e = enc[pad:2 * pad]                   # encoded edge states (padded rows 0)

    # --- propagation loop (unrolled).  With time_update_steps == 1 the
    #     transport plan is None so the interaction features are exactly zero
    #     and only the edge half of the interaction encoder is active. ---
    for _ in range(PROP_STEPS):
        e_hid = relu(_dot(e, iw1e) + ib1_b)        # interaction enc. hidden
        ec = _dot(e_hid, w_ec) + b1c_b             # comb@[mw1c|rw1c] + biases

        # node update: gathers / scatters as one-hot MXU matmuls
        hft = _dot(g_ft, h)                        # [h_from; h_to]  (2P, 16)
        h_from, h_to = hft[0:pad], hft[pad:2 * pad]
        hid = relu(_dot(h_from, w_hf) + _dot(h_to, w_ht) + ec)   # (P, 32)
        msg = _dot(hid, w2_m) + mb2_b
        rev = _dot(hid, w2_r) + rb2_b
        agg = _dot(g_to_t, msg) + _dot(g_from_t, rev)
        h = _dot(relu(_dot(h, nw1a) + _dot(agg, nw1b) + nb1_b), nw2) + nb2_b

        # edge update with the *updated* node states (msg + rev, shared W2)
        hft = _dot(g_ft, h)
        h_from, h_to = hft[0:pad], hft[pad:2 * pad]
        hid = relu(_dot(h_from, w_hf) + _dot(h_to, w_ht) + ec)
        e = _dot(hid, w2_s) + b2s_b

    # --- split_and_stack + sinkhorn feature MLP (query + corpus stacks share
    #     one selector matmul and one MLP evaluation) ---
    s = _dot(sel_qc, e)                            # (2BM, 16), padded rows 0
    t = _dot(relu(_dot(s, sw1) + sb1), sw2) + sb2
    mt = t * mask_qc                               # graph_size_to_mask_map

    mq, mc = mt[0:bm], mt[bm:2 * bm]
    qs, cs = s[0:bm], s[bm:2 * bm]

    # --- batched Sinkhorn over all pairs: block-diagonal (BM, BM) log_alpha;
    #     off-pair entries are -1e30 -> exp underflows to exactly 0, so each
    #     diagonal block evolves exactly like an independent 8x8 sinkhorn. ---
    la = jax.lax.dot_general(mq, mc, (((1,), (1,)), ((), ())),
                             preferred_element_type=jnp.float32)
    la = la * (1.0 / SINKHORN_TEMPERATURE) + la_mask
    for _ in range(SINKHORN_ITERS):
        la = la - _lse(la, 1)                      # torch dim=2 (rows)
        la = la - _lse(la, 0)                      # torch dim=1 (cols)
    plan = jnp.exp(la)                             # block-diagonal plan

    # feature_alignment_score, batched: -sum(relu(Q - P @ C)) per pair.
    hinge = relu(qs - _dot(plan, cs))              # (BM, 16)
    pair_rows = _dot(blk_neg, hinge)               # (BP, 16), negation folded
    o_ref[...] = jnp.sum(pair_rows, axis=1, keepdims=True)   # one (BP,1) store


# ------------------------------ forward wrapper ------------------------------
def edge_early_interaction_2_forward(
    node_features, edge_features, from_idx, to_idx, paired_edge_counts, params
):
    f32 = jnp.float32
    num_nodes = node_features.shape[0]
    num_edges = edge_features.shape[0]
    b = len(paired_edge_counts)
    m = MAX_EDGE_SET_SIZE
    bm = b * m
    bp = _round_up(b, 8)
    pad = _round_up(max(num_nodes, num_edges), 8)
    d = NODE_STATE_DIM

    # ---------- slab 1: data (raw features + stack masks), lane width 16 -----
    raw = jnp.zeros((2 * pad, d), f32)
    raw = raw.at[:num_nodes, :RAW_NODE_DIM].set(node_features.astype(f32))
    raw = raw.at[:num_nodes, RAW_NODE_DIM + RAW_EDGE_DIM].set(1.0)
    raw = raw.at[pad:pad + num_edges,
                 RAW_NODE_DIM:RAW_NODE_DIM + RAW_EDGE_DIM].set(
                     edge_features.astype(f32))
    raw = raw.at[pad:pad + num_edges, RAW_NODE_DIM + RAW_EDGE_DIM + 1].set(1.0)

    flat = [int(c) for pair in paired_edge_counts for c in pair]
    offs = np.concatenate([[0], np.cumsum(flat)]).astype(np.int64)
    sel_qc = np.zeros((2 * bm, pad), np.float32)
    mask_qc = np.zeros((2 * bm, d), np.float32)
    for pi in range(b):
        qo, qn = offs[2 * pi], flat[2 * pi]
        co, cn = offs[2 * pi + 1], flat[2 * pi + 1]
        for j in range(qn):
            sel_qc[pi * m + j, qo + j] = 1.0
            mask_qc[pi * m + j, :] = 1.0
        for j in range(cn):
            sel_qc[bm + pi * m + j, co + j] = 1.0
            mask_qc[bm + pi * m + j, :] = 1.0
    data16 = jnp.concatenate([raw, jnp.asarray(mask_qc)], axis=0)

    # ---------- slab 2: one-hot gather / scatter / selector matrices ---------
    # TODO(synk): at production graph sizes these O(E*N) one-hot matrices must
    # become scalar-prefetch index maps / DMA gathers (they would blow v7x's
    # 64 MiB VMEM first); at 18 nodes / 21 edges they are the fastest option.
    node_ids = jnp.arange(pad, dtype=from_idx.dtype)
    g_from = jnp.zeros((pad, pad), f32).at[:num_edges].set(
        (from_idx[:, None] == node_ids[None, :]).astype(f32))
    g_to = jnp.zeros((pad, pad), f32).at[:num_edges].set(
        (to_idx[:, None] == node_ids[None, :]).astype(f32))
    gmat = jnp.concatenate(
        [g_from, g_to, g_to.T, g_from.T, jnp.asarray(sel_qc)], axis=0)

    # ---------- slabs 3 & 4: packed / pre-folded weights ----------------------
    enw, enb = params["enc_node"]
    eew, eeb = params["enc_edge"]
    iw1, ib1, iw2, ib2 = params["interaction_encoder"]
    mw1, mb1, mw2, mb2 = params["message_net"]
    rw1, rb1, rw2, rb2 = params["reverse_message_net"]
    nw1, nb1, nw2, nb2 = params["node_mlp"]
    sw1, sb1, sw2, sb2 = params["sinkhorn_feat"]

    mw1a, mw1b, mw1c = mw1[:d], mw1[d:2 * d], mw1[2 * d:]
    rw1a, rw1b, rw1c = rw1[:d], rw1[d:2 * d], rw1[2 * d:]
    nw1a, nw1b = nw1[:d], nw1[d:]
    # With time_update_steps == 1 the interaction half of iw1 is unused.
    # TODO(synk): time_update_steps > 1 (data-dependent interaction gather) is
    # not exercised by this config and is not implemented.
    iw1e = iw1[:EDGE_ENC_DIM]

    w_enc = jnp.zeros((d, d), f32)
    w_enc = w_enc.at[:RAW_NODE_DIM].set(enw)
    w_enc = w_enc.at[RAW_NODE_DIM:RAW_NODE_DIM + RAW_EDGE_DIM].set(eew)
    w_enc = w_enc.at[RAW_NODE_DIM + RAW_EDGE_DIM].set(enb[0])
    w_enc = w_enc.at[RAW_NODE_DIM + RAW_EDGE_DIM + 1].set(eeb[0])

    w_c = jnp.concatenate([mw1c, rw1c], axis=1)        # (16, 32)
    w_hf = jnp.concatenate([mw1a, rw1b], axis=1)       # h_from weights, packed
    w_ht = jnp.concatenate([mw1b, rw1a], axis=1)       # h_to weights, packed
    w_ec = iw2 @ w_c                                   # interaction-enc fold
    b1c = jnp.concatenate([mb1, rb1], axis=1) + ib2 @ w_c

    z = jnp.zeros((d, d), f32)
    w2_m = jnp.concatenate([mw2, z], axis=0)           # (32, 16)
    w2_r = jnp.concatenate([z, rw2], axis=0)
    w2_s = jnp.concatenate([mw2, rw2], axis=0)         # msg + rev in one matmul
    b2s = mb2 + rb2

    bias16 = jnp.concatenate(
        [nb1, nb2, mb2, rb2, b2s, sb1, sb2, jnp.zeros((1, d), f32)], axis=0)
    w16 = jnp.concatenate(
        [w_enc, nw1a, nw1b, nw2, w2_m, w2_r, w2_s, sw1, sw2, bias16], axis=0)

    bias32 = jnp.concatenate([ib1, b1c, jnp.zeros((6, 2 * d), f32)], axis=0)
    w32 = jnp.concatenate([iw1e, w_hf, w_ht, w_ec, bias32], axis=0)

    # ---------- slab 5: sinkhorn block mask + score selector -----------------
    la_mask = np.full((bm, bm), _NEG_INF, np.float32)
    blk_neg = np.zeros((bp, bm), np.float32)
    for pi in range(b):
        la_mask[pi * m:(pi + 1) * m, pi * m:(pi + 1) * m] = 0.0
        blk_neg[pi, pi * m:(pi + 1) * m] = -1.0
    sink = jnp.asarray(np.concatenate([la_mask, blk_neg], axis=0))

    inputs = [data16, gmat, w16, w32, sink]
    kern = functools.partial(_fused_forward_kernel, pad=pad, bm=bm, bp=bp)
    out = pl.pallas_call(
        kern,
        out_shape=jax.ShapeDtypeStruct((bp, 1), f32),
        grid=(1,),
        in_specs=[pl.BlockSpec(x.shape, lambda i: (0, 0)) for x in inputs],
        out_specs=pl.BlockSpec((bp, 1), lambda i: (0, 0)),
        compiler_params=pltpu.CompilerParams(
            # Whole problem (a few KiB) is VMEM resident in one grid step.
            # For large pair batches a "parallel" grid dim over pairs would be
            # added here so v7x's second TensorCore is used.
            dimension_semantics=("arbitrary",),
        ),
    )(*inputs)
    return out[:b, 0]


# ------------------------------ parameters ----------------------------------
def init_linear(key, din, dout, scale=0.1):
    k1, k2 = jax.random.split(key)
    w = scale * jax.random.normal(k1, (din, dout), jnp.float32)
    bb = scale * jax.random.normal(k2, (dout,), jnp.float32)
    return w, bb.reshape(1, dout)


def init_mlp2(key, din, dh, dout, scale=0.1):
    k1, k2 = jax.random.split(key)
    w1, b1 = init_linear(k1, din, dh, scale)
    w2, b2 = init_linear(k2, dh, dout, scale)
    return w1, b1, w2, b2


def init_params(key):
    keys = jax.random.split(key, 8)
    return {
        "enc_node": init_linear(keys[0], RAW_NODE_DIM, NODE_STATE_DIM),
        "enc_edge": init_linear(keys[1], RAW_EDGE_DIM, EDGE_ENC_DIM),
        "interaction_encoder": init_mlp2(
            keys[2],
            MESSAGE_DIM + EDGE_ENC_DIM,
            MESSAGE_DIM + EDGE_ENC_DIM,
            EDGE_EMBEDDING_DIM,
        ),
        "message_net": init_mlp2(
            keys[3], 2 * NODE_STATE_DIM + EDGE_EMBEDDING_DIM, MESSAGE_DIM, MESSAGE_DIM
        ),
        "reverse_message_net": init_mlp2(
            keys[4], 2 * NODE_STATE_DIM + EDGE_EMBEDDING_DIM, MESSAGE_DIM, MESSAGE_DIM
        ),
        "node_mlp": init_mlp2(
            keys[5], NODE_STATE_DIM + MESSAGE_DIM, NODE_STATE_DIM, NODE_STATE_DIM
        ),
        "sinkhorn_feat": init_mlp2(keys[6], MESSAGE_DIM, SINKHORN_DIM, SINKHORN_DIM),
    }


# ------------------------------ main -----------------------------------------
if __name__ == "__main__":
    key = jax.random.PRNGKey(0)
    k_node, k_edge, k_param = jax.random.split(key, 3)

    # Two (query, corpus) pairs, graphs interleaved q0, c0, q1, c1.
    node_counts = [4, 5, 3, 6]  # 18 nodes total
    edge_counts = [5, 6, 3, 7]  # 21 edges total
    paired_edge_counts = [(5, 6), (3, 7)]

    from_list, to_list = [], []
    node_off = 0
    for n_nodes, n_edges in zip(node_counts, edge_counts):
        for ei in range(n_edges):
            src = node_off + (ei % n_nodes)
            dst = node_off + ((2 * ei + 1) % n_nodes)
            from_list.append(src)
            to_list.append(dst)
        node_off += n_nodes

    from_idx = jnp.array(from_list, dtype=jnp.int32)
    to_idx = jnp.array(to_list, dtype=jnp.int32)

    node_features = jax.random.normal(
        k_node, (sum(node_counts), RAW_NODE_DIM), jnp.float32
    )
    edge_features = jax.random.normal(
        k_edge, (sum(edge_counts), RAW_EDGE_DIM), jnp.float32
    )

    params = init_params(k_param)

    score = edge_early_interaction_2_forward(
        node_features, edge_features, from_idx, to_idx, paired_edge_counts, params
    )
    jax.block_until_ready(score)
    assert score.shape == (len(paired_edge_counts),)
    print("KERNEL_OK")
</pallas_src>

<mosaic_0001>
module attributes {stable_mosaic.version = 11 : i64} {
  func.func @_fused_forward_kernel(%arg0: i32, %arg1: memref<80x16xf32, #tpu.memory_space<vmem>>, %arg2: memref<128x24xf32, #tpu.memory_space<vmem>>, %arg3: memref<200x16xf32, #tpu.memory_space<vmem>>, %arg4: memref<88x32xf32, #tpu.memory_space<vmem>>, %arg5: memref<24x16xf32, #tpu.memory_space<vmem>>, %arg6: memref<8x1xf32, #tpu.memory_space<vmem>>) attributes {dimension_semantics = [#tpu.dimension_semantics<arbitrary>], iteration_bounds = array<i64: 1>, scalar_prefetch = 0 : i64, scratch_operands = 0 : i64, tpu.core_type = #tpu.core_type<tc>, window_params = [{pipeline_mode = #tpu.pipeline_mode<synchronous>, transform_indices = @transform_0, window_bounds = array<i64: 80, 16>}, {pipeline_mode = #tpu.pipeline_mode<synchronous>, transform_indices = @transform_1, window_bounds = array<i64: 128, 24>}, {pipeline_mode = #tpu.pipeline_mode<synchronous>, transform_indices = @transform_2, window_bounds = array<i64: 200, 16>}, {pipeline_mode = #tpu.pipeline_mode<synchronous>, transform_indices = @transform_3, window_bounds = array<i64: 88, 32>}, {pipeline_mode = #tpu.pipeline_mode<synchronous>, transform_indices = @transform_4, window_bounds = array<i64: 24, 16>}, {pipeline_mode = #tpu.pipeline_mode<synchronous>, transform_indices = @transform_5, window_bounds = array<i64: 8, 1>}]} {
    %c0 = arith.constant 0 : index
    %c0_0 = arith.constant 0 : index
    %0 = vector.load %arg1[%c0, %c0_0] : memref<80x16xf32, #tpu.memory_space<vmem>>, vector<48x16xf32>
    %c48 = arith.constant 48 : index
    %c0_1 = arith.constant 0 : index
    %1 = vector.load %arg1[%c48, %c0_1] : memref<80x16xf32, #tpu.memory_space<vmem>>, vector<32x16xf32>
    %c0_2 = arith.constant 0 : index
    %c0_3 = arith.constant 0 : index
    %2 = vector.load %arg2[%c0_2, %c0_3] : memref<128x24xf32, #tpu.memory_space<vmem>>, vector<48x24xf32>
    %c48_4 = arith.constant 48 : index
    %c0_5 = arith.constant 0 : index
    %3 = vector.load %arg2[%c48_4, %c0_5] : memref<128x24xf32, #tpu.memory_space<vmem>>, vector<24x24xf32>
    %c72 = arith.constant 72 : index
    %c0_6 = arith.constant 0 : index
    %4 = vector.load %arg2[%c72, %c0_6] : memref<128x24xf32, #tpu.memory_space<vmem>>, vector<24x24xf32>
    %c96 = arith.constant 96 : index
    %c0_7 = arith.constant 0 : index
    %5 = vector.load %arg2[%c96, %c0_7] : memref<128x24xf32, #tpu.memory_space<vmem>>, vector<32x24xf32>
    %c0_8 = arith.constant 0 : index
    %c0_9 = arith.constant 0 : index
    %6 = vector.load %arg3[%c0_8, %c0_9] : memref<200x16xf32, #tpu.memory_space<vmem>>, vector<16x16xf32>
    %c16 = arith.constant 16 : index
    %c0_10 = arith.constant 0 : index
    %7 = vector.load %arg3[%c16, %c0_10] : memref<200x16xf32, #tpu.memory_space<vmem>>, vector<16x16xf32>
    %c32 = arith.constant 32 : index
    %c0_11 = arith.constant 0 : index
    %8 = vector.load %arg3[%c32, %c0_11] : memref<200x16xf32, #tpu.memory_space<vmem>>, vector<16x16xf32>
    %c48_12 = arith.constant 48 : index
    %c0_13 = arith.constant 0 : index
    %9 = vector.load %arg3[%c48_12, %c0_13] : memref<200x16xf32, #tpu.memory_space<vmem>>, vector<16x16xf32>
    %c64 = arith.constant 64 : index
    %c0_14 = arith.constant 0 : index
    %10 = vector.load %arg3[%c64, %c0_14] : memref<200x16xf32, #tpu.memory_space<vmem>>, vector<32x16xf32>
    %c96_15 = arith.constant 96 : index
    %c0_16 = arith.constant 0 : index
    %11 = vector.load %arg3[%c96_15, %c0_16] : memref<200x16xf32, #tpu.memory_space<vmem>>, vector<32x16xf32>
    %c128 = arith.constant 128 : index
    %c0_17 = arith.constant 0 : index
    %12 = vector.load %arg3[%c128, %c0_17] : memref<200x16xf32, #tpu.memory_space<vmem>>, vector<32x16xf32>
    %c160 = arith.constant 160 : index
    %c0_18 = arith.constant 0 : index
    %13 = vector.load %arg3[%c160, %c0_18] : memref<200x16xf32, #tpu.memory_space<vmem>>, vector<16x16xf32>
    %c176 = arith.constant 176 : index
    %c0_19 = arith.constant 0 : index
    %14 = vector.load %arg3[%c176, %c0_19] : memref<200x16xf32, #tpu.memory_space<vmem>>, vector<16x16xf32>
    %c192 = arith.constant 192 : index
    %c0_20 = arith.constant 0 : index
    %15 = vector.load %arg3[%c192, %c0_20] : memref<200x16xf32, #tpu.memory_space<vmem>>, vector<1x16xf32>
    %c193 = arith.constant 193 : index
    %c0_21 = arith.constant 0 : index
    %16 = vector.load %arg3[%c193, %c0_21] : memref<200x16xf32, #tpu.memory_space<vmem>>, vector<1x16xf32>
    %c194 = arith.constant 194 : index
    %c0_22 = arith.constant 0 : index
    %17 = vector.load %arg3[%c194, %c0_22] : memref<200x16xf32, #tpu.memory_space<vmem>>, vector<1x16xf32>
    %c195 = arith.constant 195 : index
    %c0_23 = arith.constant 0 : index
    %18 = vector.load %arg3[%c195, %c0_23] : memref<200x16xf32, #tpu.memory_space<vmem>>, vector<1x16xf32>
    %c196 = arith.constant 196 : index
    %c0_24 = arith.constant 0 : index
    %19 = vector.load %arg3[%c196, %c0_24] : memref<200x16xf32, #tpu.memory_space<vmem>>, vector<1x16xf32>
    %c197 = arith.constant 197 : index
    %c0_25 = arith.constant 0 : index
    %20 = vector.load %arg3[%c197, %c0_25] : memref<200x16xf32, #tpu.memory_space<vmem>>, vector<1x16xf32>
    %c198 = arith.constant 198 : index
    %c0_26 = arith.constant 0 : index
    %21 = vector.load %arg3[%c198, %c0_26] : memref<200x16xf32, #tpu.memory_space<vmem>>, vector<1x16xf32>
    %c0_27 = arith.constant 0 : index
    %c0_28 = arith.constant 0 : index
    %22 = vector.load %arg4[%c0_27, %c0_28] : memref<88x32xf32, #tpu.memory_space<vmem>>, vector<16x32xf32>
    %c16_29 = arith.constant 16 : index
    %c0_30 = arith.constant 0 : index
    %23 = vector.load %arg4[%c16_29, %c0_30] : memref<88x32xf32, #tpu.memory_space<vmem>>, vector<16x32xf32>
    %c32_31 = arith.constant 32 : index
    %c0_32 = arith.constant 0 : index
    %24 = vector.load %arg4[%c32_31, %c0_32] : memref<88x32xf32, #tpu.memory_space<vmem>>, vector<16x32xf32>
    %c48_33 = arith.constant 48 : index
    %c0_34 = arith.constant 0 : index
    %25 = vector.load %arg4[%c48_33, %c0_34] : memref<88x32xf32, #tpu.memory_space<vmem>>, vector<32x32xf32>
    %c80 = arith.constant 80 : index
    %c0_35 = arith.constant 0 : index
    %26 = vector.load %arg4[%c80, %c0_35] : memref<88x32xf32, #tpu.memory_space<vmem>>, vector<1x32xf32>
    %c81 = arith.constant 81 : index
    %c0_36 = arith.constant 0 : index
    %27 = vector.load %arg4[%c81, %c0_36] : memref<88x32xf32, #tpu.memory_space<vmem>>, vector<1x32xf32>
    %c0_37 = arith.constant 0 : index
    %c0_38 = arith.constant 0 : index
    %28 = vector.load %arg5[%c0_37, %c0_38] : memref<24x16xf32, #tpu.memory_space<vmem>>, vector<16x16xf32>
    %c16_39 = arith.constant 16 : index
    %c0_40 = arith.constant 0 : index
    %29 = vector.load %arg5[%c16_39, %c0_40] : memref<24x16xf32, #tpu.memory_space<vmem>>, vector<8x16xf32>
    %30 = vector.shape_cast %26 : vector<1x32xf32> to vector<1x32xf32>
    %31 = vector.broadcast %30 : vector<1x32xf32> to vector<24x32xf32>
    %32 = vector.shape_cast %27 : vector<1x32xf32> to vector<1x32xf32>
    %33 = vector.broadcast %32 : vector<1x32xf32> to vector<24x32xf32>
    %34 = vector.shape_cast %17 : vector<1x16xf32> to vector<1x16xf32>
    %35 = vector.broadcast %34 : vector<1x16xf32> to vector<24x16xf32>
    %36 = vector.shape_cast %18 : vector<1x16xf32> to vector<1x16xf32>
    %37 = vector.broadcast %36 : vector<1x16xf32> to vector<24x16xf32>
    %38 = vector.shape_cast %19 : vector<1x16xf32> to vector<1x16xf32>
    %39 = vector.broadcast %38 : vector<1x16xf32> to vector<24x16xf32>
    %40 = vector.shape_cast %15 : vector<1x16xf32> to vector<1x16xf32>
    %41 = vector.broadcast %40 : vector<1x16xf32> to vector<24x16xf32>
    %42 = vector.shape_cast %16 : vector<1x16xf32> to vector<1x16xf32>
    %43 = vector.broadcast %42 : vector<1x16xf32> to vector<24x16xf32>
    %cst = arith.constant dense<0.000000e+00> : vector<48x16xf32>
    %44 = tpu.matmul %0, %6, %cst {dimension_numbers = #tpu.dot_dimension_numbers<[1], [0], [0], [1], [0, 0, 1, 1], [], []>} : vector<48x16xf32>, vector<16x16xf32>, vector<48x16xf32> -> vector<48x16xf32>
    %45 = vector.extract_strided_slice %44 {offsets = [0, 0], sizes = [24, 16], strides = [1, 1]} : vector<48x16xf32> to vector<24x16xf32>
    %46 = vector.extract_strided_slice %44 {offsets = [24, 0], sizes = [24, 16], strides = [1, 1]} : vector<48x16xf32> to vector<24x16xf32>
    %cst_41 = arith.constant dense<0.000000e+00> : vector<24x32xf32>
    %47 = tpu.matmul %46, %22, %cst_41 {dimension_numbers = #tpu.dot_dimension_numbers<[1], [0], [0], [1], [0, 0, 1, 1], [], []>} : vector<24x16xf32>, vector<16x32xf32>, vector<24x32xf32> -> vector<24x32xf32>
    %48 = arith.addf %47, %31 : vector<24x32xf32>
    %cst_42 = arith.constant 0.000000e+00 : f32
    %49 = vector.broadcast %cst_42 : f32 to vector<24x32xf32>
    %50 = arith.maximumf %48, %49 : vector<24x32xf32>
    %cst_43 = arith.constant dense<0.000000e+00> : vector<24x32xf32>
    %51 = tpu.matmul %50, %25, %cst_43 {dimension_numbers = #tpu.dot_dimension_numbers<[1], [0], [0], [1], [0, 0, 1, 1], [], []>} : vector<24x32xf32>, vector<32x32xf32>, vector<24x32xf32> -> vector<24x32xf32>
    %52 = arith.addf %51, %33 : vector<24x32xf32>
    %cst_44 = arith.constant dense<0.000000e+00> : vector<48x16xf32>
    %53 = tpu.matmul %2, %45, %cst_44 {dimension_numbers = #tpu.dot_dimension_numbers<[1], [0], [0], [1], [0, 0, 1, 1], [], []>} : vector<48x24xf32>, vector<24x16xf32>, vector<48x16xf32> -> vector<48x16xf32>
    %54 = vector.extract_strided_slice %53 {offsets = [0, 0], sizes = [24, 16], strides = [1, 1]} : vector<48x16xf32> to vector<24x16xf32>
    %55 = vector.extract_strided_slice %53 {offsets = [24, 0], sizes = [24, 16], strides = [1, 1]} : vector<48x16xf32> to vector<24x16xf32>
    %cst_45 = arith.constant dense<0.000000e+00> : vector<24x32xf32>
    %56 = tpu.matmul %54, %23, %cst_45 {dimension_numbers = #tpu.dot_dimension_numbers<[1], [0], [0], [1], [0, 0, 1, 1], [], []>} : vector<24x16xf32>, vector<16x32xf32>, vector<24x32xf32> -> vector<24x32xf32>
    %cst_46 = arith.constant dense<0.000000e+00> : vector<24x32xf32>
    %57 = tpu.matmul %55, %24, %cst_46 {dimension_numbers = #tpu.dot_dimension_numbers<[1], [0], [0], [1], [0, 0, 1, 1], [], []>} : vector<24x16xf32>, vector<16x32xf32>, vector<24x32xf32> -> vector<24x32xf32>
    %58 = arith.addf %56, %57 : vector<24x32xf32>
    %59 = arith.addf %58, %52 : vector<24x32xf32>
    %cst_47 = arith.constant 0.000000e+00 : f32
    %60 = vector.broadcast %cst_47 : f32 to vector<24x32xf32>
    %61 = arith.maximumf %59, %60 : vector<24x32xf32>
    %cst_48 = arith.constant dense<0.000000e+00> : vector<24x16xf32>
    %62 = tpu.matmul %61, %10, %cst_48 {dimension_numbers = #tpu.dot_dimension_numbers<[1], [0], [0], [1], [0, 0, 1, 1], [], []>} : vector<24x32xf32>, vector<32x16xf32>, vector<24x16xf32> -> vector<24x16xf32>
    %63 = arith.addf %62, %35 : vector<24x16xf32>
    %cst_49 = arith.constant dense<0.000000e+00> : vector<24x16xf32>
    %64 = tpu.matmul %61, %11, %cst_49 {dimension_numbers = #tpu.dot_dimension_numbers<[1], [0], [0], [1], [0, 0, 1, 1], [], []>} : vector<24x32xf32>, vector<32x16xf32>, vector<24x16xf32> -> vector<24x16xf32>
    %65 = arith.addf %64, %37 : vector<24x16xf32>
    %cst_50 = arith.constant dense<0.000000e+00> : vector<24x16xf32>
    %66 = tpu.matmul %3, %63, %cst_50 {dimension_numbers = #tpu.dot_dimension_numbers<[1], [0], [0], [1], [0, 0, 1, 1], [], []>} : vector<24x24xf32>, vector<24x16xf32>, vector<24x16xf32> -> vector<24x16xf32>
    %cst_51 = arith.constant dense<0.000000e+00> : vector<24x16xf32>
    %67 = tpu.matmul %4, %65, %cst_51 {dimension_numbers = #tpu.dot_dimension_numbers<[1], [0], [0], [1], [0, 0, 1, 1], [], []>} : vector<24x24xf32>, vector<24x16xf32>, vector<24x16xf32> -> vector<24x16xf32>
    %68 = arith.addf %66, %67 : vector<24x16xf32>
    %cst_52 = arith.constant dense<0.000000e+00> : vector<24x16xf32>
    %69 = tpu.matmul %45, %7, %cst_52 {dimension_numbers = #tpu.dot_dimension_numbers<[1], [0], [0], [1], [0, 0, 1, 1], [], []>} : vector<24x16xf32>, vector<16x16xf32>, vector<24x16xf32> -> vector<24x16xf32>
    %cst_53 = arith.constant dense<0.000000e+00> : vector<24x16xf32>
    %70 = tpu.matmul %68, %8, %cst_53 {dimension_numbers = #tpu.dot_dimension_numbers<[1], [0], [0], [1], [0, 0, 1, 1], [], []>} : vector<24x16xf32>, vector<16x16xf32>, vector<24x16xf32> -> vector<24x16xf32>
    %71 = arith.addf %69, %70 : vector<24x16xf32>
    %72 = arith.addf %71, %41 : vector<24x16xf32>
    %cst_54 = arith.constant 0.000000e+00 : f32
    %73 = vector.broadcast %cst_54 : f32 to vector<24x16xf32>
    %74 = arith.maximumf %72, %73 : vector<24x16xf32>
    %cst_55 = arith.constant dense<0.000000e+00> : vector<24x16xf32>
    %75 = tpu.matmul %74, %9, %cst_55 {dimension_numbers = #tpu.dot_dimension_numbers<[1], [0], [0], [1], [0, 0, 1, 1], [], []>} : vector<24x16xf32>, vector<16x16xf32>, vector<24x16xf32> -> vector<24x16xf32>
    %76 = arith.addf %75, %43 : vector<24x16xf32>
    %cst_56 = arith.constant dense<0.000000e+00> : vector<48x16xf32>
    %77 = tpu.matmul %2, %76, %cst_56 {dimension_numbers = #tpu.dot_dimension_numbers<[1], [0], [0], [1], [0, 0, 1, 1], [], []>} : vector<48x24xf32>, vector<24x16xf32>, vector<48x16xf32> -> vector<48x16xf32>
    %78 = vector.extract_strided_slice %77 {offsets = [0, 0], sizes = [24, 16], strides = [1, 1]} : vector<48x16xf32> to vector<24x16xf32>
    %79 = vector.extract_strided_slice %77 {offsets = [24, 0], sizes = [24, 16], strides = [1, 1]} : vector<48x16xf32> to vector<24x16xf32>
    %cst_57 = arith.constant dense<0.000000e+00> : vector<24x32xf32>
    %80 = tpu.matmul %78, %23, %cst_57 {dimension_numbers = #tpu.dot_dimension_numbers<[1], [0], [0], [1], [0, 0, 1, 1], [], []>} : vector<24x16xf32>, vector<16x32xf32>, vector<24x32xf32> -> vector<24x32xf32>
    %cst_58 = arith.constant dense<0.000000e+00> : vector<24x32xf32>
    %81 = tpu.matmul %79, %24, %cst_58 {dimension_numbers = #tpu.dot_dimension_numbers<[1], [0], [0], [1], [0, 0, 1, 1], [], []>} : vector<24x16xf32>, vector<16x32xf32>, vector<24x32xf32> -> vector<24x32xf32>
    %82 = arith.addf %80, %81 : vector<24x32xf32>
    %83 = arith.addf %82, %52 : vector<24x32xf32>
    %cst_59 = arith.constant 0.000000e+00 : f32
    %84 = vector.broadcast %cst_59 : f32 to vector<24x32xf32>
    %85 = arith.maximumf %83, %84 : vector<24x32xf32>
    %cst_60 = arith.constant dense<0.000000e+00> : vector<24x16xf32>
    %86 = tpu.matmul %85, %12, %cst_60 {dimension_numbers = #tpu.dot_dimension_numbers<[1], [0], [0], [1], [0, 0, 1, 1], [], []>} : vector<24x32xf32>, vector<32x16xf32>, vector<24x16xf32> -> vector<24x16xf32>
    %87 = arith.addf %86, %39 : vector<24x16xf32>
    %cst_61 = arith.constant dense<0.000000e+00> : vector<24x32xf32>
    %88 = tpu.matmul %87, %22, %cst_61 {dimension_numbers = #tpu.dot_dimension_numbers<[1], [0], [0], [1], [0, 0, 1, 1], [], []>} : vector<24x16xf32>, vector<16x32xf32>, vector<24x32xf32> -> vector<24x32xf32>
    %89 = arith.addf %88, %31 : vector<24x32xf32>
    %cst_62 = arith.constant 0.000000e+00 : f32
    %90 = vector.broadcast %cst_62 : f32 to vector<24x32xf32>
    %91 = arith.maximumf %89, %90 : vector<24x32xf32>
    %cst_63 = arith.constant dense<0.000000e+00> : vector<24x32xf32>
    %92 = tpu.matmul %91, %25, %cst_63 {dimension_numbers = #tpu.dot_dimension_numbers<[1], [0], [0], [1], [0, 0, 1, 1], [], []>} : vector<24x32xf32>, vector<32x32xf32>, vector<24x32xf32> -> vector<24x32xf32>
    %93 = arith.addf %92, %33 : vector<24x32xf32>
    %cst_64 = arith.constant dense<0.000000e+00> : vector<48x16xf32>
    %94 = tpu.matmul %2, %76, %cst_64 {dimension_numbers = #tpu.dot_dimension_numbers<[1], [0], [0], [1], [0, 0, 1, 1], [], []>} : vector<48x24xf32>, vector<24x16xf32>, vector<48x16xf32> -> vector<48x16xf32>
    %95 = vector.extract_strided_slice %94 {offsets = [0, 0], sizes = [24, 16], strides = [1, 1]} : vector<48x16xf32> to vector<24x16xf32>
    %96 = vector.extract_strided_slice %94 {offsets = [24, 0], sizes = [24, 16], strides = [1, 1]} : vector<48x16xf32> to vector<24x16xf32>
    %cst_65 = arith.constant dense<0.000000e+00> : vector<24x32xf32>
    %97 = tpu.matmul %95, %23, %cst_65 {dimension_numbers = #tpu.dot_dimension_numbers<[1], [0], [0], [1], [0, 0, 1, 1], [], []>} : vector<24x16xf32>, vector<16x32xf32>, vector<24x32xf32> -> vector<24x32xf32>
    %cst_66 = arith.constant dense<0.000000e+00> : vector<24x32xf32>
    %98 = tpu.matmul %96, %24, %cst_66 {dimension_numbers = #tpu.dot_dimension_numbers<[1], [0], [0], [1], [0, 0, 1, 1], [], []>} : vector<24x16xf32>, vector<16x32xf32>, vector<24x32xf32> -> vector<24x32xf32>
    %99 = arith.addf %97, %98 : vector<24x32xf32>
    %100 = arith.addf %99, %93 : vector<24x32xf32>
    %cst_67 = arith.constant 0.000000e+00 : f32
    %101 = vector.broadcast %cst_67 : f32 to vector<24x32xf32>
    %102 = arith.maximumf %100, %101 : vector<24x32xf32>
    %cst_68 = arith.constant dense<0.000000e+00> : vector<24x16xf32>
    %103 = tpu.matmul %102, %10, %cst_68 {dimension_numbers = #tpu.dot_dimension_numbers<[1], [0], [0], [1], [0, 0, 1, 1], [], []>} : vector<24x32xf32>, vector<32x16xf32>, vector<24x16xf32> -> vector<24x16xf32>
    %104 = arith.addf %103, %35 : vector<24x16xf32>
    %cst_69 = arith.constant dense<0.000000e+00> : vector<24x16xf32>
    %105 = tpu.matmul %102, %11, %cst_69 {dimension_numbers = #tpu.dot_dimension_numbers<[1], [0], [0], [1], [0, 0, 1, 1], [], []>} : vector<24x32xf32>, vector<32x16xf32>, vector<24x16xf32> -> vector<24x16xf32>
    %106 = arith.addf %105, %37 : vector<24x16xf32>
    %cst_70 = arith.constant dense<0.000000e+00> : vector<24x16xf32>
    %107 = tpu.matmul %3, %104, %cst_70 {dimension_numbers = #tpu.dot_dimension_numbers<[1], [0], [0], [1], [0, 0, 1, 1], [], []>} : vector<24x24xf32>, vector<24x16xf32>, vector<24x16xf32> -> vector<24x16xf32>
    %cst_71 = arith.constant dense<0.000000e+00> : vector<24x16xf32>
    %108 = tpu.matmul %4, %106, %cst_71 {dimension_numbers = #tpu.dot_dimension_numbers<[1], [0], [0], [1], [0, 0, 1, 1], [], []>} : vector<24x24xf32>, vector<24x16xf32>, vector<24x16xf32> -> vector<24x16xf32>
    %109 = arith.addf %107, %108 : vector<24x16xf32>
    %cst_72 = arith.constant dense<0.000000e+00> : vector<24x16xf32>
    %110 = tpu.matmul %76, %7, %cst_72 {dimension_numbers = #tpu.dot_dimension_numbers<[1], [0], [0], [1], [0, 0, 1, 1], [], []>} : vector<24x16xf32>, vector<16x16xf32>, vector<24x16xf32> -> vector<24x16xf32>
    %cst_73 = arith.constant dense<0.000000e+00> : vector<24x16xf32>
    %111 = tpu.matmul %109, %8, %cst_73 {dimension_numbers = #tpu.dot_dimension_numbers<[1], [0], [0], [1], [0, 0, 1, 1], [], []>} : vector<24x16xf32>, vector<16x16xf32>, vector<24x16xf32> -> vector<24x16xf32>
    %112 = arith.addf %110, %111 : vector<24x16xf32>
    %113 = arith.addf %112, %41 : vector<24x16xf32>
    %cst_74 = arith.constant 0.000000e+00 : f32
    %114 = vector.broadcast %cst_74 : f32 to vector<24x16xf32>
    %115 = arith.maximumf %113, %114 : vector<24x16xf32>
    %cst_75 = arith.constant dense<0.000000e+00> : vector<24x16xf32>
    %116 = tpu.matmul %115, %9, %cst_75 {dimension_numbers = #tpu.dot_dimension_numbers<[1], [0], [0], [1], [0, 0, 1, 1], [], []>} : vector<24x16xf32>, vector<16x16xf32>, vector<24x16xf32> -> vector<24x16xf32>
    %117 = arith.addf %116, %43 : vector<24x16xf32>
    %cst_76 = arith.constant dense<0.000000e+00> : vector<48x16xf32>
    %118 = tpu.matmul %2, %117, %cst_76 {dimension_numbers = #tpu.dot_dimension_numbers<[1], [0], [0], [1], [0, 0, 1, 1], [], []>} : vector<48x24xf32>, vector<24x16xf32>, vector<48x16xf32> -> vector<48x16xf32>
    %119 = vector.extract_strided_slice %118 {offsets = [0, 0], sizes = [24, 16], strides = [1, 1]} : vector<48x16xf32> to vector<24x16xf32>
    %120 = vector.extract_strided_slice %118 {offsets = [24, 0], sizes = [24, 16], strides = [1, 1]} : vector<48x16xf32> to vector<24x16xf32>
    %cst_77 = arith.constant dense<0.000000e+00> : vector<24x32xf32>
    %121 = tpu.matmul %119, %23, %cst_77 {dimension_numbers = #tpu.dot_dimension_numbers<[1], [0], [0], [1], [0, 0, 1, 1], [], []>} : vector<24x16xf32>, vector<16x32xf32>, vector<24x32xf32> -> vector<24x32xf32>
    %cst_78 = arith.constant dense<0.000000e+00> : vector<24x32xf32>
    %122 = tpu.matmul %120, %24, %cst_78 {dimension_numbers = #tpu.dot_dimension_numbers<[1], [0], [0], [1], [0, 0, 1, 1], [], []>} : vector<24x16xf32>, vector<16x32xf32>, vector<24x32xf32> -> vector<24x32xf32>
    %123 = arith.addf %121, %122 : vector<24x32xf32>
    %124 = arith.addf %123, %93 : vector<24x32xf32>
    %cst_79 = arith.constant 0.000000e+00 : f32
    %125 = vector.broadcast %cst_79 : f32 to vector<24x32xf32>
    %126 = arith.maximumf %124, %125 : vector<24x32xf32>
    %cst_80 = arith.constant dense<0.000000e+00> : vector<24x16xf32>
    %127 = tpu.matmul %126, %12, %cst_80 {dimension_numbers = #tpu.dot_dimension_numbers<[1], [0], [0], [1], [0, 0, 1, 1], [], []>} : vector<24x32xf32>, vector<32x16xf32>, vector<24x16xf32> -> vector<24x16xf32>
    %128 = arith.addf %127, %39 : vector<24x16xf32>
    %cst_81 = arith.constant dense<0.000000e+00> : vector<24x32xf32>
    %129 = tpu.matmul %128, %22, %cst_81 {dimension_numbers = #tpu.dot_dimension_numbers<[1], [0], [0], [1], [0, 0, 1, 1], [], []>} : vector<24x16xf32>, vector<16x32xf32>, vector<24x32xf32> -> vector<24x32xf32>
    %130 = arith.addf %129, %31 : vector<24x32xf32>
    %cst_82 = arith.constant 0.000000e+00 : f32
    %131 = vector.broadcast %cst_82 : f32 to vector<24x32xf32>
    %132 = arith.maximumf %130, %131 : vector<24x32xf32>
    %cst_83 = arith.constant dense<0.000000e+00> : vector<24x32xf32>
    %133 = tpu.matmul %132, %25, %cst_83 {dimension_numbers = #tpu.dot_dimension_numbers<[1], [0], [0], [1], [0, 0, 1, 1], [], []>} : vector<24x32xf32>, vector<32x32xf32>, vector<24x32xf32> -> vector<24x32xf32>
    %134 = arith.addf %133, %33 : vector<24x32xf32>
    %cst_84 = arith.constant dense<0.000000e+00> : vector<48x16xf32>
    %135 = tpu.matmul %2, %117, %cst_84 {dimension_numbers = #tpu.dot_dimension_numbers<[1], [0], [0], [1], [0, 0, 1, 1], [], []>} : vector<48x24xf32>, vector<24x16xf32>, vector<48x16xf32> -> vector<48x16xf32>
    %136 = vector.extract_strided_slice %135 {offsets = [0, 0], sizes = [24, 16], strides = [1, 1]} : vector<48x16xf32> to vector<24x16xf32>
    %137 = vector.extract_strided_slice %135 {offsets = [24, 0], sizes = [24, 16], strides = [1, 1]} : vector<48x16xf32> to vector<24x16xf32>
    %cst_85 = arith.constant dense<0.000000e+00> : vector<24x32xf32>
    %138 = tpu.matmul %136, %23, %cst_85 {dimension_numbers = #tpu.dot_dimension_numbers<[1], [0], [0], [1], [0, 0, 1, 1], [], []>} : vector<24x16xf32>, vector<16x32xf32>, vector<24x32xf32> -> vector<24x32xf32>
    %cst_86 = arith.constant dense<0.000000e+00> : vector<24x32xf32>
    %139 = tpu.matmul %137, %24, %cst_86 {dimension_numbers = #tpu.dot_dimension_numbers<[1], [0], [0], [1], [0, 0, 1, 1], [], []>} : vector<24x16xf32>, vector<16x32xf32>, vector<24x32xf32> -> vector<24x32xf32>
    %140 = arith.addf %138, %139 : vector<24x32xf32>
    %141 = arith.addf %140, %134 : vector<24x32xf32>
    %cst_87 = arith.constant 0.000000e+00 : f32
    %142 = vector.broadcast %cst_87 : f32 to vector<24x32xf32>
    %143 = arith.maximumf %141, %142 : vector<24x32xf32>
    %cst_88 = arith.constant dense<0.000000e+00> : vector<24x16xf32>
    %144 = tpu.matmul %143, %10, %cst_88 {dimension_numbers = #tpu.dot_dimension_numbers<[1], [0], [0], [1], [0, 0, 1, 1], [], []>} : vector<24x32xf32>, vector<32x16xf32>, vector<24x16xf32> -> vector<24x16xf32>
    %145 = arith.addf %144, %35 : vector<24x16xf32>
    %cst_89 = arith.constant dense<0.000000e+00> : vector<24x16xf32>
    %146 = tpu.matmul %143, %11, %cst_89 {dimension_numbers = #tpu.dot_dimension_numbers<[1], [0], [0], [1], [0, 0, 1, 1], [], []>} : vector<24x32xf32>, vector<32x16xf32>, vector<24x16xf32> -> vector<24x16xf32>
    %147 = arith.addf %146, %37 : vector<24x16xf32>
    %cst_90 = arith.constant dense<0.000000e+00> : vector<24x16xf32>
    %148 = tpu.matmul %3, %145, %cst_90 {dimension_numbers = #tpu.dot_dimension_numbers<[1], [0], [0], [1], [0, 0, 1, 1], [], []>} : vector<24x24xf32>, vector<24x16xf32>, vector<24x16xf32> -> vector<24x16xf32>
    %cst_91 = arith.constant dense<0.000000e+00> : vector<24x16xf32>
    %149 = tpu.matmul %4, %147, %cst_91 {dimension_numbers = #tpu.dot_dimension_numbers<[1], [0], [0], [1], [0, 0, 1, 1], [], []>} : vector<24x24xf32>, vector<24x16xf32>, vector<24x16xf32> -> vector<24x16xf32>
    %150 = arith.addf %148, %149 : vector<24x16xf32>
    %cst_92 = arith.constant dense<0.000000e+00> : vector<24x16xf32>
    %151 = tpu.matmul %117, %7, %cst_92 {dimension_numbers = #tpu.dot_dimension_numbers<[1], [0], [0], [1], [0, 0, 1, 1], [], []>} : vector<24x16xf32>, vector<16x16xf32>, vector<24x16xf32> -> vector<24x16xf32>
    %cst_93 = arith.constant dense<0.000000e+00> : vector<24x16xf32>
    %152 = tpu.matmul %150, %8, %cst_93 {dimension_numbers = #tpu.dot_dimension_numbers<[1], [0], [0], [1], [0, 0, 1, 1], [], []>} : vector<24x16xf32>, vector<16x16xf32>, vector<24x16xf32> -> vector<24x16xf32>
    %153 = arith.addf %151, %152 : vector<24x16xf32>
    %154 = arith.addf %153, %41 : vector<24x16xf32>
    %cst_94 = arith.constant 0.000000e+00 : f32
    %155 = vector.broadcast %cst_94 : f32 to vector<24x16xf32>
    %156 = arith.maximumf %154, %155 : vector<24x16xf32>
    %cst_95 = arith.constant dense<0.000000e+00> : vector<24x16xf32>
    %157 = tpu.matmul %156, %9, %cst_95 {dimension_numbers = #tpu.dot_dimension_numbers<[1], [0], [0], [1], [0, 0, 1, 1], [], []>} : vector<24x16xf32>, vector<16x16xf32>, vector<24x16xf32> -> vector<24x16xf32>
    %158 = arith.addf %157, %43 : vector<24x16xf32>
    %cst_96 = arith.constant dense<0.000000e+00> : vector<48x16xf32>
    %159 = tpu.matmul %2, %158, %cst_96 {dimension_numbers = #tpu.dot_dimension_numbers<[1], [0], [0], [1], [0, 0, 1, 1], [], []>} : vector<48x24xf32>, vector<24x16xf32>, vector<48x16xf32> -> vector<48x16xf32>
    %160 = vector.extract_strided_slice %159 {offsets = [0, 0], sizes = [24, 16], strides = [1, 1]} : vector<48x16xf32> to vector<24x16xf32>
    %161 = vector.extract_strided_slice %159 {offsets = [24, 0], sizes = [24, 16], strides = [1, 1]} : vector<48x16xf32> to vector<24x16xf32>
    %cst_97 = arith.constant dense<0.000000e+00> : vector<24x32xf32>
    %162 = tpu.matmul %160, %23, %cst_97 {dimension_numbers = #tpu.dot_dimension_numbers<[1], [0], [0], [1], [0, 0, 1, 1], [], []>} : vector<24x16xf32>, vector<16x32xf32>, vector<24x32xf32> -> vector<24x32xf32>
    %cst_98 = arith.constant dense<0.000000e+00> : vector<24x32xf32>
    %163 = tpu.matmul %161, %24, %cst_98 {dimension_numbers = #tpu.dot_dimension_numbers<[1], [0], [0], [1], [0, 0, 1, 1], [], []>} : vector<24x16xf32>, vector<16x32xf32>, vector<24x32xf32> -> vector<24x32xf32>
    %164 = arith.addf %162, %163 : vector<24x32xf32>
    %165 = arith.addf %164, %134 : vector<24x32xf32>
    %cst_99 = arith.constant 0.000000e+00 : f32
    %166 = vector.broadcast %cst_99 : f32 to vector<24x32xf32>
    %167 = arith.maximumf %165, %166 : vector<24x32xf32>
    %cst_100 = arith.constant dense<0.000000e+00> : vector<24x16xf32>
    %168 = tpu.matmul %167, %12, %cst_100 {dimension_numbers = #tpu.dot_dimension_numbers<[1], [0], [0], [1], [0, 0, 1, 1], [], []>} : vector<24x32xf32>, vector<32x16xf32>, vector<24x16xf32> -> vector<24x16xf32>
    %169 = arith.addf %168, %39 : vector<24x16xf32>
    %cst_101 = arith.constant dense<0.000000e+00> : vector<32x16xf32>
    %170 = tpu.matmul %5, %169, %cst_101 {dimension_numbers = #tpu.dot_dimension_numbers<[1], [0], [0], [1], [0, 0, 1, 1], [], []>} : vector<32x24xf32>, vector<24x16xf32>, vector<32x16xf32> -> vector<32x16xf32>
    %cst_102 = arith.constant dense<0.000000e+00> : vector<32x16xf32>
    %171 = tpu.matmul %170, %13, %cst_102 {dimension_numbers = #tpu.dot_dimension_numbers<[1], [0], [0], [1], [0, 0, 1, 1], [], []>} : vector<32x16xf32>, vector<16x16xf32>, vector<32x16xf32> -> vector<32x16xf32>
    %172 = vector.broadcast %20 : vector<1x16xf32> to vector<32x16xf32>
    %173 = arith.addf %171, %172 : vector<32x16xf32>
    %cst_103 = arith.constant 0.000000e+00 : f32
    %174 = vector.broadcast %cst_103 : f32 to vector<32x16xf32>
    %175 = arith.maximumf %173, %174 : vector<32x16xf32>
    %cst_104 = arith.constant dense<0.000000e+00> : vector<32x16xf32>
    %176 = tpu.matmul %175, %14, %cst_104 {dimension_numbers = #tpu.dot_dimension_numbers<[1], [0], [0], [1], [0, 0, 1, 1], [], []>} : vector<32x16xf32>, vector<16x16xf32>, vector<32x16xf32> -> vector<32x16xf32>
    %177 = vector.broadcast %21 : vector<1x16xf32> to vector<32x16xf32>
    %178 = arith.addf %176, %177 : vector<32x16xf32>
    %179 = arith.mulf %178, %1 : vector<32x16xf32>
    %180 = vector.extract_strided_slice %179 {offsets = [0, 0], sizes = [16, 16], strides = [1, 1]} : vector<32x16xf32> to vector<16x16xf32>
    %181 = vector.extract_strided_slice %179 {offsets = [16, 0], sizes = [16, 16], strides = [1, 1]} : vector<32x16xf32> to vector<16x16xf32>
    %182 = vector.extract_strided_slice %170 {offsets = [0, 0], sizes = [16, 16], strides = [1, 1]} : vector<32x16xf32> to vector<16x16xf32>
    %183 = vector.extract_strided_slice %170 {offsets = [16, 0], sizes = [16, 16], strides = [1, 1]} : vector<32x16xf32> to vector<16x16xf32>
    %cst_105 = arith.constant dense<0.000000e+00> : vector<16x16xf32>
    %184 = tpu.matmul %180, %181, %cst_105 {dimension_numbers = #tpu.dot_dimension_numbers<[1], [1], [0], [0], [0, 0, 1, 0], [], []>} : vector<16x16xf32>, vector<16x16xf32>, vector<16x16xf32> -> vector<16x16xf32>
    %cst_106 = arith.constant 1.000000e+01 : f32
    %185 = vector.broadcast %cst_106 : f32 to vector<16x16xf32>
    %186 = arith.mulf %184, %185 : vector<16x16xf32>
    %187 = arith.addf %186, %28 : vector<16x16xf32>
    %cst_107 = arith.constant dense<0xFF800000> : vector<16xf32>
    %188 = vector.multi_reduction <maximumf>, %187, %cst_107 [1] : vector<16x16xf32> to vector<16xf32>
    %189 = vector.shape_cast %188 : vector<16xf32> to vector<16x1xf32>
    %190 = vector.broadcast %189 : vector<16x1xf32> to vector<16x16xf32>
    %191 = arith.subf %187, %190 : vector<16x16xf32>
    %192 = math.exp %191 : vector<16x16xf32>
    %cst_108 = arith.constant dense<0.000000e+00> : vector<16xf32>
    %193 = vector.multi_reduction <add>, %192, %cst_108 [1] : vector<16x16xf32> to vector<16xf32>
    %194 = vector.shape_cast %193 : vector<16xf32> to vector<16x1xf32>
    %195 = math.log %194 : vector<16x1xf32>
    %196 = arith.addf %189, %195 : vector<16x1xf32>
    %197 = vector.broadcast %196 : vector<16x1xf32> to vector<16x16xf32>
    %198 = arith.subf %187, %197 : vector<16x16xf32>
    %cst_109 = arith.constant dense<0xFF800000> : vector<16xf32>
    %199 = vector.multi_reduction <maximumf>, %198, %cst_109 [0] : vector<16x16xf32> to vector<16xf32>
    %200 = vector.shape_cast %199 : vector<16xf32> to vector<1x16xf32>
    %201 = vector.broadcast %200 : vector<1x16xf32> to vector<16x16xf32>
    %202 = arith.subf %198, %201 : vector<16x16xf32>
    %203 = math.exp %202 : vector<16x16xf32>
    %cst_110 = arith.constant dense<0.000000e+00> : vector<16xf32>
    %204 = vector.multi_reduction <add>, %203, %cst_110 [0] : vector<16x16xf32> to vector<16xf32>
    %205 = vector.shape_cast %204 : vector<16xf32> to vector<1x16xf32>
    %206 = math.log %205 : vector<1x16xf32>
    %207 = arith.addf %200, %206 : vector<1x16xf32>
    %208 = vector.broadcast %207 : vector<1x16xf32> to vector<16x16xf32>
    %209 = arith.subf %198, %208 : vector<16x16xf32>
    %cst_111 = arith.constant dense<0xFF800000> : vector<16xf32>
    %210 = vector.multi_reduction <maximumf>, %209, %cst_111 [1] : vector<16x16xf32> to vector<16xf32>
    %211 = vector.shape_cast %210 : vector<16xf32> to vector<16x1xf32>
    %212 = vector.broadcast %211 : vector<16x1xf32> to vector<16x16xf32>
    %213 = arith.subf %209, %212 : vector<16x16xf32>
    %214 = math.exp %213 : vector<16x16xf32>
    %cst_112 = arith.constant dense<0.000000e+00> : vector<16xf32>
    %215 = vector.multi_reduction <add>, %214, %cst_112 [1] : vector<16x16xf32> to vector<16xf32>
    %216 = vector.shape_cast %215 : vector<16xf32> to vector<16x1xf32>
    %217 = math.log %216 : vector<16x1xf32>
    %218 = arith.addf %211, %217 : vector<16x1xf32>
    %219 = vector.broadcast %218 : vector<16x1xf32> to vector<16x16xf32>
    %220 = arith.subf %209, %219 : vector<16x16xf32>
    %cst_113 = arith.constant dense<0xFF800000> : vector<16xf32>
    %221 = vector.multi_reduction <maximumf>, %220, %cst_113 [0] : vector<16x16xf32> to vector<16xf32>
    %222 = vector.shape_cast %221 : vector<16xf32> to vector<1x16xf32>
    %223 = vector.broadcast %222 : vector<1x16xf32> to vector<16x16xf32>
    %224 = arith.subf %220, %223 : vector<16x16xf32>
    %225 = math.exp %224 : vector<16x16xf32>
    %cst_114 = arith.constant dense<0.000000e+00> : vector<16xf32>
    %226 = vector.multi_reduction <add>, %225, %cst_114 [0] : vector<16x16xf32> to vector<16xf32>
    %227 = vector.shape_cast %226 : vector<16xf32> to vector<1x16xf32>
    %228 = math.log %227 : vector<1x16xf32>
    %229 = arith.addf %222, %228 : vector<1x16xf32>
    %230 = vector.broadcast %229 : vector<1x16xf32> to vector<16x16xf32>
    %231 = arith.subf %220, %230 : vector<16x16xf32>
    %cst_115 = arith.constant dense<0xFF800000> : vector<16xf32>
    %232 = vector.multi_reduction <maximumf>, %231, %cst_115 [1] : vector<16x16xf32> to vector<16xf32>
    %233 = vector.shape_cast %232 : vector<16xf32> to vector<16x1xf32>
    %234 = vector.broadcast %233 : vector<16x1xf32> to vector<16x16xf32>
    %235 = arith.subf %231, %234 : vector<16x16xf32>
    %236 = math.exp %235 : vector<16x16xf32>
    %cst_116 = arith.constant dense<0.000000e+00> : vector<16xf32>
    %237 = vector.multi_reduction <add>, %236, %cst_116 [1] : vector<16x16xf32> to vector<16xf32>
    %238 = vector.shape_cast %237 : vector<16xf32> to vector<16x1xf32>
    %239 = math.log %238 : vector<16x1xf32>
    %240 = arith.addf %233, %239 : vector<16x1xf32>
    %241 = vector.broadcast %240 : vector<16x1xf32> to vector<16x16xf32>
    %242 = arith.subf %231, %241 : vector<16x16xf32>
    %cst_117 = arith.constant dense<0xFF800000> : vector<16xf32>
    %243 = vector.multi_reduction <maximumf>, %242, %cst_117 [0] : vector<16x16xf32> to vector<16xf32>
    %244 = vector.shape_cast %243 : vector<16xf32> to vector<1x16xf32>
    %245 = vector.broadcast %244 : vector<1x16xf32> to vector<16x16xf32>
    %246 = arith.subf %242, %245 : vector<16x16xf32>
    %247 = math.exp %246 : vector<16x16xf32>
    %cst_118 = arith.constant dense<0.000000e+00> : vector<16xf32>
    %248 = vector.multi_reduction <add>, %247, %cst_118 [0] : vector<16x16xf32> to vector<16xf32>
    %249 = vector.shape_cast %248 : vector<16xf32> to vector<1x16xf32>
    %250 = math.log %249 : vector<1x16xf32>
    %251 = arith.addf %244, %250 : vector<1x16xf32>
    %252 = vector.broadcast %251 : vector<1x16xf32> to vector<16x16xf32>
    %253 = arith.subf %242, %252 : vector<16x16xf32>
    %cst_119 = arith.constant dense<0xFF800000> : vector<16xf32>
    %254 = vector.multi_reduction <maximumf>, %253, %cst_119 [1] : vector<16x16xf32> to vector<16xf32>
    %255 = vector.shape_cast %254 : vector<16xf32> to vector<16x1xf32>
    %256 = vector.broadcast %255 : vector<16x1xf32> to vector<16x16xf32>
    %257 = arith.subf %253, %256 : vector<16x16xf32>
    %258 = math.exp %257 : vector<16x16xf32>
    %cst_120 = arith.constant dense<0.000000e+00> : vector<16xf32>
    %259 = vector.multi_reduction <add>, %258, %cst_120 [1] : vector<16x16xf32> to vector<16xf32>
    %260 = vector.shape_cast %259 : vector<16xf32> to vector<16x1xf32>
    %261 = math.log %260 : vector<16x1xf32>
    %262 = arith.addf %255, %261 : vector<16x1xf32>
    %263 = vector.broadcast %262 : vector<16x1xf32> to vector<16x16xf32>
    %264 = arith.subf %253, %263 : vector<16x16xf32>
    %cst_121 = arith.constant dense<0xFF800000> : vector<16xf32>
    %265 = vector.multi_reduction <maximumf>, %264, %cst_121 [0] : vector<16x16xf32> to vector<16xf32>
    %266 = vector.shape_cast %265 : vector<16xf32> to vector<1x16xf32>
    %267 = vector.broadcast %266 : vector<1x16xf32> to vector<16x16xf32>
    %268 = arith.subf %264, %267 : vector<16x16xf32>
    %269 = math.exp %268 : vector<16x16xf32>
    %cst_122 = arith.constant dense<0.000000e+00> : vector<16xf32>
    %270 = vector.multi_reduction <add>, %269, %cst_122 [0] : vector<16x16xf32> to vector<16xf32>
    %271 = vector.shape_cast %270 : vector<16xf32> to vector<1x16xf32>
    %272 = math.log %271 : vector<1x16xf32>
    %273 = arith.addf %266, %272 : vector<1x16xf32>
    %274 = vector.broadcast %273 : vector<1x16xf32> to vector<16x16xf32>
    %275 = arith.subf %264, %274 : vector<16x16xf32>
    %cst_123 = arith.constant dense<0xFF800000> : vector<16xf32>
    %276 = vector.multi_reduction <maximumf>, %275, %cst_123 [1] : vector<16x16xf32> to vector<16xf32>
    %277 = vector.shape_cast %276 : vector<16xf32> to vector<16x1xf32>
    %278 = vector.broadcast %277 : vector<16x1xf32> to vector<16x16xf32>
    %279 = arith.subf %275, %278 : vector<16x16xf32>
    %280 = math.exp %279 : vector<16x16xf32>
    %cst_124 = arith.constant dense<0.000000e+00> : vector<16xf32>
    %281 = vector.multi_reduction <add>, %280, %cst_124 [1] : vector<16x16xf32> to vector<16xf32>
    %282 = vector.shape_cast %281 : vector<16xf32> to vector<16x1xf32>
    %283 = math.log %282 : vector<16x1xf32>
    %284 = arith.addf %277, %283 : vector<16x1xf32>
    %285 = vector.broadcast %284 : vector<16x1xf32> to vector<16x16xf32>
    %286 = arith.subf %275, %285 : vector<16x16xf32>
    %cst_125 = arith.constant dense<0xFF800000> : vector<16xf32>
    %287 = vector.multi_reduction <maximumf>, %286, %cst_125 [0] : vector<16x16xf32> to vector<16xf32>
    %288 = vector.shape_cast %287 : vector<16xf32> to vector<1x16xf32>
    %289 = vector.broadcast %288 : vector<1x16xf32> to vector<16x16xf32>
    %290 = arith.subf %286, %289 : vector<16x16xf32>
    %291 = math.exp %290 : vector<16x16xf32>
    %cst_126 = arith.constant dense<0.000000e+00> : vector<16xf32>
    %292 = vector.multi_reduction <add>, %291, %cst_126 [0] : vector<16x16xf32> to vector<16xf32>
    %293 = vector.shape_cast %292 : vector<16xf32> to vector<1x16xf32>
    %294 = math.log %293 : vector<1x16xf32>
    %295 = arith.addf %288, %294 : vector<1x16xf32>
    %296 = vector.broadcast %295 : vector<1x16xf32> to vector<16x16xf32>
    %297 = arith.subf %286, %296 : vector<16x16xf32>
    %cst_127 = arith.constant dense<0xFF800000> : vector<16xf32>
    %298 = vector.multi_reduction <maximumf>, %297, %cst_127 [1] : vector<16x16xf32> to vector<16xf32>
    %299 = vector.shape_cast %298 : vector<16xf32> to vector<16x1xf32>
    %300 = vector.broadcast %299 : vector<16x1xf32> to vector<16x16xf32>
    %301 = arith.subf %297, %300 : vector<16x16xf32>
    %302 = math.exp %301 : vector<16x16xf32>
    %cst_128 = arith.constant dense<0.000000e+00> : vector<16xf32>
    %303 = vector.multi_reduction <add>, %302, %cst_128 [1] : vector<16x16xf32> to vector<16xf32>
    %304 = vector.shape_cast %303 : vector<16xf32> to vector<16x1xf32>
    %305 = math.log %304 : vector<16x1xf32>
    %306 = arith.addf %299, %305 : vector<16x1xf32>
    %307 = vector.broadcast %306 : vector<16x1xf32> to vector<16x16xf32>
    %308 = arith.subf %297, %307 : vector<16x16xf32>
    %cst_129 = arith.constant dense<0xFF800000> : vector<16xf32>
    %309 = vector.multi_reduction <maximumf>, %308, %cst_129 [0] : vector<16x16xf32> to vector<16xf32>
    %310 = vector.shape_cast %309 : vector<16xf32> to vector<1x16xf32>
    %311 = vector.broadcast %310 : vector<1x16xf32> to vector<16x16xf32>
    %312 = arith.subf %308, %311 : vector<16x16xf32>
    %313 = math.exp %312 : vector<16x16xf32>
    %cst_130 = arith.constant dense<0.000000e+00> : vector<16xf32>
    %314 = vector.multi_reduction <add>, %313, %cst_130 [0] : vector<16x16xf32> to vector<16xf32>
    %315 = vector.shape_cast %314 : vector<16xf32> to vector<1x16xf32>
    %316 = math.log %315 : vector<1x16xf32>
    %317 = arith.addf %310, %316 : vector<1x16xf32>
    %318 = vector.broadcast %317 : vector<1x16xf32> to vector<16x16xf32>
    %319 = arith.subf %308, %318 : vector<16x16xf32>
    %cst_131 = arith.constant dense<0xFF800000> : vector<16xf32>
    %320 = vector.multi_reduction <maximumf>, %319, %cst_131 [1] : vector<16x16xf32> to vector<16xf32>
    %321 = vector.shape_cast %320 : vector<16xf32> to vector<16x1xf32>
    %322 = vector.broadcast %321 : vector<16x1xf32> to vector<16x16xf32>
    %323 = arith.subf %319, %322 : vector<16x16xf32>
    %324 = math.exp %323 : vector<16x16xf32>
    %cst_132 = arith.constant dense<0.000000e+00> : vector<16xf32>
    %325 = vector.multi_reduction <add>, %324, %cst_132 [1] : vector<16x16xf32> to vector<16xf32>
    %326 = vector.shape_cast %325 : vector<16xf32> to vector<16x1xf32>
    %327 = math.log %326 : vector<16x1xf32>
    %328 = arith.addf %321, %327 : vector<16x1xf32>
    %329 = vector.broadcast %328 : vector<16x1xf32> to vector<16x16xf32>
    %330 = arith.subf %319, %329 : vector<16x16xf32>
    %cst_133 = arith.constant dense<0xFF800000> : vector<16xf32>
    %331 = vector.multi_reduction <maximumf>, %330, %cst_133 [0] : vector<16x16xf32> to vector<16xf32>
    %332 = vector.shape_cast %331 : vector<16xf32> to vector<1x16xf32>
    %333 = vector.broadcast %332 : vector<1x16xf32> to vector<16x16xf32>
    %334 = arith.subf %330, %333 : vector<16x16xf32>
    %335 = math.exp %334 : vector<16x16xf32>
    %cst_134 = arith.constant dense<0.000000e+00> : vector<16xf32>
    %336 = vector.multi_reduction <add>, %335, %cst_134 [0] : vector<16x16xf32> to vector<16xf32>
    %337 = vector.shape_cast %336 : vector<16xf32> to vector<1x16xf32>
    %338 = math.log %337 : vector<1x16xf32>
    %339 = arith.addf %332, %338 : vector<1x16xf32>
    %340 = vector.broadcast %339 : vector<1x16xf32> to vector<16x16xf32>
    %341 = arith.subf %330, %340 : vector<16x16xf32>
    %cst_135 = arith.constant dense<0xFF800000> : vector<16xf32>
    %342 = vector.multi_reduction <maximumf>, %341, %cst_135 [1] : vector<16x16xf32> to vector<16xf32>
    %343 = vector.shape_cast %342 : vector<16xf32> to vector<16x1xf32>
    %344 = vector.broadcast %343 : vector<16x1xf32> to vector<16x16xf32>
    %345 = arith.subf %341, %344 : vector<16x16xf32>
    %346 = math.exp %345 : vector<16x16xf32>
    %cst_136 = arith.constant dense<0.000000e+00> : vector<16xf32>
    %347 = vector.multi_reduction <add>, %346, %cst_136 [1] : vector<16x16xf32> to vector<16xf32>
    %348 = vector.shape_cast %347 : vector<16xf32> to vector<16x1xf32>
    %349 = math.log %348 : vector<16x1xf32>
    %350 = arith.addf %343, %349 : vector<16x1xf32>
    %351 = vector.broadcast %350 : vector<16x1xf32> to vector<16x16xf32>
    %352 = arith.subf %341, %351 : vector<16x16xf32>
    %cst_137 = arith.constant dense<0xFF800000> : vector<16xf32>
    %353 = vector.multi_reduction <maximumf>, %352, %cst_137 [0] : vector<16x16xf32> to vector<16xf32>
    %354 = vector.shape_cast %353 : vector<16xf32> to vector<1x16xf32>
    %355 = vector.broadcast %354 : vector<1x16xf32> to vector<16x16xf32>
    %356 = arith.subf %352, %355 : vector<16x16xf32>
    %357 = math.exp %356 : vector<16x16xf32>
    %cst_138 = arith.constant dense<0.000000e+00> : vector<16xf32>
    %358 = vector.multi_reduction <add>, %357, %cst_138 [0] : vector<16x16xf32> to vector<16xf32>
    %359 = vector.shape_cast %358 : vector<16xf32> to vector<1x16xf32>
    %360 = math.log %359 : vector<1x16xf32>
    %361 = arith.addf %354, %360 : vector<1x16xf32>
    %362 = vector.broadcast %361 : vector<1x16xf32> to vector<16x16xf32>
    %363 = arith.subf %352, %362 : vector<16x16xf32>
    %cst_139 = arith.constant dense<0xFF800000> : vector<16xf32>
    %364 = vector.multi_reduction <maximumf>, %363, %cst_139 [1] : vector<16x16xf32> to vector<16xf32>
    %365 = vector.shape_cast %364 : vector<16xf32> to vector<16x1xf32>
    %366 = vector.broadcast %365 : vector<16x1xf32> to vector<16x16xf32>
    %367 = arith.subf %363, %366 : vector<16x16xf32>
    %368 = math.exp %367 : vector<16x16xf32>
    %cst_140 = arith.constant dense<0.000000e+00> : vector<16xf32>
    %369 = vector.multi_reduction <add>, %368, %cst_140 [1] : vector<16x16xf32> to vector<16xf32>
    %370 = vector.shape_cast %369 : vector<16xf32> to vector<16x1xf32>
    %371 = math.log %370 : vector<16x1xf32>
    %372 = arith.addf %365, %371 : vector<16x1xf32>
    %373 = vector.broadcast %372 : vector<16x1xf32> to vector<16x16xf32>
    %374 = arith.subf %363, %373 : vector<16x16xf32>
    %cst_141 = arith.constant dense<0xFF800000> : vector<16xf32>
    %375 = vector.multi_reduction <maximumf>, %374, %cst_141 [0] : vector<16x16xf32> to vector<16xf32>
    %376 = vector.shape_cast %375 : vector<16xf32> to vector<1x16xf32>
    %377 = vector.broadcast %376 : vector<1x16xf32> to vector<16x16xf32>
    %378 = arith.subf %374, %377 : vector<16x16xf32>
    %379 = math.exp %378 : vector<16x16xf32>
    %cst_142 = arith.constant dense<0.000000e+00> : vector<16xf32>
    %380 = vector.multi_reduction <add>, %379, %cst_142 [0] : vector<16x16xf32> to vector<16xf32>
    %381 = vector.shape_cast %380 : vector<16xf32> to vector<1x16xf32>
    %382 = math.log %381 : vector<1x16xf32>
    %383 = arith.addf %376, %382 : vector<1x16xf32>
    %384 = vector.broadcast %383 : vector<1x16xf32> to vector<16x16xf32>
    %385 = arith.subf %374, %384 : vector<16x16xf32>
    %cst_143 = arith.constant dense<0xFF800000> : vector<16xf32>
    %386 = vector.multi_reduction <maximumf>, %385, %cst_143 [1] : vector<16x16xf32> to vector<16xf32>
    %387 = vector.shape_cast %386 : vector<16xf32> to vector<16x1xf32>
    %388 = vector.broadcast %387 : vector<16x1xf32> to vector<16x16xf32>
    %389 = arith.subf %385, %388 : vector<16x16xf32>
    %390 = math.exp %389 : vector<16x16xf32>
    %cst_144 = arith.constant dense<0.000000e+00> : vector<16xf32>
    %391 = vector.multi_reduction <add>, %390, %cst_144 [1] : vector<16x16xf32> to vector<16xf32>
    %392 = vector.shape_cast %391 : vector<16xf32> to vector<16x1xf32>
    %393 = math.log %392 : vector<16x1xf32>
    %394 = arith.addf %387, %393 : vector<16x1xf32>
    %395 = vector.broadcast %394 : vector<16x1xf32> to vector<16x16xf32>
    %396 = arith.subf %385, %395 : vector<16x16xf32>
    %cst_145 = arith.constant dense<0xFF800000> : vector<16xf32>
    %397 = vector.multi_reduction <maximumf>, %396, %cst_145 [0] : vector<16x16xf32> to vector<16xf32>
    %398 = vector.shape_cast %397 : vector<16xf32> to vector<1x16xf32>
    %399 = vector.broadcast %398 : vector<1x16xf32> to vector<16x16xf32>
    %400 = arith.subf %396, %399 : vector<16x16xf32>
    %401 = math.exp %400 : vector<16x16xf32>
    %cst_146 = arith.constant dense<0.000000e+00> : vector<16xf32>
    %402 = vector.multi_reduction <add>, %401, %cst_146 [0] : vector<16x16xf32> to vector<16xf32>
    %403 = vector.shape_cast %402 : vector<16xf32> to vector<1x16xf32>
    %404 = math.log %403 : vector<1x16xf32>
    %405 = arith.addf %398, %404 : vector<1x16xf32>
    %406 = vector.broadcast %405 : vector<1x16xf32> to vector<16x16xf32>
    %407 = arith.subf %396, %406 : vector<16x16xf32>
    %408 = math.exp %407 : vector<16x16xf32>
    %cst_147 = arith.constant dense<0.000000e+00> : vector<16x16xf32>
    %409 = tpu.matmul %408, %183, %cst_147 {dimension_numbers = #tpu.dot_dimension_numbers<[1], [0], [0], [1], [0, 0, 1, 1], [], []>} : vector<16x16xf32>, vector<16x16xf32>, vector<16x16xf32> -> vector<16x16xf32>
    %410 = arith.subf %182, %409 : vector<16x16xf32>
    %cst_148 = arith.constant 0.000000e+00 : f32
    %411 = vector.broadcast %cst_148 : f32 to vector<16x16xf32>
    %412 = arith.maximumf %410, %411 : vector<16x16xf32>
    %cst_149 = arith.constant dense<0.000000e+00> : vector<8x16xf32>
    %413 = tpu.matmul %29, %412, %cst_149 {dimension_numbers = #tpu.dot_dimension_numbers<[1], [0], [0], [1], [0, 0, 1, 1], [], []>} : vector<8x16xf32>, vector<16x16xf32>, vector<8x16xf32> -> vector<8x16xf32>
    %cst_150 = arith.constant dense<0.000000e+00> : vector<8xf32>
    %414 = vector.multi_reduction <add>, %413, %cst_150 [1] : vector<8x16xf32> to vector<8xf32>
    %415 = vector.shape_cast %414 : vector<8xf32> to vector<8x1xf32>
    %c0_151 = arith.constant 0 : index
    %c0_152 = arith.constant 0 : index
    %416 = vector.load %arg6[%c0_151, %c0_152] : memref<8x1xf32, #tpu.memory_space<vmem>>, vector<8x1xf32>
    tpu.vector_store %arg6[%c0_151, %c0_152], %415 {strides = array<i32>} : memref<8x1xf32, #tpu.memory_space<vmem>>, vector<8x1xf32>,
    return
  }
  func.func @transform_0(%arg0: i32) -> (i32, i32) {
    %c0_i32 = arith.constant 0 : i32
    %c0_i32_0 = arith.constant 0 : i32
    %c0_i32_1 = arith.constant 0 : i32
    return %c0_i32, %c0_i32_0 : i32, i32
  }
  func.func @transform_1(%arg0: i32) -> (i32, i32) {
    %c0_i32 = arith.constant 0 : i32
    %c0_i32_0 = arith.constant 0 : i32
    %c0_i32_1 = arith.constant 0 : i32
    return %c0_i32, %c0_i32_0 : i32, i32
  }
  func.func @transform_2(%arg0: i32) -> (i32, i32) {
    %c0_i32 = arith.constant 0 : i32
    %c0_i32_0 = arith.constant 0 : i32
    %c0_i32_1 = arith.constant 0 : i32
    return %c0_i32, %c0_i32_0 : i32, i32
  }
  func.func @transform_3(%arg0: i32) -> (i32, i32) {
    %c0_i32 = arith.constant 0 : i32
    %c0_i32_0 = arith.constant 0 : i32
    %c0_i32_1 = arith.constant 0 : i32
    return %c0_i32, %c0_i32_0 : i32, i32
  }
  func.func @transform_4(%arg0: i32) -> (i32, i32) {
    %c0_i32 = arith.constant 0 : i32
    %c0_i32_0 = arith.constant 0 : i32
    %c0_i32_1 = arith.constant 0 : i32
    return %c0_i32, %c0_i32_0 : i32, i32
  }
  func.func @transform_5(%arg0: i32) -> (i32, i32) {
    %c0_i32 = arith.constant 0 : i32
    %c0_i32_0 = arith.constant 0 : i32
    %c0_i32_1 = arith.constant 0 : i32
    return %c0_i32, %c0_i32_0 : i32, i32
  }
}

</mosaic_0001>

<llo_original>
// kernel: tpu_custom_call.1
$region0: #{tpu_custom_call.1}
  #allocation0 [shape = 'u32[]', space=smem, size = 0x4, offset = 0x4, fixed_abs, tag = 'smem constant byte address 0x4 - core index']
  #allocation1 [shape = 'u32[144,128]{1,0:T(1,128)}', space=vmem, size = 0x12000, scoped, tag = 'internal scratch']
  %s0 = inlined_call_operand.vmem [shape: f32[80,16], index: 0, kind: input, shape index: {}]
  %s1 = inlined_call_operand.vmem [shape: f32[128,24], index: 1, kind: input, shape index: {}]
  %s2 = inlined_call_operand.vmem [shape: f32[200,16], index: 2, kind: input, shape index: {}]
  %s3 = inlined_call_operand.vmem [shape: f32[88,32], index: 3, kind: input, shape index: {}]
  %s4 = inlined_call_operand.vmem [shape: f32[24,16], index: 4, kind: input, shape index: {}]
  %s5 = inlined_call_operand.vmem [shape: f32[8,1], index: 5, kind: output, shape index: {}]
  %s6 = sld [smem:[#allocation0]]
  $region30: #{tpu_custom_call.1} parent=0
    _
  %s8 = ssub.s32 1, %s6
  %s9 = scalar_select 0, %s8, %s6
  // Predicated region
  $region2: #{tpu_custom_call.1} parent=0 // pred_check
    _
  $region3: #{tpu_custom_call.1} parent=0 // pred_check_branch
    %11 = sbr.rel (0) target = $region5
  $region4: #{tpu_custom_call.1} parent=0 // pred_region
    _
  $region5: #{tpu_custom_call.1} parent=0 // pred_fallthru
    _
  // Predicated region
  $region6: #{tpu_custom_call.1} parent=0 // pred_check
    _
  $region7: #{tpu_custom_call.1} parent=0 // pred_check_branch
    %13 = sbr.rel (0) target = $region9
  $region8: #{tpu_custom_call.1} parent=0 // pred_region
    _
  $region9: #{tpu_custom_call.1} parent=0 // pred_fallthru
    _
  // Predicated region
  $region10: #{tpu_custom_call.1} parent=0 // pred_check
    _
  $region11: #{tpu_custom_call.1} parent=0 // pred_check_branch
    %15 = sbr.rel (0) target = $region13
  $region12: #{tpu_custom_call.1} parent=0 // pred_region
    _
  $region13: #{tpu_custom_call.1} parent=0 // pred_fallthru
    _
  // Predicated region
  $region14: #{tpu_custom_call.1} parent=0 // pred_check
    _
  $region15: #{tpu_custom_call.1} parent=0 // pred_check_branch
    %17 = sbr.rel (0) target = $region17
  $region16: #{tpu_custom_call.1} parent=0 // pred_region
    _
  $region17: #{tpu_custom_call.1} parent=0 // pred_fallthru
    _
  // Predicated region
  $region18: #{tpu_custom_call.1} parent=0 // pred_check
    _
  $region19: #{tpu_custom_call.1} parent=0 // pred_check_branch
    %19 = sbr.rel (0) target = $region21
  $region20: #{tpu_custom_call.1} parent=0 // pred_region
    _
  $region21: #{tpu_custom_call.1} parent=0 // pred_fallthru
    _
  %v20 = vld [vmem:[%s0] sm:$0xff]
  %v21 = vld [vmem:[%s0 + $0x8] sm:$0xff]
  %v22 = vld [vmem:[%s0 + $0x10] sm:$0xff]
  %v23 = vld [vmem:[%s0 + $0x18] sm:$0xff]
  %v24 = vld [vmem:[%s0 + $0x20] sm:$0xff]
  %v25 = vld [vmem:[%s0 + $0x28] sm:$0xff]
  %v26 = vld [vmem:[%s0 + $0x30] sm:$0xff]
  %v27 = vld [vmem:[%s0 + $0x38] sm:$0xff]
  %v28 = vld [vmem:[%s0 + $0x40] sm:$0xff]
  %v29 = vld [vmem:[%s0 + $0x48] sm:$0xff]
  %v30 = vld [vmem:[%s1] sm:$0xff]
  %v31 = vld [vmem:[%s1 + $0x8] sm:$0xff]
  %v32 = vld [vmem:[%s1 + $0x10] sm:$0xff]
  %v33 = vld [vmem:[%s1 + $0x18] sm:$0xff]
  %v34 = vld [vmem:[%s1 + $0x20] sm:$0xff]
  %v35 = vld [vmem:[%s1 + $0x28] sm:$0xff]
  %v36 = vld [vmem:[%s1 + $0x30] sm:$0xff]
  %v37 = vld [vmem:[%s1 + $0x38] sm:$0xff]
  %v38 = vld [vmem:[%s1 + $0x40] sm:$0xff]
  %v39 = vld [vmem:[%s1 + $0x48] sm:$0xff]
  %v40 = vld [vmem:[%s1 + $0x50] sm:$0xff]
  %v41 = vld [vmem:[%s1 + $0x58] sm:$0xff]
  %v42 = vld [vmem:[%s1 + $0x60] sm:$0xff]
  %v43 = vld [vmem:[%s1 + $0x68] sm:$0xff]
  %v44 = vld [vmem:[%s1 + $0x70] sm:$0xff]
  %v45 = vld [vmem:[%s1 + $0x78] sm:$0xff]
  %v46 = vld [vmem:[%s2] sm:$0xff]
  %v47 = vld [vmem:[%s2 + $0x8] sm:$0xff]
  %v48 = vld [vmem:[%s2 + $0x10] sm:$0xff]
  %v49 = vld [vmem:[%s2 + $0x18] sm:$0xff]
  %v50 = vld [vmem:[%s2 + $0x20] sm:$0xff]
  %v51 = vld [vmem:[%s2 + $0x28] sm:$0xff]
  %v52 = vld [vmem:[%s2 + $0x30] sm:$0xff]
  %v53 = vld [vmem:[%s2 + $0x38] sm:$0xff]
  %v54 = vld [vmem:[%s2 + $0x40] sm:$0xff]
  %v55 = vld [vmem:[%s2 + $0x48] sm:$0xff]
  %v56 = vld [vmem:[%s2 + $0x50] sm:$0xff]
  %v57 = vld [vmem:[%s2 + $0x58] sm:$0xff]
  %v58 = vld [vmem:[%s2 + $0x60] sm:$0xff]
  %v59 = vld [vmem:[%s2 + $0x68] sm:$0xff]
  %v60 = vld [vmem:[%s2 + $0x70] sm:$0xff]
  %v61 = vld [vmem:[%s2 + $0x78] sm:$0xff]
  %v62 = vld [vmem:[%s2 + $0x80] sm:$0xff]
  %v63 = vld [vmem:[%s2 + $0x88] sm:$0xff]
  %v64 = vld [vmem:[%s2 + $0x90] sm:$0xff]
  %v65 = vld [vmem:[%s2 + $0x98] sm:$0xff]
  %v66 = vld [vmem:[%s2 + $0xa0] sm:$0xff]
  %v67 = vld [vmem:[%s2 + $0xa8] sm:$0xff]
  %v68 = vld [vmem:[%s2 + $0xb0] sm:$0xff]
  %v69 = vld [vmem:[%s2 + $0xb8] sm:$0xff]
  %v70 = vld [vmem:[%s2 + $0xc0] sm:$0x1]
  %v71 = vld [vmem:[%s2 + $0xc1] sm:$0x1]
  %v72 = vld [vmem:[%s2 + $0xc2] sm:$0x1]
  %v73 = vld [vmem:[%s2 + $0xc3] sm:$0x1]
  %v74 = vld [vmem:[%s2 + $0xc4] sm:$0x1]
  %v75 = vld [vmem:[%s2 + $0xc5] sm:$0x1]
  %v76 = vld [vmem:[%s2 + $0xc6] sm:$0x1]
  %v77 = vld [vmem:[%s3] sm:$0xff]
  %v78 = vld [vmem:[%s3 + $0x8] sm:$0xff]
  %v79 = vld [vmem:[%s3 + $0x10] sm:$0xff]
  %v80 = vld [vmem:[%s3 + $0x18] sm:$0xff]
  %v81 = vld [vmem:[%s3 + $0x20] sm:$0xff]
  %v82 = vld [vmem:[%s3 + $0x28] sm:$0xff]
  %v83 = vld [vmem:[%s3 + $0x30] sm:$0xff]
  %v84 = vld [vmem:[%s3 + $0x38] sm:$0xff]
  %v85 = vld [vmem:[%s3 + $0x40] sm:$0xff]
  %v86 = vld [vmem:[%s3 + $0x48] sm:$0xff]
  %v87 = vld [vmem:[%s3 + $0x50] sm:$0x1]
  %v88 = vld [vmem:[%s3 + $0x51] sm:$0x1]
  %v89 = vld [vmem:[%s4] sm:$0xff]
  %v90 = vld [vmem:[%s4 + $0x8] sm:$0xff]
  %v91 = vld [vmem:[%s4 + $0x10] sm:$0xff]
  %v92 = vlaneseq
  %v93 = vshrl.u32 %v92, 7
  %v94 = vsub.s32 0, %v93
  %v95 = vrot.slane %v87, %v94
  %v96 = vlaneseq
  %v97 = vshrl.u32 %v96, 7
  %v98 = vsub.s32 0, %v97
  %v99 = vrot.slane %v88, %v98
  %v100 = vlaneseq
  %v101 = vshrl.u32 %v100, 7
  %v102 = vsub.s32 0, %v101
  %v103 = vrot.slane %v72, %v102
  %v104 = vlaneseq
  %v105 = vshrl.u32 %v104, 7
  %v106 = vsub.s32 0, %v105
  %v107 = vrot.slane %v73, %v106
  %v108 = vlaneseq
  %v109 = vshrl.u32 %v108, 7
  %v110 = vsub.s32 0, %v109
  %v111 = vrot.slane %v74, %v110
  %v112 = vlaneseq
  %v113 = vshrl.u32 %v112, 7
  %v114 = vsub.s32 0, %v113
  %v115 = vrot.slane %v70, %v114
  %v116 = vlaneseq
  %v117 = vshrl.u32 %v116, 7
  %v118 = vsub.s32 0, %v117
  %v119 = vrot.slane %v71, %v118
  %vm120 = vcmask 130048
  %v122 = vsel %vm120, %v20, 0
  %v125 = vsel %vm120, %v21, 0
  %v128 = vsel %vm120, %v22, 0
  %v131 = vsel %vm120, %v23, 0
  %v134 = vsel %vm120, %v24, 0
  %v137 = vsel %vm120, %v25, 0
  %139 = vmatprep.subr.mxu0 0.0
  %140 = vmatpush1.msra.mxu0 0.0
  %141 = vmatprep.subr.mxu0 0.0
  %142 = vmatpush1.msra.mxu0 0.0
  %143 = vmatprep.subr.mxu0 0.0
  %144 = vmatpush1.msra.mxu0 0.0
  %145 = vmatprep.subr.mxu0 0.0
  %146 = vmatpush1.msra.mxu0 0.0
  %147 = vmatprep.subr.mxu0 0.0
  %148 = vmatpush1.msra.mxu0 0.0
  %149 = vmatprep.subr.mxu0 0.0
  %150 = vmatpush1.msra.mxu0 0.0
  %151 = vmatprep.subr.mxu0 0.0
  %152 = vmatpush1.msra.mxu0 0.0
  %153 = vmatprep.subr.mxu0 0.0
  %154 = vmatpush1.msra.mxu0 0.0
  %155 = vmatprep.subr.mxu0 0.0
  %156 = vmatpush1.msra.mxu0 0.0
  %157 = vmatprep.subr.mxu0 0.0
  %158 = vmatpush1.msra.mxu0 0.0
  %159 = vmatprep.subr.mxu0 0.0
  %160 = vmatpush1.msra.mxu0 0.0
  %161 = vmatprep.subr.mxu0 0.0
  %162 = vmatpush1.msra.mxu0 0.0
  %163 = vmatprep.subr.mxu0 0.0
  %164 = vmatpush1.msra.mxu0 0.0
  %165 = vmatprep.subr.mxu0 0.0
  %166 = vmatpush1.msra.mxu0 0.0
  %167 = vmatprep.subr.mxu0 0.0
  %168 = vmatpush1.msra.mxu0 %v47
  %169 = vmatprep.subr.mxu0 0.0
  %170 = vmatpush1.msra.mxu0 %v46
  %171 = vmatprep.subr.mxu0 0.0
  %172 = vmatpush2.msra.mxu0 0.0
  %173 = vmatprep.subr.mxu0 0.0
  %174 = vmatpush2.msra.mxu0 0.0
  %175 = vmatprep.subr.mxu0 0.0
  %176 = vmatpush2.msra.mxu0 0.0
  %177 = vmatprep.subr.mxu0 0.0
  %178 = vmatpush2.msra.mxu0 0.0
  %179 = vmatprep.subr.mxu0 0.0
  %180 = vmatpush2.msra.mxu0 0.0
  %181 = vmatprep.subr.mxu0 0.0
  %182 = vmatpush2.msra.mxu0 0.0
  %183 = vmatprep.subr.mxu0 0.0
  %184 = vmatpush2.msra.mxu0 0.0
  %185 = vmatprep.subr.mxu0 0.0
  %186 = vmatpush2.msra.mxu0 0.0
  %187 = vmatprep.subr.mxu0 0.0
  %188 = vmatpush2.msra.mxu0 0.0
  %189 = vmatprep.subr.mxu0 0.0
  %190 = vmatpush2.msra.mxu0 0.0
  %191 = vmatprep.subr.mxu0 0.0
  %192 = vmatpush2.msra.mxu0 0.0
  %193 = vmatprep.subr.mxu0 0.0
  %194 = vmatpush2.msra.mxu0 0.0
  %195 = vmatprep.subr.mxu0 0.0
  %196 = vmatpush2.msra.mxu0 0.0
  %197 = vmatprep.subr.mxu0 0.0
  %198 = vmatpush2.msra.mxu0 0.0
  %199 = vmatprep.subr.mxu0 0.0
  %200 = vmatpush2.msra.mxu0 0.0
  %201 = vmatprep.subr.mxu0 0.0
  %202 = vmatpush2.msra.mxu0 0.0
  %203 = vmatprep.mubr.f32.mxu0 0.0
  %204 = vmatmul.mubr.f32.gmra.mxu0 %v122
  %v205 = vpop.f32.mrf.mxu0
  %v206 = vadd.f32 0.0, %v205
  %v207 = vpop.f32.mrf.mxu0
  %208 = vmatprep.mubr.f32.mxu0 0.0
  %209 = vmatmul.mubr.f32.gmra.mxu0 %v125
  %v210 = vpop.f32.mrf.mxu0
  %v211 = vadd.f32 0.0, %v210
  %v212 = vpop.f32.mrf.mxu0
  %213 = vmatprep.mubr.f32.mxu0 0.0
  %214 = vmatmul.mubr.f32.gmra.mxu0 %v128
  %v215 = vpop.f32.mrf.mxu0
  %v216 = vadd.f32 0.0, %v215
  %v217 = vpop.f32.mrf.mxu0
  %218 = vmatprep.mubr.f32.mxu0 0.0
  %219 = vmatmul.mubr.f32.gmra.mxu0 %v131
  %v220 = vpop.f32.mrf.mxu0
  %v221 = vadd.f32 0.0, %v220
  %v222 = vpop.f32.mrf.mxu0
  %223 = vmatprep.mubr.f32.mxu0 0.0
  %224 = vmatmul.mubr.f32.gmra.mxu0 %v134
  %v225 = vpop.f32.mrf.mxu0
  %v226 = vadd.f32 0.0, %v225
  %v227 = vpop.f32.mrf.mxu0
  %228 = vmatprep.mubr.f32.mxu0 0.0
  %229 = vmatmul.mubr.f32.gmra.mxu0 %v137
  %v230 = vpop.f32.mrf.mxu0
  %v231 = vadd.f32 0.0, %v230
  %v232 = vpop.f32.mrf.mxu0
  %233 = vdwg.mxu0
  %v235 = vsel %vm120, %v221, 0
  %v238 = vsel %vm120, %v226, 0
  %v241 = vsel %vm120, %v231, 0
  %243 = vmatprep.subr.mxu0 0.0
  %244 = vmatpush1.msra.mxu0 0.0
  %245 = vmatprep.subr.mxu0 0.0
  %246 = vmatpush1.msra.mxu0 0.0
  %247 = vmatprep.subr.mxu0 0.0
  %248 = vmatpush1.msra.mxu0 0.0
  %249 = vmatprep.subr.mxu0 0.0
  %250 = vmatpush1.msra.mxu0 0.0
  %251 = vmatprep.subr.mxu0 0.0
  %252 = vmatpush1.msra.mxu0 0.0
  %253 = vmatprep.subr.mxu0 0.0
  %254 = vmatpush1.msra.mxu0 0.0
  %255 = vmatprep.subr.mxu0 0.0
  %256 = vmatpush1.msra.mxu0 0.0
  %257 = vmatprep.subr.mxu0 0.0
  %258 = vmatpush1.msra.mxu0 0.0
  %259 = vmatprep.subr.mxu0 0.0
  %260 = vmatpush1.msra.mxu0 0.0
  %261 = vmatprep.subr.mxu0 0.0
  %262 = vmatpush1.msra.mxu0 0.0
  %263 = vmatprep.subr.mxu0 0.0
  %264 = vmatpush1.msra.mxu0 0.0
  %265 = vmatprep.subr.mxu0 0.0
  %266 = vmatpush1.msra.mxu0 0.0
  %267 = vmatprep.subr.mxu0 0.0
  %268 = vmatpush1.msra.mxu0 0.0
  %269 = vmatprep.subr.mxu0 0.0
  %270 = vmatpush1.msra.mxu0 0.0
  %271 = vmatprep.subr.mxu0 0.0
  %272 = vmatpush1.msra.mxu0 %v78
  %273 = vmatprep.subr.mxu0 0.0
  %274 = vmatpush1.msra.mxu0 %v77
  %275 = vmatprep.subr.mxu0 0.0
  %276 = vmatpush2.msra.mxu0 0.0
  %277 = vmatprep.subr.mxu0 0.0
  %278 = vmatpush2.msra.mxu0 0.0
  %279 = vmatprep.subr.mxu0 0.0
  %280 = vmatpush2.msra.mxu0 0.0
  %281 = vmatprep.subr.mxu0 0.0
  %282 = vmatpush2.msra.mxu0 0.0
  %283 = vmatprep.subr.mxu0 0.0
  %284 = vmatpush2.msra.mxu0 0.0
  %285 = vmatprep.subr.mxu0 0.0
  %286 = vmatpush2.msra.mxu0 0.0
  %287 = vmatprep.subr.mxu0 0.0
  %288 = vmatpush2.msra.mxu0 0.0
  %289 = vmatprep.subr.mxu0 0.0
  %290 = vmatpush2.msra.mxu0 0.0
  %291 = vmatprep.subr.mxu0 0.0
  %292 = vmatpush2.msra.mxu0 0.0
  %293 = vmatprep.subr.mxu0 0.0
  %294 = vmatpush2.msra.mxu0 0.0
  %295 = vmatprep.subr.mxu0 0.0
  %296 = vmatpush2.msra.mxu0 0.0
  %297 = vmatprep.subr.mxu0 0.0
  %298 = vmatpush2.msra.mxu0 0.0
  %299 = vmatprep.subr.mxu0 0.0
  %300 = vmatpush2.msra.mxu0 0.0
  %301 = vmatprep.subr.mxu0 0.0
  %302 = vmatpush2.msra.mxu0 0.0
  %303 = vmatprep.subr.mxu0 0.0
  %304 = vmatpush2.msra.mxu0 0.0
  %305 = vmatprep.subr.mxu0 0.0
  %306 = vmatpush2.msra.mxu0 0.0
  %307 = vmatprep.mubr.f32.mxu0 0.0
  %308 = vmatmul.mubr.f32.gmra.mxu0 %v235
  %v309 = vpop.f32.mrf.mxu0
  %v310 = vadd.f32 %v95, %v309
  %v311 = vpop.f32.mrf.mxu0
  %312 = vmatprep.mubr.f32.mxu0 0.0
  %313 = vmatmul.mubr.f32.gmra.mxu0 %v238
  %v314 = vpop.f32.mrf.mxu0
  %v315 = vadd.f32 %v95, %v314
  %v316 = vpop.f32.mrf.mxu0
  %317 = vmatprep.mubr.f32.mxu0 0.0
  %318 = vmatmul.mubr.f32.gmra.mxu0 %v241
  %v319 = vpop.f32.mrf.mxu0
  %v320 = vadd.f32 %v95, %v319
  %v321 = vpop.f32.mrf.mxu0
  %322 = vdwg.mxu0
  %v323 = vmax.f32 %v310, 0.0
  %v324 = vmax.f32 %v315, 0.0
  %v325 = vmax.f32 %v320, 0.0
  %vm326 = vcmask 261120
  %v328 = vsel %vm326, %v323, 0
  %v331 = vsel %vm326, %v324, 0
  %v334 = vsel %vm326, %v325, 0
  %336 = vmatprep.subr.mxu0 0.0
  %337 = vmatpush1.msra.mxu0 0.0
  %338 = vmatprep.subr.mxu0 0.0
  %339 = vmatpush1.msra.mxu0 0.0
  %340 = vmatprep.subr.mxu0 0.0
  %341 = vmatpush1.msra.mxu0 0.0
  %342 = vmatprep.subr.mxu0 0.0
  %343 = vmatpush1.msra.mxu0 0.0
  %344 = vmatprep.subr.mxu0 0.0
  %345 = vmatpush1.msra.mxu0 0.0
  %346 = vmatprep.subr.mxu0 0.0
  %347 = vmatpush1.msra.mxu0 0.0
  %348 = vmatprep.subr.mxu0 0.0
  %349 = vmatpush1.msra.mxu0 0.0
  %350 = vmatprep.subr.mxu0 0.0
  %351 = vmatpush1.msra.mxu0 0.0
  %352 = vmatprep.subr.mxu0 0.0
  %353 = vmatpush1.msra.mxu0 0.0
  %354 = vmatprep.subr.mxu0 0.0
  %355 = vmatpush1.msra.mxu0 0.0
  %356 = vmatprep.subr.mxu0 0.0
  %357 = vmatpush1.msra.mxu0 0.0
  %358 = vmatprep.subr.mxu0 0.0
  %359 = vmatpush1.msra.mxu0 0.0
  %360 = vmatprep.subr.mxu0 0.0
  %361 = vmatpush1.msra.mxu0 %v86
  %362 = vmatprep.subr.mxu0 0.0
  %363 = vmatpush1.msra.mxu0 %v85
  %364 = vmatprep.subr.mxu0 0.0
  %365 = vmatpush1.msra.mxu0 %v84
  %366 = vmatprep.subr.mxu0 0.0
  %367 = vmatpush1.msra.mxu0 %v83
  %368 = vmatprep.subr.mxu0 0.0
  %369 = vmatpush2.msra.mxu0 0.0
  %370 = vmatprep.subr.mxu0 0.0
  %371 = vmatpush2.msra.mxu0 0.0
  %372 = vmatprep.subr.mxu0 0.0
  %373 = vmatpush2.msra.mxu0 0.0
  %374 = vmatprep.subr.mxu0 0.0
  %375 = vmatpush2.msra.mxu0 0.0
  %376 = vmatprep.subr.mxu0 0.0
  %377 = vmatpush2.msra.mxu0 0.0
  %378 = vmatprep.subr.mxu0 0.0
  %379 = vmatpush2.msra.mxu0 0.0
  %380 = vmatprep.subr.mxu0 0.0
  %381 = vmatpush2.msra.mxu0 0.0
  %382 = vmatprep.subr.mxu0 0.0
  %383 = vmatpush2.msra.mxu0 0.0
  %384 = vmatprep.subr.mxu0 0.0
  %385 = vmatpush2.msra.mxu0 0.0
  %386 = vmatprep.subr.mxu0 0.0
  %387 = vmatpush2.msra.mxu0 0.0
  %388 = vmatprep.subr.mxu0 0.0
  %389 = vmatpush2.msra.mxu0 0.0
  %390 = vmatprep.subr.mxu0 0.0
  %391 = vmatpush2.msra.mxu0 0.0
  %392 = vmatprep.subr.mxu0 0.0
  %393 = vmatpush2.msra.mxu0 0.0
  %394 = vmatprep.subr.mxu0 0.0
  %395 = vmatpush2.msra.mxu0 0.0
  %396 = vmatprep.subr.mxu0 0.0
  %397 = vmatpush2.msra.mxu0 0.0
  %398 = vmatprep.subr.mxu0 0.0
  %399 = vmatpush2.msra.mxu0 0.0
  %400 = vmatprep.mubr.f32.mxu0 0.0
  %401 = vmatmul.mubr.f32.gmra.mxu0 %v328
  %v402 = vpop.f32.mrf.mxu0
  %v403 = vadd.f32 %v99, %v402
  %v404 = vpop.f32.mrf.mxu0
  %405 = vmatprep.mubr.f32.mxu0 0.0
  %406 = vmatmul.mubr.f32.gmra.mxu0 %v331
  %v407 = vpop.f32.mrf.mxu0
  %v408 = vadd.f32 %v99, %v407
  %v409 = vpop.f32.mrf.mxu0
  %410 = vmatprep.mubr.f32.mxu0 0.0
  %411 = vmatmul.mubr.f32.gmra.mxu0 %v334
  %v412 = vpop.f32.mrf.mxu0
  %v413 = vadd.f32 %v99, %v412
  %v414 = vpop.f32.mrf.mxu0
  %415 = vdwg.mxu0
  %vm416 = vcmask 195584
  %v418 = vsel %vm416, %v30, 0
  %v421 = vsel %vm416, %v31, 0
  %v424 = vsel %vm416, %v32, 0
  %v427 = vsel %vm416, %v33, 0
  %v430 = vsel %vm416, %v34, 0
  %v433 = vsel %vm416, %v35, 0
  %435 = vmatprep.subr.mxu0 0.0
  %436 = vmatpush1.msra.mxu0 0.0
  %437 = vmatprep.subr.mxu0 0.0
  %438 = vmatpush1.msra.mxu0 0.0
  %439 = vmatprep.subr.mxu0 0.0
  %440 = vmatpush1.msra.mxu0 0.0
  %441 = vmatprep.subr.mxu0 0.0
  %442 = vmatpush1.msra.mxu0 0.0
  %443 = vmatprep.subr.mxu0 0.0
  %444 = vmatpush1.msra.mxu0 0.0
  %445 = vmatprep.subr.mxu0 0.0
  %446 = vmatpush1.msra.mxu0 0.0
  %447 = vmatprep.subr.mxu0 0.0
  %448 = vmatpush1.msra.mxu0 0.0
  %449 = vmatprep.subr.mxu0 0.0
  %450 = vmatpush1.msra.mxu0 0.0
  %451 = vmatprep.subr.mxu0 0.0
  %452 = vmatpush1.msra.mxu0 0.0
  %453 = vmatprep.subr.mxu0 0.0
  %454 = vmatpush1.msra.mxu0 0.0
  %455 = vmatprep.subr.mxu0 0.0
  %456 = vmatpush1.msra.mxu0 0.0
  %457 = vmatprep.subr.mxu0 0.0
  %458 = vmatpush1.msra.mxu0 0.0
  %459 = vmatprep.subr.mxu0 0.0
  %460 = vmatpush1.msra.mxu0 0.0
  %461 = vmatprep.subr.mxu0 0.0
  %462 = vmatpush1.msra.mxu0 %v216
  %463 = vmatprep.subr.mxu0 0.0
  %464 = vmatpush1.msra.mxu0 %v211
  %465 = vmatprep.subr.mxu0 0.0
  %466 = vmatpush1.msra.mxu0 %v206
  %467 = vmatprep.subr.mxu0 0.0
  %468 = vmatpush2.msra.mxu0 0.0
  %469 = vmatprep.subr.mxu0 0.0
  %470 = vmatpush2.msra.mxu0 0.0
  %471 = vmatprep.subr.mxu0 0.0
  %472 = vmatpush2.msra.mxu0 0.0
  %473 = vmatprep.subr.mxu0 0.0
  %474 = vmatpush2.msra.mxu0 0.0
  %475 = vmatprep.subr.mxu0 0.0
  %476 = vmatpush2.msra.mxu0 0.0
  %477 = vmatprep.subr.mxu0 0.0
  %478 = vmatpush2.msra.mxu0 0.0
  %479 = vmatprep.subr.mxu0 0.0
  %480 = vmatpush2.msra.mxu0 0.0
  %481 = vmatprep.subr.mxu0 0.0
  %482 = vmatpush2.msra.mxu0 0.0
  %483 = vmatprep.subr.mxu0 0.0
  %484 = vmatpush2.msra.mxu0 0.0
  %485 = vmatprep.subr.mxu0 0.0
  %486 = vmatpush2.msra.mxu0 0.0
  %487 = vmatprep.subr.mxu0 0.0
  %488 = vmatpush2.msra.mxu0 0.0
  %489 = vmatprep.subr.mxu0 0.0
  %490 = vmatpush2.msra.mxu0 0.0
  %491 = vmatprep.subr.mxu0 0.0
  %492 = vmatpush2.msra.mxu0 0.0
  %493 = vmatprep.subr.mxu0 0.0
  %494 = vmatpush2.msra.mxu0 0.0
  %495 = vmatprep.subr.mxu0 0.0
  %496 = vmatpush2.msra.mxu0 0.0
  %497 = vmatprep.subr.mxu0 0.0
  %498 = vmatpush2.msra.mxu0 0.0
  %499 = vmatprep.mubr.f32.mxu0 0.0
  %500 = vmatmul.mubr.f32.gmra.mxu0 %v418
  %v501 = vpop.f32.mrf.mxu0
  %v502 = vadd.f32 0.0, %v501
  %v503 = vpop.f32.mrf.mxu0
  %504 = vmatprep.mubr.f32.mxu0 0.0
  %505 = vmatmul.mubr.f32.gmra.mxu0 %v421
  %v506 = vpop.f32.mrf.mxu0
  %v507 = vadd.f32 0.0, %v506
  %v508 = vpop.f32.mrf.mxu0
  %509 = vmatprep.mubr.f32.mxu0 0.0
  %510 = vmatmul.mubr.f32.gmra.mxu0 %v424
  %v511 = vpop.f32.mrf.mxu0
  %v512 = vadd.f32 0.0, %v511
  %v513 = vpop.f32.mrf.mxu0
  %514 = vmatprep.mubr.f32.mxu0 0.0
  %515 = vmatmul.mubr.f32.gmra.mxu0 %v427
  %v516 = vpop.f32.mrf.mxu0
  %v517 = vadd.f32 0.0, %v516
  %v518 = vpop.f32.mrf.mxu0
  %519 = vmatprep.mubr.f32.mxu0 0.0
  %520 = vmatmul.mubr.f32.gmra.mxu0 %v430
  %v521 = vpop.f32.mrf.mxu0
  %v522 = vadd.f32 0.0, %v521
  %v523 = vpop.f32.mrf.mxu0
  %524 = vmatprep.mubr.f32.mxu0 0.0
  %525 = vmatmul.mubr.f32.gmra.mxu0 %v433
  %v526 = vpop.f32.mrf.mxu0
  %v527 = vadd.f32 0.0, %v526
  %v528 = vpop.f32.mrf.mxu0
  %529 = vdwg.mxu0
  %v531 = vsel %vm120, %v517, 0
  %v534 = vsel %vm120, %v522, 0
  %v537 = vsel %vm120, %v527, 0
  %539 = vmatprep.subr.mxu0 0.0
  %540 = vmatpush1.msra.mxu0 0.0
  %541 = vmatprep.subr.mxu0 0.0
  %542 = vmatpush1.msra.mxu0 0.0
  %543 = vmatprep.subr.mxu0 0.0
  %544 = vmatpush1.msra.mxu0 0.0
  %545 = vmatprep.subr.mxu0 0.0
  %546 = vmatpush1.msra.mxu0 0.0
  %547 = vmatprep.subr.mxu0 0.0
  %548 = vmatpush1.msra.mxu0 0.0
  %549 = vmatprep.subr.mxu0 0.0
  %550 = vmatpush1.msra.mxu0 0.0
  %551 = vmatprep.subr.mxu0 0.0
  %552 = vmatpush1.msra.mxu0 0.0
  %553 = vmatprep.subr.mxu0 0.0
  %554 = vmatpush1.msra.mxu0 0.0
  %555 = vmatprep.subr.mxu0 0.0
  %556 = vmatpush1.msra.mxu0 0.0
  %557 = vmatprep.subr.mxu0 0.0
  %558 = vmatpush1.msra.mxu0 0.0
  %559 = vmatprep.subr.mxu0 0.0
  %560 = vmatpush1.msra.mxu0 0.0
  %561 = vmatprep.subr.mxu0 0.0
  %562 = vmatpush1.msra.mxu0 0.0
  %563 = vmatprep.subr.mxu0 0.0
  %564 = vmatpush1.msra.mxu0 0.0
  %565 = vmatprep.subr.mxu0 0.0
  %566 = vmatpush1.msra.mxu0 0.0
  %567 = vmatprep.subr.mxu0 0.0
  %568 = vmatpush1.msra.mxu0 %v82
  %569 = vmatprep.subr.mxu0 0.0
  %570 = vmatpush1.msra.mxu0 %v81
  %571 = vmatprep.subr.mxu0 0.0
  %572 = vmatpush2.msra.mxu0 0.0
  %573 = vmatprep.subr.mxu0 0.0
  %574 = vmatpush2.msra.mxu0 0.0
  %575 = vmatprep.subr.mxu0 0.0
  %576 = vmatpush2.msra.mxu0 0.0
  %577 = vmatprep.subr.mxu0 0.0
  %578 = vmatpush2.msra.mxu0 0.0
  %579 = vmatprep.subr.mxu0 0.0
  %580 = vmatpush2.msra.mxu0 0.0
  %581 = vmatprep.subr.mxu0 0.0
  %582 = vmatpush2.msra.mxu0 0.0
  %583 = vmatprep.subr.mxu0 0.0
  %584 = vmatpush2.msra.mxu0 0.0
  %585 = vmatprep.subr.mxu0 0.0
  %586 = vmatpush2.msra.mxu0 0.0
  %587 = vmatprep.subr.mxu0 0.0
  %588 = vmatpush2.msra.mxu0 0.0
  %589 = vmatprep.subr.mxu0 0.0
  %590 = vmatpush2.msra.mxu0 0.0
  %591 = vmatprep.subr.mxu0 0.0
  %592 = vmatpush2.msra.mxu0 0.0
  %593 = vmatprep.subr.mxu0 0.0
  %594 = vmatpush2.msra.mxu0 0.0
  %595 = vmatprep.subr.mxu0 0.0
  %596 = vmatpush2.msra.mxu0 0.0
  %597 = vmatprep.subr.mxu0 0.0
  %598 = vmatpush2.msra.mxu0 0.0
  %599 = vmatprep.subr.mxu0 0.0
  %600 = vmatpush2.msra.mxu0 0.0
  %601 = vmatprep.subr.mxu0 0.0
  %602 = vmatpush2.msra.mxu0 0.0
  %603 = vmatprep.mubr.f32.mxu0 0.0
  %604 = vmatmul.mubr.f32.gmra.mxu0 %v531
  %v605 = vpop.f32.mrf.mxu0
  %v606 = vadd.f32 0.0, %v605
  %v607 = vpop.f32.mrf.mxu0
  %608 = vmatprep.mubr.f32.mxu0 0.0
  %609 = vmatmul.mubr.f32.gmra.mxu0 %v534
  %v610 = vpop.f32.mrf.mxu0
  %v611 = vadd.f32 0.0, %v610
  %v612 = vpop.f32.mrf.mxu0
  %613 = vmatprep.mubr.f32.mxu0 0.0
  %614 = vmatmul.mubr.f32.gmra.mxu0 %v537
  %v615 = vpop.f32.mrf.mxu0
  %v616 = vadd.f32 0.0, %v615
  %v617 = vpop.f32.mrf.mxu0
  %618 = vdwg.mxu0
  %v620 = vsel %vm120, %v502, 0
  %v623 = vsel %vm120, %v507, 0
  %v626 = vsel %vm120, %v512, 0
  %628 = vmatprep.subr.mxu0 0.0
  %629 = vmatpush1.msra.mxu0 0.0
  %630 = vmatprep.subr.mxu0 0.0
  %631 = vmatpush1.msra.mxu0 0.0
  %632 = vmatprep.subr.mxu0 0.0
  %633 = vmatpush1.msra.mxu0 0.0
  %634 = vmatprep.subr.mxu0 0.0
  %635 = vmatpush1.msra.mxu0 0.0
  %636 = vmatprep.subr.mxu0 0.0
  %637 = vmatpush1.msra.mxu0 0.0
  %638 = vmatprep.subr.mxu0 0.0
  %639 = vmatpush1.msra.mxu0 0.0
  %640 = vmatprep.subr.mxu0 0.0
  %641 = vmatpush1.msra.mxu0 0.0
  %642 = vmatprep.subr.mxu0 0.0
  %643 = vmatpush1.msra.mxu0 0.0
  %644 = vmatprep.subr.mxu0 0.0
  %645 = vmatpush1.msra.mxu0 0.0
  %646 = vmatprep.subr.mxu0 0.0
  %647 = vmatpush1.msra.mxu0 0.0
  %648 = vmatprep.subr.mxu0 0.0
  %649 = vmatpush1.msra.mxu0 0.0
  %650 = vmatprep.subr.mxu0 0.0
  %651 = vmatpush1.msra.mxu0 0.0
  %652 = vmatprep.subr.mxu0 0.0
  %653 = vmatpush1.msra.mxu0 0.0
  %654 = vmatprep.subr.mxu0 0.0
  %655 = vmatpush1.msra.mxu0 0.0
  %656 = vmatprep.subr.mxu0 0.0
  %657 = vmatpush1.msra.mxu0 %v80
  %658 = vmatprep.subr.mxu0 0.0
  %659 = vmatpush1.msra.mxu0 %v79
  %660 = vmatprep.subr.mxu0 0.0
  %661 = vmatpush2.msra.mxu0 0.0
  %662 = vmatprep.subr.mxu0 0.0
  %663 = vmatpush2.msra.mxu0 0.0
  %664 = vmatprep.subr.mxu0 0.0
  %665 = vmatpush2.msra.mxu0 0.0
  %666 = vmatprep.subr.mxu0 0.0
  %667 = vmatpush2.msra.mxu0 0.0
  %668 = vmatprep.subr.mxu0 0.0
  %669 = vmatpush2.msra.mxu0 0.0
  %670 = vmatprep.subr.mxu0 0.0
  %671 = vmatpush2.msra.mxu0 0.0
  %672 = vmatprep.subr.mxu0 0.0
  %673 = vmatpush2.msra.mxu0 0.0
  %674 = vmatprep.subr.mxu0 0.0
  %675 = vmatpush2.msra.mxu0 0.0
  %676 = vmatprep.subr.mxu0 0.0
  %677 = vmatpush2.msra.mxu0 0.0
  %678 = vmatprep.subr.mxu0 0.0
  %679 = vmatpush2.msra.mxu0 0.0
  %680 = vmatprep.subr.mxu0 0.0
  %681 = vmatpush2.msra.mxu0 0.0
  %682 = vmatprep.subr.mxu0 0.0
  %683 = vmatpush2.msra.mxu0 0.0
  %684 = vmatprep.subr.mxu0 0.0
  %685 = vmatpush2.msra.mxu0 0.0
  %686 = vmatprep.subr.mxu0 0.0
  %687 = vmatpush2.msra.mxu0 0.0
  %688 = vmatprep.subr.mxu0 0.0
  %689 = vmatpush2.msra.mxu0 0.0
  %690 = vmatprep.subr.mxu0 0.0
  %691 = vmatpush2.msra.mxu0 0.0
  %692 = vmatprep.mubr.f32.mxu0 0.0
  %693 = vmatmul.mubr.f32.gmra.mxu0 %v620
  %v694 = vpop.f32.mrf.mxu0
  %v695 = vadd.f32 %v606, %v694
  %v696 = vpop.f32.mrf.mxu0
  %697 = vmatprep.mubr.f32.mxu0 0.0
  %698 = vmatmul.mubr.f32.gmra.mxu0 %v623
  %v699 = vpop.f32.mrf.mxu0
  %v700 = vadd.f32 %v611, %v699
  %v701 = vpop.f32.mrf.mxu0
  %702 = vmatprep.mubr.f32.mxu0 0.0
  %703 = vmatmul.mubr.f32.gmra.mxu0 %v626
  %v704 = vpop.f32.mrf.mxu0
  %v705 = vadd.f32 %v616, %v704
  %v706 = vpop.f32.mrf.mxu0
  %707 = vdwg.mxu0
  %v708 = vadd.f32 %v695, %v403
  %v709 = vadd.f32 %v700, %v408
  %v710 = vadd.f32 %v705, %v413
  %v711 = vmax.f32 %v708, 0.0
  %v712 = vmax.f32 %v709, 0.0
  %v713 = vmax.f32 %v710, 0.0
  %v715 = vsel %vm326, %v711, 0
  %v718 = vsel %vm326, %v712, 0
  %v721 = vsel %vm326, %v713, 0
  %723 = vmatprep.subr.mxu0 0.0
  %724 = vmatpush1.msra.mxu0 0.0
  %725 = vmatprep.subr.mxu0 0.0
  %726 = vmatpush1.msra.mxu0 0.0
  %727 = vmatprep.subr.mxu0 0.0
  %728 = vmatpush1.msra.mxu0 0.0
  %729 = vmatprep.subr.mxu0 0.0
  %730 = vmatpush1.msra.mxu0 0.0
  %731 = vmatprep.subr.mxu0 0.0
  %732 = vmatpush1.msra.mxu0 0.0
  %733 = vmatprep.subr.mxu0 0.0
  %734 = vmatpush1.msra.mxu0 0.0
  %735 = vmatprep.subr.mxu0 0.0
  %736 = vmatpush1.msra.mxu0 0.0
  %737 = vmatprep.subr.mxu0 0.0
  %738 = vmatpush1.msra.mxu0 0.0
  %739 = vmatprep.subr.mxu0 0.0
  %740 = vmatpush1.msra.mxu0 0.0
  %741 = vmatprep.subr.mxu0 0.0
  %742 = vmatpush1.msra.mxu0 0.0
  %743 = vmatprep.subr.mxu0 0.0
  %744 = vmatpush1.msra.mxu0 0.0
  %745 = vmatprep.subr.mxu0 0.0
  %746 = vmatpush1.msra.mxu0 0.0
  %747 = vmatprep.subr.mxu0 0.0
  %748 = vmatpush1.msra.mxu0 %v57
  %749 = vmatprep.subr.mxu0 0.0
  %750 = vmatpush1.msra.mxu0 %v56
  %751 = vmatprep.subr.mxu0 0.0
  %752 = vmatpush1.msra.mxu0 %v55
  %753 = vmatprep.subr.mxu0 0.0
  %754 = vmatpush1.msra.mxu0 %v54
  %755 = vmatprep.subr.mxu0 0.0
  %756 = vmatpush2.msra.mxu0 0.0
  %757 = vmatprep.subr.mxu0 0.0
  %758 = vmatpush2.msra.mxu0 0.0
  %759 = vmatprep.subr.mxu0 0.0
  %760 = vmatpush2.msra.mxu0 0.0
  %761 = vmatprep.subr.mxu0 0.0
  %762 = vmatpush2.msra.mxu0 0.0
  %763 = vmatprep.subr.mxu0 0.0
  %764 = vmatpush2.msra.mxu0 0.0
  %765 = vmatprep.subr.mxu0 0.0
  %766 = vmatpush2.msra.mxu0 0.0
  %767 = vmatprep.subr.mxu0 0.0
  %768 = vmatpush2.msra.mxu0 0.0
  %769 = vmatprep.subr.mxu0 0.0
  %770 = vmatpush2.msra.mxu0 0.0
  %771 = vmatprep.subr.mxu0 0.0
  %772 = vmatpush2.msra.mxu0 0.0
  %773 = vmatprep.subr.mxu0 0.0
  %774 = vmatpush2.msra.mxu0 0.0
  %775 = vmatprep.subr.mxu0 0.0
  %776 = vmatpush2.msra.mxu0 0.0
  %777 = vmatprep.subr.mxu0 0.0
  %778 = vmatpush2.msra.mxu0 0.0
  %779 = vmatprep.subr.mxu0 0.0
  %780 = vmatpush2.msra.mxu0 0.0
  %781 = vmatprep.subr.mxu0 0.0
  %782 = vmatpush2.msra.mxu0 0.0
  %783 = vmatprep.subr.mxu0 0.0
  %784 = vmatpush2.msra.mxu0 0.0
  %785 = vmatprep.subr.mxu0 0.0
  %786 = vmatpush2.msra.mxu0 0.0
  %787 = vmatprep.mubr.f32.mxu0 0.0
  %788 = vmatmul.mubr.f32.gmra.mxu0 %v715
  %v789 = vpop.f32.mrf.mxu0
  %v790 = vadd.f32 %v103, %v789
  %v791 = vpop.f32.mrf.mxu0
  %792 = vmatprep.mubr.f32.mxu0 0.0
  %793 = vmatmul.mubr.f32.gmra.mxu0 %v718
  %v794 = vpop.f32.mrf.mxu0
  %v795 = vadd.f32 %v103, %v794
  %v796 = vpop.f32.mrf.mxu0
  %797 = vmatprep.mubr.f32.mxu0 0.0
  %798 = vmatmul.mubr.f32.gmra.mxu0 %v721
  %v799 = vpop.f32.mrf.mxu0
  %v800 = vadd.f32 %v103, %v799
  %v801 = vpop.f32.mrf.mxu0
  %802 = vdwg.mxu0
  %803 = vmatprep.subr.mxu0 0.0
  %804 = vmatpush1.msra.mxu0 0.0
  %805 = vmatprep.subr.mxu0 0.0
  %806 = vmatpush1.msra.mxu0 0.0
  %807 = vmatprep.subr.mxu0 0.0
  %808 = vmatpush1.msra.mxu0 0.0
  %809 = vmatprep.subr.mxu0 0.0
  %810 = vmatpush1.msra.mxu0 0.0
  %811 = vmatprep.subr.mxu0 0.0
  %812 = vmatpush1.msra.mxu0 0.0
  %813 = vmatprep.subr.mxu0 0.0
  %814 = vmatpush1.msra.mxu0 0.0
  %815 = vmatprep.subr.mxu0 0.0
  %816 = vmatpush1.msra.mxu0 0.0
  %817 = vmatprep.subr.mxu0 0.0
  %818 = vmatpush1.msra.mxu0 0.0
  %819 = vmatprep.subr.mxu0 0.0
  %820 = vmatpush1.msra.mxu0 0.0
  %821 = vmatprep.subr.mxu0 0.0
  %822 = vmatpush1.msra.mxu0 0.0
  %823 = vmatprep.subr.mxu0 0.0
  %824 = vmatpush1.msra.mxu0 0.0
  %825 = vmatprep.subr.mxu0 0.0
  %826 = vmatpush1.msra.mxu0 0.0
  %827 = vmatprep.subr.mxu0 0.0
  %828 = vmatpush1.msra.mxu0 %v61
  %829 = vmatprep.subr.mxu0 0.0
  %830 = vmatpush1.msra.mxu0 %v60
  %831 = vmatprep.subr.mxu0 0.0
  %832 = vmatpush1.msra.mxu0 %v59
  %833 = vmatprep.subr.mxu0 0.0
  %834 = vmatpush1.msra.mxu0 %v58
  %835 = vmatprep.subr.mxu0 0.0
  %836 = vmatpush2.msra.mxu0 0.0
  %837 = vmatprep.subr.mxu0 0.0
  %838 = vmatpush2.msra.mxu0 0.0
  %839 = vmatprep.subr.mxu0 0.0
  %840 = vmatpush2.msra.mxu0 0.0
  %841 = vmatprep.subr.mxu0 0.0
  %842 = vmatpush2.msra.mxu0 0.0
  %843 = vmatprep.subr.mxu0 0.0
  %844 = vmatpush2.msra.mxu0 0.0
  %845 = vmatprep.subr.mxu0 0.0
  %846 = vmatpush2.msra.mxu0 0.0
  %847 = vmatprep.subr.mxu0 0.0
  %848 = vmatpush2.msra.mxu0 0.0
  %849 = vmatprep.subr.mxu0 0.0
  %850 = vmatpush2.msra.mxu0 0.0
  %851 = vmatprep.subr.mxu0 0.0
  %852 = vmatpush2.msra.mxu0 0.0
  %853 = vmatprep.subr.mxu0 0.0
  %854 = vmatpush2.msra.mxu0 0.0
  %855 = vmatprep.subr.mxu0 0.0
  %856 = vmatpush2.msra.mxu0 0.0
  %857 = vmatprep.subr.mxu0 0.0
  %858 = vmatpush2.msra.mxu0 0.0
  %859 = vmatprep.subr.mxu0 0.0
  %860 = vmatpush2.msra.mxu0 0.0
  %861 = vmatprep.subr.mxu0 0.0
  %862 = vmatpush2.msra.mxu0 0.0
  %863 = vmatprep.subr.mxu0 0.0
  %864 = vmatpush2.msra.mxu0 0.0
  %865 = vmatprep.subr.mxu0 0.0
  %866 = vmatpush2.msra.mxu0 0.0
  %867 = vmatprep.mubr.f32.mxu0 0.0
  %868 = vmatmul.mubr.f32.gmra.mxu0 %v715
  %v869 = vpop.f32.mrf.mxu0
  %v870 = vadd.f32 %v107, %v869
  %v871 = vpop.f32.mrf.mxu0
  %872 = vmatprep.mubr.f32.mxu0 0.0
  %873 = vmatmul.mubr.f32.gmra.mxu0 %v718
  %v874 = vpop.f32.mrf.mxu0
  %v875 = vadd.f32 %v107, %v874
  %v876 = vpop.f32.mrf.mxu0
  %877 = vmatprep.mubr.f32.mxu0 0.0
  %878 = vmatmul.mubr.f32.gmra.mxu0 %v721
  %v879 = vpop.f32.mrf.mxu0
  %v880 = vadd.f32 %v107, %v879
  %v881 = vpop.f32.mrf.mxu0
  %882 = vdwg.mxu0
  %v884 = vsel %vm416, %v39, 0
  %v887 = vsel %vm416, %v40, 0
  %v890 = vsel %vm416, %v41, 0
  %892 = vmatprep.subr.mxu0 0.0
  %893 = vmatpush1.msra.mxu0 0.0
  %894 = vmatprep.subr.mxu0 0.0
  %895 = vmatpush1.msra.mxu0 0.0
  %896 = vmatprep.subr.mxu0 0.0
  %897 = vmatpush1.msra.mxu0 0.0
  %898 = vmatprep.subr.mxu0 0.0
  %899 = vmatpush1.msra.mxu0 0.0
  %900 = vmatprep.subr.mxu0 0.0
  %901 = vmatpush1.msra.mxu0 0.0
  %902 = vmatprep.subr.mxu0 0.0
  %903 = vmatpush1.msra.mxu0 0.0
  %904 = vmatprep.subr.mxu0 0.0
  %905 = vmatpush1.msra.mxu0 0.0
  %906 = vmatprep.subr.mxu0 0.0
  %907 = vmatpush1.msra.mxu0 0.0
  %908 = vmatprep.subr.mxu0 0.0
  %909 = vmatpush1.msra.mxu0 0.0
  %910 = vmatprep.subr.mxu0 0.0
  %911 = vmatpush1.msra.mxu0 0.0
  %912 = vmatprep.subr.mxu0 0.0
  %913 = vmatpush1.msra.mxu0 0.0
  %914 = vmatprep.subr.mxu0 0.0
  %915 = vmatpush1.msra.mxu0 0.0
  %916 = vmatprep.subr.mxu0 0.0
  %917 = vmatpush1.msra.mxu0 0.0
  %918 = vmatprep.subr.mxu0 0.0
  %919 = vmatpush1.msra.mxu0 %v880
  %920 = vmatprep.subr.mxu0 0.0
  %921 = vmatpush1.msra.mxu0 %v875
  %922 = vmatprep.subr.mxu0 0.0
  %923 = vmatpush1.msra.mxu0 %v870
  %924 = vmatprep.subr.mxu0 0.0
  %925 = vmatpush2.msra.mxu0 0.0
  %926 = vmatprep.subr.mxu0 0.0
  %927 = vmatpush2.msra.mxu0 0.0
  %928 = vmatprep.subr.mxu0 0.0
  %929 = vmatpush2.msra.mxu0 0.0
  %930 = vmatprep.subr.mxu0 0.0
  %931 = vmatpush2.msra.mxu0 0.0
  %932 = vmatprep.subr.mxu0 0.0
  %933 = vmatpush2.msra.mxu0 0.0
  %934 = vmatprep.subr.mxu0 0.0
  %935 = vmatpush2.msra.mxu0 0.0
  %936 = vmatprep.subr.mxu0 0.0
  %937 = vmatpush2.msra.mxu0 0.0
  %938 = vmatprep.subr.mxu0 0.0
  %939 = vmatpush2.msra.mxu0 0.0
  %940 = vmatprep.subr.mxu0 0.0
  %941 = vmatpush2.msra.mxu0 0.0
  %942 = vmatprep.subr.mxu0 0.0
  %943 = vmatpush2.msra.mxu0 0.0
  %944 = vmatprep.subr.mxu0 0.0
  %945 = vmatpush2.msra.mxu0 0.0
  %946 = vmatprep.subr.mxu0 0.0
  %947 = vmatpush2.msra.mxu0 0.0
  %948 = vmatprep.subr.mxu0 0.0
  %949 = vmatpush2.msra.mxu0 0.0
  %950 = vmatprep.subr.mxu0 0.0
  %951 = vmatpush2.msra.mxu0 0.0
  %952 = vmatprep.subr.mxu0 0.0
  %953 = vmatpush2.msra.mxu0 0.0
  %954 = vmatprep.subr.mxu0 0.0
  %955 = vmatpush2.msra.mxu0 0.0
  %956 = vmatprep.mubr.f32.mxu0 0.0
  %957 = vmatmul.mubr.f32.gmra.mxu0 %v884
  %v958 = vpop.f32.mrf.mxu0
  %v959 = vadd.f32 0.0, %v958
  %v960 = vpop.f32.mrf.mxu0
  %961 = vmatprep.mubr.f32.mxu0 0.0
  %962 = vmatmul.mubr.f32.gmra.mxu0 %v887
  %v963 = vpop.f32.mrf.mxu0
  %v964 = vadd.f32 0.0, %v963
  %v965 = vpop.f32.mrf.mxu0
  %966 = vmatprep.mubr.f32.mxu0 0.0
  %967 = vmatmul.mubr.f32.gmra.mxu0 %v890
  %v968 = vpop.f32.mrf.mxu0
  %v969 = vadd.f32 0.0, %v968
  %v970 = vpop.f32.mrf.mxu0
  %971 = vdwg.mxu0
  %v973 = vsel %vm416, %v36, 0
  %v976 = vsel %vm416, %v37, 0
  %v979 = vsel %vm416, %v38, 0
  %981 = vmatprep.subr.mxu0 0.0
  %982 = vmatpush1.msra.mxu0 0.0
  %983 = vmatprep.subr.mxu0 0.0
  %984 = vmatpush1.msra.mxu0 0.0
  %985 = vmatprep.subr.mxu0 0.0
  %986 = vmatpush1.msra.mxu0 0.0
  %987 = vmatprep.subr.mxu0 0.0
  %988 = vmatpush1.msra.mxu0 0.0
  %989 = vmatprep.subr.mxu0 0.0
  %990 = vmatpush1.msra.mxu0 0.0
  %991 = vmatprep.subr.mxu0 0.0
  %992 = vmatpush1.msra.mxu0 0.0
  %993 = vmatprep.subr.mxu0 0.0
  %994 = vmatpush1.msra.mxu0 0.0
  %995 = vmatprep.subr.mxu0 0.0
  %996 = vmatpush1.msra.mxu0 0.0
  %997 = vmatprep.subr.mxu0 0.0
  %998 = vmatpush1.msra.mxu0 0.0
  %999 = vmatprep.subr.mxu0 0.0
  %1000 = vmatpush1.msra.mxu0 0.0
  %1001 = vmatprep.subr.mxu0 0.0
  %1002 = vmatpush1.msra.mxu0 0.0
  %1003 = vmatprep.subr.mxu0 0.0
  %1004 = vmatpush1.msra.mxu0 0.0
  %1005 = vmatprep.subr.mxu0 0.0
  %1006 = vmatpush1.msra.mxu0 0.0
  %1007 = vmatprep.subr.mxu0 0.0
  %1008 = vmatpush1.msra.mxu0 %v800
  %1009 = vmatprep.subr.mxu0 0.0
  %1010 = vmatpush1.msra.mxu0 %v795
  %1011 = vmatprep.subr.mxu0 0.0
  %1012 = vmatpush1.msra.mxu0 %v790
  %1013 = vmatprep.subr.mxu0 0.0
  %1014 = vmatpush2.msra.mxu0 0.0
  %1015 = vmatprep.subr.mxu0 0.0
  %1016 = vmatpush2.msra.mxu0 0.0
  %1017 = vmatprep.subr.mxu0 0.0
  %1018 = vmatpush2.msra.mxu0 0.0
  %1019 = vmatprep.subr.mxu0 0.0
  %1020 = vmatpush2.msra.mxu0 0.0
  %1021 = vmatprep.subr.mxu0 0.0
  %1022 = vmatpush2.msra.mxu0 0.0
  %1023 = vmatprep.subr.mxu0 0.0
  %1024 = vmatpush2.msra.mxu0 0.0
  %1025 = vmatprep.subr.mxu0 0.0
  %1026 = vmatpush2.msra.mxu0 0.0
  %1027 = vmatprep.subr.mxu0 0.0
  %1028 = vmatpush2.msra.mxu0 0.0
  %1029 = vmatprep.subr.mxu0 0.0
  %1030 = vmatpush2.msra.mxu0 0.0
  %1031 = vmatprep.subr.mxu0 0.0
  %1032 = vmatpush2.msra.mxu0 0.0
  %1033 = vmatprep.subr.mxu0 0.0
  %1034 = vmatpush2.msra.mxu0 0.0
  %1035 = vmatprep.subr.mxu0 0.0
  %1036 = vmatpush2.msra.mxu0 0.0
  %1037 = vmatprep.subr.mxu0 0.0
  %1038 = vmatpush2.msra.mxu0 0.0
  %1039 = vmatprep.subr.mxu0 0.0
  %1040 = vmatpush2.msra.mxu0 0.0
  %1041 = vmatprep.subr.mxu0 0.0
  %1042 = vmatpush2.msra.mxu0 0.0
  %1043 = vmatprep.subr.mxu0 0.0
  %1044 = vmatpush2.msra.mxu0 0.0
  %1045 = vmatprep.mubr.f32.mxu0 0.0
  %1046 = vmatmul.mubr.f32.gmra.mxu0 %v973
  %v1047 = vpop.f32.mrf.mxu0
  %v1048 = vadd.f32 %v959, %v1047
  %v1049 = vpop.f32.mrf.mxu0
  %1050 = vmatprep.mubr.f32.mxu0 0.0
  %1051 = vmatmul.mubr.f32.gmra.mxu0 %v976
  %v1052 = vpop.f32.mrf.mxu0
  %v1053 = vadd.f32 %v964, %v1052
  %v1054 = vpop.f32.mrf.mxu0
  %1055 = vmatprep.mubr.f32.mxu0 0.0
  %1056 = vmatmul.mubr.f32.gmra.mxu0 %v979
  %v1057 = vpop.f32.mrf.mxu0
  %v1058 = vadd.f32 %v969, %v1057
  %v1059 = vpop.f32.mrf.mxu0
  %1060 = vdwg.mxu0
  %v1062 = vsel %vm120, %v1048, 0
  %v1065 = vsel %vm120, %v1053, 0
  %v1068 = vsel %vm120, %v1058, 0
  %1070 = vmatprep.subr.mxu0 0.0
  %1071 = vmatpush1.msra.mxu0 0.0
  %1072 = vmatprep.subr.mxu0 0.0
  %1073 = vmatpush1.msra.mxu0 0.0
  %1074 = vmatprep.subr.mxu0 0.0
  %1075 = vmatpush1.msra.mxu0 0.0
  %1076 = vmatprep.subr.mxu0 0.0
  %1077 = vmatpush1.msra.mxu0 0.0
  %1078 = vmatprep.subr.mxu0 0.0
  %1079 = vmatpush1.msra.mxu0 0.0
  %1080 = vmatprep.subr.mxu0 0.0
  %1081 = vmatpush1.msra.mxu0 0.0
  %1082 = vmatprep.subr.mxu0 0.0
  %1083 = vmatpush1.msra.mxu0 0.0
  %1084 = vmatprep.subr.mxu0 0.0
  %1085 = vmatpush1.msra.mxu0 0.0
  %1086 = vmatprep.subr.mxu0 0.0
  %1087 = vmatpush1.msra.mxu0 0.0
  %1088 = vmatprep.subr.mxu0 0.0
  %1089 = vmatpush1.msra.mxu0 0.0
  %1090 = vmatprep.subr.mxu0 0.0
  %1091 = vmatpush1.msra.mxu0 0.0
  %1092 = vmatprep.subr.mxu0 0.0
  %1093 = vmatpush1.msra.mxu0 0.0
  %1094 = vmatprep.subr.mxu0 0.0
  %1095 = vmatpush1.msra.mxu0 0.0
  %1096 = vmatprep.subr.mxu0 0.0
  %1097 = vmatpush1.msra.mxu0 0.0
  %1098 = vmatprep.subr.mxu0 0.0
  %1099 = vmatpush1.msra.mxu0 %v51
  %1100 = vmatprep.subr.mxu0 0.0
  %1101 = vmatpush1.msra.mxu0 %v50
  %1102 = vmatprep.subr.mxu0 0.0
  %1103 = vmatpush2.msra.mxu0 0.0
  %1104 = vmatprep.subr.mxu0 0.0
  %1105 = vmatpush2.msra.mxu0 0.0
  %1106 = vmatprep.subr.mxu0 0.0
  %1107 = vmatpush2.msra.mxu0 0.0
  %1108 = vmatprep.subr.mxu0 0.0
  %1109 = vmatpush2.msra.mxu0 0.0
  %1110 = vmatprep.subr.mxu0 0.0
  %1111 = vmatpush2.msra.mxu0 0.0
  %1112 = vmatprep.subr.mxu0 0.0
  %1113 = vmatpush2.msra.mxu0 0.0
  %1114 = vmatprep.subr.mxu0 0.0
  %1115 = vmatpush2.msra.mxu0 0.0
  %1116 = vmatprep.subr.mxu0 0.0
  %1117 = vmatpush2.msra.mxu0 0.0
  %1118 = vmatprep.subr.mxu0 0.0
  %1119 = vmatpush2.msra.mxu0 0.0
  %1120 = vmatprep.subr.mxu0 0.0
  %1121 = vmatpush2.msra.mxu0 0.0
  %1122 = vmatprep.subr.mxu0 0.0
  %1123 = vmatpush2.msra.mxu0 0.0
  %1124 = vmatprep.subr.mxu0 0.0
  %1125 = vmatpush2.msra.mxu0 0.0
  %1126 = vmatprep.subr.mxu0 0.0
  %1127 = vmatpush2.msra.mxu0 0.0
  %1128 = vmatprep.subr.mxu0 0.0
  %1129 = vmatpush2.msra.mxu0 0.0
  %1130 = vmatprep.subr.mxu0 0.0
  %1131 = vmatpush2.msra.mxu0 0.0
  %1132 = vmatprep.subr.mxu0 0.0
  %1133 = vmatpush2.msra.mxu0 0.0
  %1134 = vmatprep.mubr.f32.mxu0 0.0
  %1135 = vmatmul.mubr.f32.gmra.mxu0 %v1062
  %v1136 = vpop.f32.mrf.mxu0
  %v1137 = vadd.f32 0.0, %v1136
  %v1138 = vpop.f32.mrf.mxu0
  %1139 = vmatprep.mubr.f32.mxu0 0.0
  %1140 = vmatmul.mubr.f32.gmra.mxu0 %v1065
  %v1141 = vpop.f32.mrf.mxu0
  %v1142 = vadd.f32 0.0, %v1141
  %v1143 = vpop.f32.mrf.mxu0
  %1144 = vmatprep.mubr.f32.mxu0 0.0
  %1145 = vmatmul.mubr.f32.gmra.mxu0 %v1068
  %v1146 = vpop.f32.mrf.mxu0
  %v1147 = vadd.f32 0.0, %v1146
  %v1148 = vpop.f32.mrf.mxu0
  %1149 = vdwg.mxu0
  %v1151 = vsel %vm120, %v206, 0
  %v1154 = vsel %vm120, %v211, 0
  %v1157 = vsel %vm120, %v216, 0
  %1159 = vmatprep.subr.mxu0 0.0
  %1160 = vmatpush1.msra.mxu0 0.0
  %1161 = vmatprep.subr.mxu0 0.0
  %1162 = vmatpush1.msra.mxu0 0.0
  %1163 = vmatprep.subr.mxu0 0.0
  %1164 = vmatpush1.msra.mxu0 0.0
  %1165 = vmatprep.subr.mxu0 0.0
  %1166 = vmatpush1.msra.mxu0 0.0
  %1167 = vmatprep.subr.mxu0 0.0
  %1168 = vmatpush1.msra.mxu0 0.0
  %1169 = vmatprep.subr.mxu0 0.0
  %1170 = vmatpush1.msra.mxu0 0.0
  %1171 = vmatprep.subr.mxu0 0.0
  %1172 = vmatpush1.msra.mxu0 0.0
  %1173 = vmatprep.subr.mxu0 0.0
  %1174 = vmatpush1.msra.mxu0 0.0
  %1175 = vmatprep.subr.mxu0 0.0
  %1176 = vmatpush1.msra.mxu0 0.0
  %1177 = vmatprep.subr.mxu0 0.0
  %1178 = vmatpush1.msra.mxu0 0.0
  %1179 = vmatprep.subr.mxu0 0.0
  %1180 = vmatpush1.msra.mxu0 0.0
  %1181 = vmatprep.subr.mxu0 0.0
  %1182 = vmatpush1.msra.mxu0 0.0
  %1183 = vmatprep.subr.mxu0 0.0
  %1184 = vmatpush1.msra.mxu0 0.0
  %1185 = vmatprep.subr.mxu0 0.0
  %1186 = vmatpush1.msra.mxu0 0.0
  %1187 = vmatprep.subr.mxu0 0.0
  %1188 = vmatpush1.msra.mxu0 %v49
  %1189 = vmatprep.subr.mxu0 0.0
  %1190 = vmatpush1.msra.mxu0 %v48
  %1191 = vmatprep.subr.mxu0 0.0
  %1192 = vmatpush2.msra.mxu0 0.0
  %1193 = vmatprep.subr.mxu0 0.0
  %1194 = vmatpush2.msra.mxu0 0.0
  %1195 = vmatprep.subr.mxu0 0.0
  %1196 = vmatpush2.msra.mxu0 0.0
  %1197 = vmatprep.subr.mxu0 0.0
  %1198 = vmatpush2.msra.mxu0 0.0
  %1199 = vmatprep.subr.mxu0 0.0
  %1200 = vmatpush2.msra.mxu0 0.0
  %1201 = vmatprep.subr.mxu0 0.0
  %1202 = vmatpush2.msra.mxu0 0.0
  %1203 = vmatprep.subr.mxu0 0.0
  %1204 = vmatpush2.msra.mxu0 0.0
  %1205 = vmatprep.subr.mxu0 0.0
  %1206 = vmatpush2.msra.mxu0 0.0
  %1207 = vmatprep.subr.mxu0 0.0
  %1208 = vmatpush2.msra.mxu0 0.0
  %1209 = vmatprep.subr.mxu0 0.0
  %1210 = vmatpush2.msra.mxu0 0.0
  %1211 = vmatprep.subr.mxu0 0.0
  %1212 = vmatpush2.msra.mxu0 0.0
  %1213 = vmatprep.subr.mxu0 0.0
  %1214 = vmatpush2.msra.mxu0 0.0
  %1215 = vmatprep.subr.mxu0 0.0
  %1216 = vmatpush2.msra.mxu0 0.0
  %1217 = vmatprep.subr.mxu0 0.0
  %1218 = vmatpush2.msra.mxu0 0.0
  %1219 = vmatprep.subr.mxu0 0.0
  %1220 = vmatpush2.msra.mxu0 0.0
  %1221 = vmatprep.subr.mxu0 0.0
  %1222 = vmatpush2.msra.mxu0 0.0
  %1223 = vmatprep.mubr.f32.mxu0 0.0
  %1224 = vmatmul.mubr.f32.gmra.mxu0 %v1151
  %v1225 = vpop.f32.mrf.mxu0
  %v1226 = vadd.f32 %v1137, %v1225
  %v1227 = vpop.f32.mrf.mxu0
  %1228 = vmatprep.mubr.f32.mxu0 0.0
  %1229 = vmatmul.mubr.f32.gmra.mxu0 %v1154
  %v1230 = vpop.f32.mrf.mxu0
  %v1231 = vadd.f32 %v1142, %v1230
  %v1232 = vpop.f32.mrf.mxu0
  %1233 = vmatprep.mubr.f32.mxu0 0.0
  %1234 = vmatmul.mubr.f32.gmra.mxu0 %v1157
  %v1235 = vpop.f32.mrf.mxu0
  %v1236 = vadd.f32 %v1147, %v1235
  %v1237 = vpop.f32.mrf.mxu0
  %1238 = vdwg.mxu0
  %v1239 = vadd.f32 %v1226, %v115
  %v1240 = vadd.f32 %v1231, %v115
  %v1241 = vadd.f32 %v1236, %v115
  %v1242 = vmax.f32 %v1239, 0.0
  %v1243 = vmax.f32 %v1240, 0.0
  %v1244 = vmax.f32 %v1241, 0.0
  %v1246 = vsel %vm120, %v1242, 0
  %v1249 = vsel %vm120, %v1243, 0
  %v1252 = vsel %vm120, %v1244, 0
  %1254 = vmatprep.subr.mxu0 0.0
  %1255 = vmatpush1.msra.mxu0 0.0
  %1256 = vmatprep.subr.mxu0 0.0
  %1257 = vmatpush1.msra.mxu0 0.0
  %1258 = vmatprep.subr.mxu0 0.0
  %1259 = vmatpush1.msra.mxu0 0.0
  %1260 = vmatprep.subr.mxu0 0.0
  %1261 = vmatpush1.msra.mxu0 0.0
  %1262 = vmatprep.subr.mxu0 0.0
  %1263 = vmatpush1.msra.mxu0 0.0
  %1264 = vmatprep.subr.mxu0 0.0
  %1265 = vmatpush1.msra.mxu0 0.0
  %1266 = vmatprep.subr.mxu0 0.0
  %1267 = vmatpush1.msra.mxu0 0.0
  %1268 = vmatprep.subr.mxu0 0.0
  %1269 = vmatpush1.msra.mxu0 0.0
  %1270 = vmatprep.subr.mxu0 0.0
  %1271 = vmatpush1.msra.mxu0 0.0
  %1272 = vmatprep.subr.mxu0 0.0
  %1273 = vmatpush1.msra.mxu0 0.0
  %1274 = vmatprep.subr.mxu0 0.0
  %1275 = vmatpush1.msra.mxu0 0.0
  %1276 = vmatprep.subr.mxu0 0.0
  %1277 = vmatpush1.msra.mxu0 0.0
  %1278 = vmatprep.subr.mxu0 0.0
  %1279 = vmatpush1.msra.mxu0 0.0
  %1280 = vmatprep.subr.mxu0 0.0
  %1281 = vmatpush1.msra.mxu0 0.0
  %1282 = vmatprep.subr.mxu0 0.0
  %1283 = vmatpush1.msra.mxu0 %v53
  %1284 = vmatprep.subr.mxu0 0.0
  %1285 = vmatpush1.msra.mxu0 %v52
  %1286 = vmatprep.subr.mxu0 0.0
  %1287 = vmatpush2.msra.mxu0 0.0
  %1288 = vmatprep.subr.mxu0 0.0
  %1289 = vmatpush2.msra.mxu0 0.0
  %1290 = vmatprep.subr.mxu0 0.0
  %1291 = vmatpush2.msra.mxu0 0.0
  %1292 = vmatprep.subr.mxu0 0.0
  %1293 = vmatpush2.msra.mxu0 0.0
  %1294 = vmatprep.subr.mxu0 0.0
  %1295 = vmatpush2.msra.mxu0 0.0
  %1296 = vmatprep.subr.mxu0 0.0
  %1297 = vmatpush2.msra.mxu0 0.0
  %1298 = vmatprep.subr.mxu0 0.0
  %1299 = vmatpush2.msra.mxu0 0.0
  %1300 = vmatprep.subr.mxu0 0.0
  %1301 = vmatpush2.msra.mxu0 0.0
  %1302 = vmatprep.subr.mxu0 0.0
  %1303 = vmatpush2.msra.mxu0 0.0
  %1304 = vmatprep.subr.mxu0 0.0
  %1305 = vmatpush2.msra.mxu0 0.0
  %1306 = vmatprep.subr.mxu0 0.0
  %1307 = vmatpush2.msra.mxu0 0.0
  %1308 = vmatprep.subr.mxu0 0.0
  %1309 = vmatpush2.msra.mxu0 0.0
  %1310 = vmatprep.subr.mxu0 0.0
  %1311 = vmatpush2.msra.mxu0 0.0
  %1312 = vmatprep.subr.mxu0 0.0
  %1313 = vmatpush2.msra.mxu0 0.0
  %1314 = vmatprep.subr.mxu0 0.0
  %1315 = vmatpush2.msra.mxu0 0.0
  %1316 = vmatprep.subr.mxu0 0.0
  %1317 = vmatpush2.msra.mxu0 0.0
  %1318 = vmatprep.mubr.f32.mxu0 0.0
  %1319 = vmatmul.mubr.f32.gmra.mxu0 %v1246
  %v1320 = vpop.f32.mrf.mxu0
  %v1321 = vadd.f32 %v119, %v1320
  %v1322 = vpop.f32.mrf.mxu0
  %1323 = vmatprep.mubr.f32.mxu0 0.0
  %1324 = vmatmul.mubr.f32.gmra.mxu0 %v1249
  %v1325 = vpop.f32.mrf.mxu0
  %v1326 = vadd.f32 %v119, %v1325
  %v1327 = vpop.f32.mrf.mxu0
  %1328 = vmatprep.mubr.f32.mxu0 0.0
  %1329 = vmatmul.mubr.f32.gmra.mxu0 %v1252
  %v1330 = vpop.f32.mrf.mxu0
  %v1331 = vadd.f32 %v119, %v1330
  %v1332 = vpop.f32.mrf.mxu0
  %1333 = vdwg.mxu0
  %1334 = vmatprep.subr.mxu0 0.0
  %1335 = vmatpush1.msra.mxu0 0.0
  %1336 = vmatprep.subr.mxu0 0.0
  %1337 = vmatpush1.msra.mxu0 0.0
  %1338 = vmatprep.subr.mxu0 0.0
  %1339 = vmatpush1.msra.mxu0 0.0
  %1340 = vmatprep.subr.mxu0 0.0
  %1341 = vmatpush1.msra.mxu0 0.0
  %1342 = vmatprep.subr.mxu0 0.0
  %1343 = vmatpush1.msra.mxu0 0.0
  %1344 = vmatprep.subr.mxu0 0.0
  %1345 = vmatpush1.msra.mxu0 0.0
  %1346 = vmatprep.subr.mxu0 0.0
  %1347 = vmatpush1.msra.mxu0 0.0
  %1348 = vmatprep.subr.mxu0 0.0
  %1349 = vmatpush1.msra.mxu0 0.0
  %1350 = vmatprep.subr.mxu0 0.0
  %1351 = vmatpush1.msra.mxu0 0.0
  %1352 = vmatprep.subr.mxu0 0.0
  %1353 = vmatpush1.msra.mxu0 0.0
  %1354 = vmatprep.subr.mxu0 0.0
  %1355 = vmatpush1.msra.mxu0 0.0
  %1356 = vmatprep.subr.mxu0 0.0
  %1357 = vmatpush1.msra.mxu0 0.0
  %1358 = vmatprep.subr.mxu0 0.0
  %1359 = vmatpush1.msra.mxu0 0.0
  %1360 = vmatprep.subr.mxu0 0.0
  %1361 = vmatpush1.msra.mxu0 %v1331
  %1362 = vmatprep.subr.mxu0 0.0
  %1363 = vmatpush1.msra.mxu0 %v1326
  %1364 = vmatprep.subr.mxu0 0.0
  %1365 = vmatpush1.msra.mxu0 %v1321
  %1366 = vmatprep.subr.mxu0 0.0
  %1367 = vmatpush2.msra.mxu0 0.0
  %1368 = vmatprep.subr.mxu0 0.0
  %1369 = vmatpush2.msra.mxu0 0.0
  %1370 = vmatprep.subr.mxu0 0.0
  %1371 = vmatpush2.msra.mxu0 0.0
  %1372 = vmatprep.subr.mxu0 0.0
  %1373 = vmatpush2.msra.mxu0 0.0
  %1374 = vmatprep.subr.mxu0 0.0
  %1375 = vmatpush2.msra.mxu0 0.0
  %1376 = vmatprep.subr.mxu0 0.0
  %1377 = vmatpush2.msra.mxu0 0.0
  %1378 = vmatprep.subr.mxu0 0.0
  %1379 = vmatpush2.msra.mxu0 0.0
  %1380 = vmatprep.subr.mxu0 0.0
  %1381 = vmatpush2.msra.mxu0 0.0
  %1382 = vmatprep.subr.mxu0 0.0
  %1383 = vmatpush2.msra.mxu0 0.0
  %1384 = vmatprep.subr.mxu0 0.0
  %1385 = vmatpush2.msra.mxu0 0.0
  %1386 = vmatprep.subr.mxu0 0.0
  %1387 = vmatpush2.msra.mxu0 0.0
  %1388 = vmatprep.subr.mxu0 0.0
  %1389 = vmatpush2.msra.mxu0 0.0
  %1390 = vmatprep.subr.mxu0 0.0
  %1391 = vmatpush2.msra.mxu0 0.0
  %1392 = vmatprep.subr.mxu0 0.0
  %1393 = vmatpush2.msra.mxu0 0.0
  %1394 = vmatprep.subr.mxu0 0.0
  %1395 = vmatpush2.msra.mxu0 0.0
  %1396 = vmatprep.subr.mxu0 0.0
  %1397 = vmatpush2.msra.mxu0 0.0
  %1398 = vmatprep.mubr.f32.mxu0 0.0
  %1399 = vmatmul.mubr.f32.gmra.mxu0 %v418
  %v1400 = vpop.f32.mrf.mxu0
  %v1401 = vadd.f32 0.0, %v1400
  %v1402 = vpop.f32.mrf.mxu0
  %1403 = vmatprep.mubr.f32.mxu0 0.0
  %1404 = vmatmul.mubr.f32.gmra.mxu0 %v421
  %v1405 = vpop.f32.mrf.mxu0
  %v1406 = vadd.f32 0.0, %v1405
  %v1407 = vpop.f32.mrf.mxu0
  %1408 = vmatprep.mubr.f32.mxu0 0.0
  %1409 = vmatmul.mubr.f32.gmra.mxu0 %v424
  %v1410 = vpop.f32.mrf.mxu0
  %v1411 = vadd.f32 0.0, %v1410
  %v1412 = vpop.f32.mrf.mxu0
  %1413 = vmatprep.mubr.f32.mxu0 0.0
  %1414 = vmatmul.mubr.f32.gmra.mxu0 %v427
  %v1415 = vpop.f32.mrf.mxu0
  %v1416 = vadd.f32 0.0, %v1415
  %v1417 = vpop.f32.mrf.mxu0
  %1418 = vmatprep.mubr.f32.mxu0 0.0
  %1419 = vmatmul.mubr.f32.gmra.mxu0 %v430
  %v1420 = vpop.f32.mrf.mxu0
  %v1421 = vadd.f32 0.0, %v1420
  %v1422 = vpop.f32.mrf.mxu0
  %1423 = vmatprep.mubr.f32.mxu0 0.0
  %1424 = vmatmul.mubr.f32.gmra.mxu0 %v433
  %v1425 = vpop.f32.mrf.mxu0
  %v1426 = vadd.f32 0.0, %v1425
  %v1427 = vpop.f32.mrf.mxu0
  %1428 = vdwg.mxu0
  %v1430 = vsel %vm120, %v1416, 0
  %v1433 = vsel %vm120, %v1421, 0
  %v1436 = vsel %vm120, %v1426, 0
  %1438 = vmatprep.subr.mxu0 0.0
  %1439 = vmatpush1.msra.mxu0 0.0
  %1440 = vmatprep.subr.mxu0 0.0
  %1441 = vmatpush1.msra.mxu0 0.0
  %1442 = vmatprep.subr.mxu0 0.0
  %1443 = vmatpush1.msra.mxu0 0.0
  %1444 = vmatprep.subr.mxu0 0.0
  %1445 = vmatpush1.msra.mxu0 0.0
  %1446 = vmatprep.subr.mxu0 0.0
  %1447 = vmatpush1.msra.mxu0 0.0
  %1448 = vmatprep.subr.mxu0 0.0
  %1449 = vmatpush1.msra.mxu0 0.0
  %1450 = vmatprep.subr.mxu0 0.0
  %1451 = vmatpush1.msra.mxu0 0.0
  %1452 = vmatprep.subr.mxu0 0.0
  %1453 = vmatpush1.msra.mxu0 0.0
  %1454 = vmatprep.subr.mxu0 0.0
  %1455 = vmatpush1.msra.mxu0 0.0
  %1456 = vmatprep.subr.mxu0 0.0
  %1457 = vmatpush1.msra.mxu0 0.0
  %1458 = vmatprep.subr.mxu0 0.0
  %1459 = vmatpush1.msra.mxu0 0.0
  %1460 = vmatprep.subr.mxu0 0.0
  %1461 = vmatpush1.msra.mxu0 0.0
  %1462 = vmatprep.subr.mxu0 0.0
  %1463 = vmatpush1.msra.mxu0 0.0
  %1464 = vmatprep.subr.mxu0 0.0
  %1465 = vmatpush1.msra.mxu0 0.0
  %1466 = vmatprep.subr.mxu0 0.0
  %1467 = vmatpush1.msra.mxu0 %v82
  %1468 = vmatprep.subr.mxu0 0.0
  %1469 = vmatpush1.msra.mxu0 %v81
  %1470 = vmatprep.subr.mxu0 0.0
  %1471 = vmatpush2.msra.mxu0 0.0
  %1472 = vmatprep.subr.mxu0 0.0
  %1473 = vmatpush2.msra.mxu0 0.0
  %1474 = vmatprep.subr.mxu0 0.0
  %1475 = vmatpush2.msra.mxu0 0.0
  %1476 = vmatprep.subr.mxu0 0.0
  %1477 = vmatpush2.msra.mxu0 0.0
  %1478 = vmatprep.subr.mxu0 0.0
  %1479 = vmatpush2.msra.mxu0 0.0
  %1480 = vmatprep.subr.mxu0 0.0
  %1481 = vmatpush2.msra.mxu0 0.0
  %1482 = vmatprep.subr.mxu0 0.0
  %1483 = vmatpush2.msra.mxu0 0.0
  %1484 = vmatprep.subr.mxu0 0.0
  %1485 = vmatpush2.msra.mxu0 0.0
  %1486 = vmatprep.subr.mxu0 0.0
  %1487 = vmatpush2.msra.mxu0 0.0
  %1488 = vmatprep.subr.mxu0 0.0
  %1489 = vmatpush2.msra.mxu0 0.0
  %1490 = vmatprep.subr.mxu0 0.0
  %1491 = vmatpush2.msra.mxu0 0.0
  %1492 = vmatprep.subr.mxu0 0.0
  %1493 = vmatpush2.msra.mxu0 0.0
  %1494 = vmatprep.subr.mxu0 0.0
  %1495 = vmatpush2.msra.mxu0 0.0
  %1496 = vmatprep.subr.mxu0 0.0
  %1497 = vmatpush2.msra.mxu0 0.0
  %1498 = vmatprep.subr.mxu0 0.0
  %1499 = vmatpush2.msra.mxu0 0.0
  %1500 = vmatprep.subr.mxu0 0.0
  %1501 = vmatpush2.msra.mxu0 0.0
  %1502 = vmatprep.mubr.f32.mxu0 0.0
  %1503 = vmatmul.mubr.f32.gmra.mxu0 %v1430
  %v1504 = vpop.f32.mrf.mxu0
  %v1505 = vadd.f32 0.0, %v1504
  %v1506 = vpop.f32.mrf.mxu0
  %1507 = vmatprep.mubr.f32.mxu0 0.0
  %1508 = vmatmul.mubr.f32.gmra.mxu0 %v1433
  %v1509 = vpop.f32.mrf.mxu0
  %v1510 = vadd.f32 0.0, %v1509
  %v1511 = vpop.f32.mrf.mxu0
  %1512 = vmatprep.mubr.f32.mxu0 0.0
  %1513 = vmatmul.mubr.f32.gmra.mxu0 %v1436
  %v1514 = vpop.f32.mrf.mxu0
  %v1515 = vadd.f32 0.0, %v1514
  %v1516 = vpop.f32.mrf.mxu0
  %1517 = vdwg.mxu0
  %v1519 = vsel %vm120, %v1401, 0
  %v1522 = vsel %vm120, %v1406, 0
  %v1525 = vsel %vm120, %v1411, 0
  %1527 = vmatprep.subr.mxu0 0.0
  %1528 = vmatpush1.msra.mxu0 0.0
  %1529 = vmatprep.subr.mxu0 0.0
  %1530 = vmatpush1.msra.mxu0 0.0
  %1531 = vmatprep.subr.mxu0 0.0
  %1532 = vmatpush1.msra.mxu0 0.0
  %1533 = vmatprep.subr.mxu0 0.0
  %1534 = vmatpush1.msra.mxu0 0.0
  %1535 = vmatprep.subr.mxu0 0.0
  %1536 = vmatpush1.msra.mxu0 0.0
  %1537 = vmatprep.subr.mxu0 0.0
  %1538 = vmatpush1.msra.mxu0 0.0
  %1539 = vmatprep.subr.mxu0 0.0
  %1540 = vmatpush1.msra.mxu0 0.0
  %1541 = vmatprep.subr.mxu0 0.0
  %1542 = vmatpush1.msra.mxu0 0.0
  %1543 = vmatprep.subr.mxu0 0.0
  %1544 = vmatpush1.msra.mxu0 0.0
  %1545 = vmatprep.subr.mxu0 0.0
  %1546 = vmatpush1.msra.mxu0 0.0
  %1547 = vmatprep.subr.mxu0 0.0
  %1548 = vmatpush1.msra.mxu0 0.0
  %1549 = vmatprep.subr.mxu0 0.0
  %1550 = vmatpush1.msra.mxu0 0.0
  %1551 = vmatprep.subr.mxu0 0.0
  %1552 = vmatpush1.msra.mxu0 0.0
  %1553 = vmatprep.subr.mxu0 0.0
  %1554 = vmatpush1.msra.mxu0 0.0
  %1555 = vmatprep.subr.mxu0 0.0
  %1556 = vmatpush1.msra.mxu0 %v80
  %1557 = vmatprep.subr.mxu0 0.0
  %1558 = vmatpush1.msra.mxu0 %v79
  %1559 = vmatprep.subr.mxu0 0.0
  %1560 = vmatpush2.msra.mxu0 0.0
  %1561 = vmatprep.subr.mxu0 0.0
  %1562 = vmatpush2.msra.mxu0 0.0
  %1563 = vmatprep.subr.mxu0 0.0
  %1564 = vmatpush2.msra.mxu0 0.0
  %1565 = vmatprep.subr.mxu0 0.0
  %1566 = vmatpush2.msra.mxu0 0.0
  %1567 = vmatprep.subr.mxu0 0.0
  %1568 = vmatpush2.msra.mxu0 0.0
  %1569 = vmatprep.subr.mxu0 0.0
  %1570 = vmatpush2.msra.mxu0 0.0
  %1571 = vmatprep.subr.mxu0 0.0
  %1572 = vmatpush2.msra.mxu0 0.0
  %1573 = vmatprep.subr.mxu0 0.0
  %1574 = vmatpush2.msra.mxu0 0.0
  %1575 = vmatprep.subr.mxu0 0.0
  %1576 = vmatpush2.msra.mxu0 0.0
  %1577 = vmatprep.subr.mxu0 0.0
  %1578 = vmatpush2.msra.mxu0 0.0
  %1579 = vmatprep.subr.mxu0 0.0
  %1580 = vmatpush2.msra.mxu0 0.0
  %1581 = vmatprep.subr.mxu0 0.0
  %1582 = vmatpush2.msra.mxu0 0.0
  %1583 = vmatprep.subr.mxu0 0.0
  %1584 = vmatpush2.msra.mxu0 0.0
  %1585 = vmatprep.subr.mxu0 0.0
  %1586 = vmatpush2.msra.mxu0 0.0
  %1587 = vmatprep.subr.mxu0 0.0
  %1588 = vmatpush2.msra.mxu0 0.0
  %1589 = vmatprep.subr.mxu0 0.0
  %1590 = vmatpush2.msra.mxu0 0.0
  %1591 = vmatprep.mubr.f32.mxu0 0.0
  %1592 = vmatmul.mubr.f32.gmra.mxu0 %v1519
  %v1593 = vpop.f32.mrf.mxu0
  %v1594 = vadd.f32 %v1505, %v1593
  %v1595 = vpop.f32.mrf.mxu0
  %1596 = vmatprep.mubr.f32.mxu0 0.0
  %1597 = vmatmul.mubr.f32.gmra.mxu0 %v1522
  %v1598 = vpop.f32.mrf.mxu0
  %v1599 = vadd.f32 %v1510, %v1598
  %v1600 = vpop.f32.mrf.mxu0
  %1601 = vmatprep.mubr.f32.mxu0 0.0
  %1602 = vmatmul.mubr.f32.gmra.mxu0 %v1525
  %v1603 = vpop.f32.mrf.mxu0
  %v1604 = vadd.f32 %v1515, %v1603
  %v1605 = vpop.f32.mrf.mxu0
  %1606 = vdwg.mxu0
  %v1607 = vadd.f32 %v1594, %v403
  %v1608 = vadd.f32 %v1599, %v408
  %v1609 = vadd.f32 %v1604, %v413
  %v1610 = vmax.f32 %v1607, 0.0
  %v1611 = vmax.f32 %v1608, 0.0
  %v1612 = vmax.f32 %v1609, 0.0
  %v1614 = vsel %vm326, %v1610, 0
  %v1617 = vsel %vm326, %v1611, 0
  %v1620 = vsel %vm326, %v1612, 0
  %1622 = vmatprep.subr.mxu0 0.0
  %1623 = vmatpush1.msra.mxu0 0.0
  %1624 = vmatprep.subr.mxu0 0.0
  %1625 = vmatpush1.msra.mxu0 0.0
  %1626 = vmatprep.subr.mxu0 0.0
  %1627 = vmatpush1.msra.mxu0 0.0
  %1628 = vmatprep.subr.mxu0 0.0
  %1629 = vmatpush1.msra.mxu0 0.0
  %1630 = vmatprep.subr.mxu0 0.0
  %1631 = vmatpush1.msra.mxu0 0.0
  %1632 = vmatprep.subr.mxu0 0.0
  %1633 = vmatpush1.msra.mxu0 0.0
  %1634 = vmatprep.subr.mxu0 0.0
  %1635 = vmatpush1.msra.mxu0 0.0
  %1636 = vmatprep.subr.mxu0 0.0
  %1637 = vmatpush1.msra.mxu0 0.0
  %1638 = vmatprep.subr.mxu0 0.0
  %1639 = vmatpush1.msra.mxu0 0.0
  %1640 = vmatprep.subr.mxu0 0.0
  %1641 = vmatpush1.msra.mxu0 0.0
  %1642 = vmatprep.subr.mxu0 0.0
  %1643 = vmatpush1.msra.mxu0 0.0
  %1644 = vmatprep.subr.mxu0 0.0
  %1645 = vmatpush1.msra.mxu0 0.0
  %1646 = vmatprep.subr.mxu0 0.0
  %1647 = vmatpush1.msra.mxu0 %v65
  %1648 = vmatprep.subr.mxu0 0.0
  %1649 = vmatpush1.msra.mxu0 %v64
  %1650 = vmatprep.subr.mxu0 0.0
  %1651 = vmatpush1.msra.mxu0 %v63
  %1652 = vmatprep.subr.mxu0 0.0
  %1653 = vmatpush1.msra.mxu0 %v62
  %1654 = vmatprep.subr.mxu0 0.0
  %1655 = vmatpush2.msra.mxu0 0.0
  %1656 = vmatprep.subr.mxu0 0.0
  %1657 = vmatpush2.msra.mxu0 0.0
  %1658 = vmatprep.subr.mxu0 0.0
  %1659 = vmatpush2.msra.mxu0 0.0
  %1660 = vmatprep.subr.mxu0 0.0
  %1661 = vmatpush2.msra.mxu0 0.0
  %1662 = vmatprep.subr.mxu0 0.0
  %1663 = vmatpush2.msra.mxu0 0.0
  %1664 = vmatprep.subr.mxu0 0.0
  %1665 = vmatpush2.msra.mxu0 0.0
  %1666 = vmatprep.subr.mxu0 0.0
  %1667 = vmatpush2.msra.mxu0 0.0
  %1668 = vmatprep.subr.mxu0 0.0
  %1669 = vmatpush2.msra.mxu0 0.0
  %1670 = vmatprep.subr.mxu0 0.0
  %1671 = vmatpush2.msra.mxu0 0.0
  %1672 = vmatprep.subr.mxu0 0.0
  %1673 = vmatpush2.msra.mxu0 0.0
  %1674 = vmatprep.subr.mxu0 0.0
  %1675 = vmatpush2.msra.mxu0 0.0
  %1676 = vmatprep.subr.mxu0 0.0
  %1677 = vmatpush2.msra.mxu0 0.0
  %1678 = vmatprep.subr.mxu0 0.0
  %1679 = vmatpush2.msra.mxu0 0.0
  %1680 = vmatprep.subr.mxu0 0.0
  %1681 = vmatpush2.msra.mxu0 0.0
  %1682 = vmatprep.subr.mxu0 0.0
  %1683 = vmatpush2.msra.mxu0 0.0
  %1684 = vmatprep.subr.mxu0 0.0
  %1685 = vmatpush2.msra.mxu0 0.0
  %1686 = vmatprep.mubr.f32.mxu0 0.0
  %1687 = vmatmul.mubr.f32.gmra.mxu0 %v1614
  %v1688 = vpop.f32.mrf.mxu0
  %v1689 = vadd.f32 %v111, %v1688
  %v1690 = vpop.f32.mrf.mxu0
  %1691 = vmatprep.mubr.f32.mxu0 0.0
  %1692 = vmatmul.mubr.f32.gmra.mxu0 %v1617
  %v1693 = vpop.f32.mrf.mxu0
  %v1694 = vadd.f32 %v111, %v1693
  %v1695 = vpop.f32.mrf.mxu0
  %1696 = vmatprep.mubr.f32.mxu0 0.0
  %1697 = vmatmul.mubr.f32.gmra.mxu0 %v1620
  %v1698 = vpop.f32.mrf.mxu0
  %v1699 = vadd.f32 %v111, %v1698
  %v1700 = vpop.f32.mrf.mxu0
  %1701 = vdwg.mxu0
  %v1703 = vsel %vm120, %v1689, 0
  %v1706 = vsel %vm120, %v1694, 0
  %v1709 = vsel %vm120, %v1699, 0
  %1711 = vmatprep.subr.mxu0 0.0
  %1712 = vmatpush1.msra.mxu0 0.0
  %1713 = vmatprep.subr.mxu0 0.0
  %1714 = vmatpush1.msra.mxu0 0.0
  %1715 = vmatprep.subr.mxu0 0.0
  %1716 = vmatpush1.msra.mxu0 0.0
  %1717 = vmatprep.subr.mxu0 0.0
  %1718 = vmatpush1.msra.mxu0 0.0
  %1719 = vmatprep.subr.mxu0 0.0
  %1720 = vmatpush1.msra.mxu0 0.0
  %1721 = vmatprep.subr.mxu0 0.0
  %1722 = vmatpush1.msra.mxu0 0.0
  %1723 = vmatprep.subr.mxu0 0.0
  %1724 = vmatpush1.msra.mxu0 0.0
  %1725 = vmatprep.subr.mxu0 0.0
  %1726 = vmatpush1.msra.mxu0 0.0
  %1727 = vmatprep.subr.mxu0 0.0
  %1728 = vmatpush1.msra.mxu0 0.0
  %1729 = vmatprep.subr.mxu0 0.0
  %1730 = vmatpush1.msra.mxu0 0.0
  %1731 = vmatprep.subr.mxu0 0.0
  %1732 = vmatpush1.msra.mxu0 0.0
  %1733 = vmatprep.subr.mxu0 0.0
  %1734 = vmatpush1.msra.mxu0 0.0
  %1735 = vmatprep.subr.mxu0 0.0
  %1736 = vmatpush1.msra.mxu0 0.0
  %1737 = vmatprep.subr.mxu0 0.0
  %1738 = vmatpush1.msra.mxu0 0.0
  %1739 = vmatprep.subr.mxu0 0.0
  %1740 = vmatpush1.msra.mxu0 %v78
  %1741 = vmatprep.subr.mxu0 0.0
  %1742 = vmatpush1.msra.mxu0 %v77
  %1743 = vmatprep.subr.mxu0 0.0
  %1744 = vmatpush2.msra.mxu0 0.0
  %1745 = vmatprep.subr.mxu0 0.0
  %1746 = vmatpush2.msra.mxu0 0.0
  %1747 = vmatprep.subr.mxu0 0.0
  %1748 = vmatpush2.msra.mxu0 0.0
  %1749 = vmatprep.subr.mxu0 0.0
  %1750 = vmatpush2.msra.mxu0 0.0
  %1751 = vmatprep.subr.mxu0 0.0
  %1752 = vmatpush2.msra.mxu0 0.0
  %1753 = vmatprep.subr.mxu0 0.0
  %1754 = vmatpush2.msra.mxu0 0.0
  %1755 = vmatprep.subr.mxu0 0.0
  %1756 = vmatpush2.msra.mxu0 0.0
  %1757 = vmatprep.subr.mxu0 0.0
  %1758 = vmatpush2.msra.mxu0 0.0
  %1759 = vmatprep.subr.mxu0 0.0
  %1760 = vmatpush2.msra.mxu0 0.0
  %1761 = vmatprep.subr.mxu0 0.0
  %1762 = vmatpush2.msra.mxu0 0.0
  %1763 = vmatprep.subr.mxu0 0.0
  %1764 = vmatpush2.msra.mxu0 0.0
  %1765 = vmatprep.subr.mxu0 0.0
  %1766 = vmatpush2.msra.mxu0 0.0
  %1767 = vmatprep.subr.mxu0 0.0
  %1768 = vmatpush2.msra.mxu0 0.0
  %1769 = vmatprep.subr.mxu0 0.0
  %1770 = vmatpush2.msra.mxu0 0.0
  %1771 = vmatprep.subr.mxu0 0.0
  %1772 = vmatpush2.msra.mxu0 0.0
  %1773 = vmatprep.subr.mxu0 0.0
  %1774 = vmatpush2.msra.mxu0 0.0
  %1775 = vmatprep.mubr.f32.mxu0 0.0
  %1776 = vmatmul.mubr.f32.gmra.mxu0 %v1703
  %v1777 = vpop.f32.mrf.mxu0
  %v1778 = vadd.f32 %v95, %v1777
  %v1779 = vpop.f32.mrf.mxu0
  %1780 = vmatprep.mubr.f32.mxu0 0.0
  %1781 = vmatmul.mubr.f32.gmra.mxu0 %v1706
  %v1782 = vpop.f32.mrf.mxu0
  %v1783 = vadd.f32 %v95, %v1782
  %v1784 = vpop.f32.mrf.mxu0
  %1785 = vmatprep.mubr.f32.mxu0 0.0
  %1786 = vmatmul.mubr.f32.gmra.mxu0 %v1709
  %v1787 = vpop.f32.mrf.mxu0
  %v1788 = vadd.f32 %v95, %v1787
  %v1789 = vpop.f32.mrf.mxu0
  %1790 = vdwg.mxu0
  %v1791 = vmax.f32 %v1778, 0.0
  %v1792 = vmax.f32 %v1783, 0.0
  %v1793 = vmax.f32 %v1788, 0.0
  %v1795 = vsel %vm326, %v1791, 0
  %v1798 = vsel %vm326, %v1792, 0
  %v1801 = vsel %vm326, %v1793, 0
  %1803 = vmatprep.subr.mxu0 0.0
  %1804 = vmatpush1.msra.mxu0 0.0
  %1805 = vmatprep.subr.mxu0 0.0
  %1806 = vmatpush1.msra.mxu0 0.0
  %1807 = vmatprep.subr.mxu0 0.0
  %1808 = vmatpush1.msra.mxu0 0.0
  %1809 = vmatprep.subr.mxu0 0.0
  %1810 = vmatpush1.msra.mxu0 0.0
  %1811 = vmatprep.subr.mxu0 0.0
  %1812 = vmatpush1.msra.mxu0 0.0
  %1813 = vmatprep.subr.mxu0 0.0
  %1814 = vmatpush1.msra.mxu0 0.0
  %1815 = vmatprep.subr.mxu0 0.0
  %1816 = vmatpush1.msra.mxu0 0.0
  %1817 = vmatprep.subr.mxu0 0.0
  %1818 = vmatpush1.msra.mxu0 0.0
  %1819 = vmatprep.subr.mxu0 0.0
  %1820 = vmatpush1.msra.mxu0 0.0
  %1821 = vmatprep.subr.mxu0 0.0
  %1822 = vmatpush1.msra.mxu0 0.0
  %1823 = vmatprep.subr.mxu0 0.0
  %1824 = vmatpush1.msra.mxu0 0.0
  %1825 = vmatprep.subr.mxu0 0.0
  %1826 = vmatpush1.msra.mxu0 0.0
  %1827 = vmatprep.subr.mxu0 0.0
  %1828 = vmatpush1.msra.mxu0 %v86
  %1829 = vmatprep.subr.mxu0 0.0
  %1830 = vmatpush1.msra.mxu0 %v85
  %1831 = vmatprep.subr.mxu0 0.0
  %1832 = vmatpush1.msra.mxu0 %v84
  %1833 = vmatprep.subr.mxu0 0.0
  %1834 = vmatpush1.msra.mxu0 %v83
  %1835 = vmatprep.subr.mxu0 0.0
  %1836 = vmatpush2.msra.mxu0 0.0
  %1837 = vmatprep.subr.mxu0 0.0
  %1838 = vmatpush2.msra.mxu0 0.0
  %1839 = vmatprep.subr.mxu0 0.0
  %1840 = vmatpush2.msra.mxu0 0.0
  %1841 = vmatprep.subr.mxu0 0.0
  %1842 = vmatpush2.msra.mxu0 0.0
  %1843 = vmatprep.subr.mxu0 0.0
  %1844 = vmatpush2.msra.mxu0 0.0
  %1845 = vmatprep.subr.mxu0 0.0
  %1846 = vmatpush2.msra.mxu0 0.0
  %1847 = vmatprep.subr.mxu0 0.0
  %1848 = vmatpush2.msra.mxu0 0.0
  %1849 = vmatprep.subr.mxu0 0.0
  %1850 = vmatpush2.msra.mxu0 0.0
  %1851 = vmatprep.subr.mxu0 0.0
  %1852 = vmatpush2.msra.mxu0 0.0
  %1853 = vmatprep.subr.mxu0 0.0
  %1854 = vmatpush2.msra.mxu0 0.0
  %1855 = vmatprep.subr.mxu0 0.0
  %1856 = vmatpush2.msra.mxu0 0.0
  %1857 = vmatprep.subr.mxu0 0.0
  %1858 = vmatpush2.msra.mxu0 0.0
  %1859 = vmatprep.subr.mxu0 0.0
  %1860 = vmatpush2.msra.mxu0 0.0
  %1861 = vmatprep.subr.mxu0 0.0
  %1862 = vmatpush2.msra.mxu0 0.0
  %1863 = vmatprep.subr.mxu0 0.0
  %1864 = vmatpush2.msra.mxu0 0.0
  %1865 = vmatprep.subr.mxu0 0.0
  %1866 = vmatpush2.msra.mxu0 0.0
  %1867 = vmatprep.mubr.f32.mxu0 0.0
  %1868 = vmatmul.mubr.f32.gmra.mxu0 %v1795
  %v1869 = vpop.f32.mrf.mxu0
  %v1870 = vadd.f32 %v99, %v1869
  %v1871 = vpop.f32.mrf.mxu0
  %1872 = vmatprep.mubr.f32.mxu0 0.0
  %1873 = vmatmul.mubr.f32.gmra.mxu0 %v1798
  %v1874 = vpop.f32.mrf.mxu0
  %v1875 = vadd.f32 %v99, %v1874
  %v1876 = vpop.f32.mrf.mxu0
  %1877 = vmatprep.mubr.f32.mxu0 0.0
  %1878 = vmatmul.mubr.f32.gmra.mxu0 %v1801
  %v1879 = vpop.f32.mrf.mxu0
  %v1880 = vadd.f32 %v99, %v1879
  %v1881 = vpop.f32.mrf.mxu0
  %1882 = vdwg.mxu0
  %v1883 = vadd.f32 %v1594, %v1870
  %v1884 = vadd.f32 %v1599, %v1875
  %v1885 = vadd.f32 %v1604, %v1880
  %v1886 = vmax.f32 %v1883, 0.0
  %v1887 = vmax.f32 %v1884, 0.0
  %v1888 = vmax.f32 %v1885, 0.0
  %v1890 = vsel %vm326, %v1886, 0
  %v1893 = vsel %vm326, %v1887, 0
  %v1896 = vsel %vm326, %v1888, 0
  %1898 = vmatprep.subr.mxu0 0.0
  %1899 = vmatpush1.msra.mxu0 0.0
  %1900 = vmatprep.subr.mxu0 0.0
  %1901 = vmatpush1.msra.mxu0 0.0
  %1902 = vmatprep.subr.mxu0 0.0
  %1903 = vmatpush1.msra.mxu0 0.0
  %1904 = vmatprep.subr.mxu0 0.0
  %1905 = vmatpush1.msra.mxu0 0.0
  %1906 = vmatprep.subr.mxu0 0.0
  %1907 = vmatpush1.msra.mxu0 0.0
  %1908 = vmatprep.subr.mxu0 0.0
  %1909 = vmatpush1.msra.mxu0 0.0
  %1910 = vmatprep.subr.mxu0 0.0
  %1911 = vmatpush1.msra.mxu0 0.0
  %1912 = vmatprep.subr.mxu0 0.0
  %1913 = vmatpush1.msra.mxu0 0.0
  %1914 = vmatprep.subr.mxu0 0.0
  %1915 = vmatpush1.msra.mxu0 0.0
  %1916 = vmatprep.subr.mxu0 0.0
  %1917 = vmatpush1.msra.mxu0 0.0
  %1918 = vmatprep.subr.mxu0 0.0
  %1919 = vmatpush1.msra.mxu0 0.0
  %1920 = vmatprep.subr.mxu0 0.0
  %1921 = vmatpush1.msra.mxu0 0.0
  %1922 = vmatprep.subr.mxu0 0.0
  %1923 = vmatpush1.msra.mxu0 %v57
  %1924 = vmatprep.subr.mxu0 0.0
  %1925 = vmatpush1.msra.mxu0 %v56
  %1926 = vmatprep.subr.mxu0 0.0
  %1927 = vmatpush1.msra.mxu0 %v55
  %1928 = vmatprep.subr.mxu0 0.0
  %1929 = vmatpush1.msra.mxu0 %v54
  %1930 = vmatprep.subr.mxu0 0.0
  %1931 = vmatpush2.msra.mxu0 0.0
  %1932 = vmatprep.subr.mxu0 0.0
  %1933 = vmatpush2.msra.mxu0 0.0
  %1934 = vmatprep.subr.mxu0 0.0
  %1935 = vmatpush2.msra.mxu0 0.0
  %1936 = vmatprep.subr.mxu0 0.0
  %1937 = vmatpush2.msra.mxu0 0.0
  %1938 = vmatprep.subr.mxu0 0.0
  %1939 = vmatpush2.msra.mxu0 0.0
  %1940 = vmatprep.subr.mxu0 0.0
  %1941 = vmatpush2.msra.mxu0 0.0
  %1942 = vmatprep.subr.mxu0 0.0
  %1943 = vmatpush2.msra.mxu0 0.0
  %1944 = vmatprep.subr.mxu0 0.0
  %1945 = vmatpush2.msra.mxu0 0.0
  %1946 = vmatprep.subr.mxu0 0.0
  %1947 = vmatpush2.msra.mxu0 0.0
  %1948 = vmatprep.subr.mxu0 0.0
  %1949 = vmatpush2.msra.mxu0 0.0
  %1950 = vmatprep.subr.mxu0 0.0
  %1951 = vmatpush2.msra.mxu0 0.0
  %1952 = vmatprep.subr.mxu0 0.0
  %1953 = vmatpush2.msra.mxu0 0.0
  %1954 = vmatprep.subr.mxu0 0.0
  %1955 = vmatpush2.msra.mxu0 0.0
  %1956 = vmatprep.subr.mxu0 0.0
  %1957 = vmatpush2.msra.mxu0 0.0
  %1958 = vmatprep.subr.mxu0 0.0
  %1959 = vmatpush2.msra.mxu0 0.0
  %1960 = vmatprep.subr.mxu0 0.0
  %1961 = vmatpush2.msra.mxu0 0.0
  %1962 = vmatprep.mubr.f32.mxu0 0.0
  %1963 = vmatmul.mubr.f32.gmra.mxu0 %v1890
  %v1964 = vpop.f32.mrf.mxu0
  %v1965 = vadd.f32 %v103, %v1964
  %v1966 = vpop.f32.mrf.mxu0
  %1967 = vmatprep.mubr.f32.mxu0 0.0
  %1968 = vmatmul.mubr.f32.gmra.mxu0 %v1893
  %v1969 = vpop.f32.mrf.mxu0
  %v1970 = vadd.f32 %v103, %v1969
  %v1971 = vpop.f32.mrf.mxu0
  %1972 = vmatprep.mubr.f32.mxu0 0.0
  %1973 = vmatmul.mubr.f32.gmra.mxu0 %v1896
  %v1974 = vpop.f32.mrf.mxu0
  %v1975 = vadd.f32 %v103, %v1974
  %v1976 = vpop.f32.mrf.mxu0
  %1977 = vdwg.mxu0
  %1978 = vmatprep.subr.mxu0 0.0
  %1979 = vmatpush1.msra.mxu0 0.0
  %1980 = vmatprep.subr.mxu0 0.0
  %1981 = vmatpush1.msra.mxu0 0.0
  %1982 = vmatprep.subr.mxu0 0.0
  %1983 = vmatpush1.msra.mxu0 0.0
  %1984 = vmatprep.subr.mxu0 0.0
  %1985 = vmatpush1.msra.mxu0 0.0
  %1986 = vmatprep.subr.mxu0 0.0
  %1987 = vmatpush1.msra.mxu0 0.0
  %1988 = vmatprep.subr.mxu0 0.0
  %1989 = vmatpush1.msra.mxu0 0.0
  %1990 = vmatprep.subr.mxu0 0.0
  %1991 = vmatpush1.msra.mxu0 0.0
  %1992 = vmatprep.subr.mxu0 0.0
  %1993 = vmatpush1.msra.mxu0 0.0
  %1994 = vmatprep.subr.mxu0 0.0
  %1995 = vmatpush1.msra.mxu0 0.0
  %1996 = vmatprep.subr.mxu0 0.0
  %1997 = vmatpush1.msra.mxu0 0.0
  %1998 = vmatprep.subr.mxu0 0.0
  %1999 = vmatpush1.msra.mxu0 0.0
  %2000 = vmatprep.subr.mxu0 0.0
  %2001 = vmatpush1.msra.mxu0 0.0
  %2002 = vmatprep.subr.mxu0 0.0
  %2003 = vmatpush1.msra.mxu0 %v61
  %2004 = vmatprep.subr.mxu0 0.0
  %2005 = vmatpush1.msra.mxu0 %v60
  %2006 = vmatprep.subr.mxu0 0.0
  %2007 = vmatpush1.msra.mxu0 %v59
  %2008 = vmatprep.subr.mxu0 0.0
  %2009 = vmatpush1.msra.mxu0 %v58
  %2010 = vmatprep.subr.mxu0 0.0
  %2011 = vmatpush2.msra.mxu0 0.0
  %2012 = vmatprep.subr.mxu0 0.0
  %2013 = vmatpush2.msra.mxu0 0.0
  %2014 = vmatprep.subr.mxu0 0.0
  %2015 = vmatpush2.msra.mxu0 0.0
  %2016 = vmatprep.subr.mxu0 0.0
  %2017 = vmatpush2.msra.mxu0 0.0
  %2018 = vmatprep.subr.mxu0 0.0
  %2019 = vmatpush2.msra.mxu0 0.0
  %2020 = vmatprep.subr.mxu0 0.0
  %2021 = vmatpush2.msra.mxu0 0.0
  %2022 = vmatprep.subr.mxu0 0.0
  %2023 = vmatpush2.msra.mxu0 0.0
  %2024 = vmatprep.subr.mxu0 0.0
  %2025 = vmatpush2.msra.mxu0 0.0
  %2026 = vmatprep.subr.mxu0 0.0
  %2027 = vmatpush2.msra.mxu0 0.0
  %2028 = vmatprep.subr.mxu0 0.0
  %2029 = vmatpush2.msra.mxu0 0.0
  %2030 = vmatprep.subr.mxu0 0.0
  %2031 = vmatpush2.msra.mxu0 0.0
  %2032 = vmatprep.subr.mxu0 0.0
  %2033 = vmatpush2.msra.mxu0 0.0
  %2034 = vmatprep.subr.mxu0 0.0
  %2035 = vmatpush2.msra.mxu0 0.0
  %2036 = vmatprep.subr.mxu0 0.0
  %2037 = vmatpush2.msra.mxu0 0.0
  %2038 = vmatprep.subr.mxu0 0.0
  %2039 = vmatpush2.msra.mxu0 0.0
  %2040 = vmatprep.subr.mxu0 0.0
  %2041 = vmatpush2.msra.mxu0 0.0
  %2042 = vmatprep.mubr.f32.mxu0 0.0
  %2043 = vmatmul.mubr.f32.gmra.mxu0 %v1890
  %v2044 = vpop.f32.mrf.mxu0
  %v2045 = vadd.f32 %v107, %v2044
  %v2046 = vpop.f32.mrf.mxu0
  %2047 = vmatprep.mubr.f32.mxu0 0.0
  %2048 = vmatmul.mubr.f32.gmra.mxu0 %v1893
  %v2049 = vpop.f32.mrf.mxu0
  %v2050 = vadd.f32 %v107, %v2049
  %v2051 = vpop.f32.mrf.mxu0
  %2052 = vmatprep.mubr.f32.mxu0 0.0
  %2053 = vmatmul.mubr.f32.gmra.mxu0 %v1896
  %v2054 = vpop.f32.mrf.mxu0
  %v2055 = vadd.f32 %v107, %v2054
  %v2056 = vpop.f32.mrf.mxu0
  %2057 = vdwg.mxu0
  %2058 = vmatprep.subr.mxu0 0.0
  %2059 = vmatpush1.msra.mxu0 0.0
  %2060 = vmatprep.subr.mxu0 0.0
  %2061 = vmatpush1.msra.mxu0 0.0
  %2062 = vmatprep.subr.mxu0 0.0
  %2063 = vmatpush1.msra.mxu0 0.0
  %2064 = vmatprep.subr.mxu0 0.0
  %2065 = vmatpush1.msra.mxu0 0.0
  %2066 = vmatprep.subr.mxu0 0.0
  %2067 = vmatpush1.msra.mxu0 0.0
  %2068 = vmatprep.subr.mxu0 0.0
  %2069 = vmatpush1.msra.mxu0 0.0
  %2070 = vmatprep.subr.mxu0 0.0
  %2071 = vmatpush1.msra.mxu0 0.0
  %2072 = vmatprep.subr.mxu0 0.0
  %2073 = vmatpush1.msra.mxu0 0.0
  %2074 = vmatprep.subr.mxu0 0.0
  %2075 = vmatpush1.msra.mxu0 0.0
  %2076 = vmatprep.subr.mxu0 0.0
  %2077 = vmatpush1.msra.mxu0 0.0
  %2078 = vmatprep.subr.mxu0 0.0
  %2079 = vmatpush1.msra.mxu0 0.0
  %2080 = vmatprep.subr.mxu0 0.0
  %2081 = vmatpush1.msra.mxu0 0.0
  %2082 = vmatprep.subr.mxu0 0.0
  %2083 = vmatpush1.msra.mxu0 0.0
  %2084 = vmatprep.subr.mxu0 0.0
  %2085 = vmatpush1.msra.mxu0 %v2055
  %2086 = vmatprep.subr.mxu0 0.0
  %2087 = vmatpush1.msra.mxu0 %v2050
  %2088 = vmatprep.subr.mxu0 0.0
  %2089 = vmatpush1.msra.mxu0 %v2045
  %2090 = vmatprep.subr.mxu0 0.0
  %2091 = vmatpush2.msra.mxu0 0.0
  %2092 = vmatprep.subr.mxu0 0.0
  %2093 = vmatpush2.msra.mxu0 0.0
  %2094 = vmatprep.subr.mxu0 0.0
  %2095 = vmatpush2.msra.mxu0 0.0
  %2096 = vmatprep.subr.mxu0 0.0
  %2097 = vmatpush2.msra.mxu0 0.0
  %2098 = vmatprep.subr.mxu0 0.0
  %2099 = vmatpush2.msra.mxu0 0.0
  %2100 = vmatprep.subr.mxu0 0.0
  %2101 = vmatpush2.msra.mxu0 0.0
  %2102 = vmatprep.subr.mxu0 0.0
  %2103 = vmatpush2.msra.mxu0 0.0
  %2104 = vmatprep.subr.mxu0 0.0
  %2105 = vmatpush2.msra.mxu0 0.0
  %2106 = vmatprep.subr.mxu0 0.0
  %2107 = vmatpush2.msra.mxu0 0.0
  %2108 = vmatprep.subr.mxu0 0.0
  %2109 = vmatpush2.msra.mxu0 0.0
  %2110 = vmatprep.subr.mxu0 0.0
  %2111 = vmatpush2.msra.mxu0 0.0
  %2112 = vmatprep.subr.mxu0 0.0
  %2113 = vmatpush2.msra.mxu0 0.0
  %2114 = vmatprep.subr.mxu0 0.0
  %2115 = vmatpush2.msra.mxu0 0.0
  %2116 = vmatprep.subr.mxu0 0.0
  %2117 = vmatpush2.msra.mxu0 0.0
  %2118 = vmatprep.subr.mxu0 0.0
  %2119 = vmatpush2.msra.mxu0 0.0
  %2120 = vmatprep.subr.mxu0 0.0
  %2121 = vmatpush2.msra.mxu0 0.0
  %2122 = vmatprep.mubr.f32.mxu0 0.0
  %2123 = vmatmul.mubr.f32.gmra.mxu0 %v884
  %v2124 = vpop.f32.mrf.mxu0
  %v2125 = vadd.f32 0.0, %v2124
  %v2126 = vpop.f32.mrf.mxu0
  %2127 = vmatprep.mubr.f32.mxu0 0.0
  %2128 = vmatmul.mubr.f32.gmra.mxu0 %v887
  %v2129 = vpop.f32.mrf.mxu0
  %v2130 = vadd.f32 0.0, %v2129
  %v2131 = vpop.f32.mrf.mxu0
  %2132 = vmatprep.mubr.f32.mxu0 0.0
  %2133 = vmatmul.mubr.f32.gmra.mxu0 %v890
  %v2134 = vpop.f32.mrf.mxu0
  %v2135 = vadd.f32 0.0, %v2134
  %v2136 = vpop.f32.mrf.mxu0
  %2137 = vdwg.mxu0
  %2138 = vmatprep.subr.mxu0 0.0
  %2139 = vmatpush1.msra.mxu0 0.0
  %2140 = vmatprep.subr.mxu0 0.0
  %2141 = vmatpush1.msra.mxu0 0.0
  %2142 = vmatprep.subr.mxu0 0.0
  %2143 = vmatpush1.msra.mxu0 0.0
  %2144 = vmatprep.subr.mxu0 0.0
  %2145 = vmatpush1.msra.mxu0 0.0
  %2146 = vmatprep.subr.mxu0 0.0
  %2147 = vmatpush1.msra.mxu0 0.0
  %2148 = vmatprep.subr.mxu0 0.0
  %2149 = vmatpush1.msra.mxu0 0.0
  %2150 = vmatprep.subr.mxu0 0.0
  %2151 = vmatpush1.msra.mxu0 0.0
  %2152 = vmatprep.subr.mxu0 0.0
  %2153 = vmatpush1.msra.mxu0 0.0
  %2154 = vmatprep.subr.mxu0 0.0
  %2155 = vmatpush1.msra.mxu0 0.0
  %2156 = vmatprep.subr.mxu0 0.0
  %2157 = vmatpush1.msra.mxu0 0.0
  %2158 = vmatprep.subr.mxu0 0.0
  %2159 = vmatpush1.msra.mxu0 0.0
  %2160 = vmatprep.subr.mxu0 0.0
  %2161 = vmatpush1.msra.mxu0 0.0
  %2162 = vmatprep.subr.mxu0 0.0
  %2163 = vmatpush1.msra.mxu0 0.0
  %2164 = vmatprep.subr.mxu0 0.0
  %2165 = vmatpush1.msra.mxu0 %v1975
  %2166 = vmatprep.subr.mxu0 0.0
  %2167 = vmatpush1.msra.mxu0 %v1970
  %2168 = vmatprep.subr.mxu0 0.0
  %2169 = vmatpush1.msra.mxu0 %v1965
  %2170 = vmatprep.subr.mxu0 0.0
  %2171 = vmatpush2.msra.mxu0 0.0
  %2172 = vmatprep.subr.mxu0 0.0
  %2173 = vmatpush2.msra.mxu0 0.0
  %2174 = vmatprep.subr.mxu0 0.0
  %2175 = vmatpush2.msra.mxu0 0.0
  %2176 = vmatprep.subr.mxu0 0.0
  %2177 = vmatpush2.msra.mxu0 0.0
  %2178 = vmatprep.subr.mxu0 0.0
  %2179 = vmatpush2.msra.mxu0 0.0
  %2180 = vmatprep.subr.mxu0 0.0
  %2181 = vmatpush2.msra.mxu0 0.0
  %2182 = vmatprep.subr.mxu0 0.0
  %2183 = vmatpush2.msra.mxu0 0.0
  %2184 = vmatprep.subr.mxu0 0.0
  %2185 = vmatpush2.msra.mxu0 0.0
  %2186 = vmatprep.subr.mxu0 0.0
  %2187 = vmatpush2.msra.mxu0 0.0
  %2188 = vmatprep.subr.mxu0 0.0
  %2189 = vmatpush2.msra.mxu0 0.0
  %2190 = vmatprep.subr.mxu0 0.0
  %2191 = vmatpush2.msra.mxu0 0.0
  %2192 = vmatprep.subr.mxu0 0.0
  %2193 = vmatpush2.msra.mxu0 0.0
  %2194 = vmatprep.subr.mxu0 0.0
  %2195 = vmatpush2.msra.mxu0 0.0
  %2196 = vmatprep.subr.mxu0 0.0
  %2197 = vmatpush2.msra.mxu0 0.0
  %2198 = vmatprep.subr.mxu0 0.0
  %2199 = vmatpush2.msra.mxu0 0.0
  %2200 = vmatprep.subr.mxu0 0.0
  %2201 = vmatpush2.msra.mxu0 0.0
  %2202 = vmatprep.mubr.f32.mxu0 0.0
  %2203 = vmatmul.mubr.f32.gmra.mxu0 %v973
  %v2204 = vpop.f32.mrf.mxu0
  %v2205 = vadd.f32 %v2125, %v2204
  %v2206 = vpop.f32.mrf.mxu0
  %2207 = vmatprep.mubr.f32.mxu0 0.0
  %2208 = vmatmul.mubr.f32.gmra.mxu0 %v976
  %v2209 = vpop.f32.mrf.mxu0
  %v2210 = vadd.f32 %v2130, %v2209
  %v2211 = vpop.f32.mrf.mxu0
  %2212 = vmatprep.mubr.f32.mxu0 0.0
  %2213 = vmatmul.mubr.f32.gmra.mxu0 %v979
  %v2214 = vpop.f32.mrf.mxu0
  %v2215 = vadd.f32 %v2135, %v2214
  %v2216 = vpop.f32.mrf.mxu0
  %2217 = vdwg.mxu0
  %v2219 = vsel %vm120, %v2205, 0
  %v2222 = vsel %vm120, %v2210, 0
  %v2225 = vsel %vm120, %v2215, 0
  %2227 = vmatprep.subr.mxu0 0.0
  %2228 = vmatpush1.msra.mxu0 0.0
  %2229 = vmatprep.subr.mxu0 0.0
  %2230 = vmatpush1.msra.mxu0 0.0
  %2231 = vmatprep.subr.mxu0 0.0
  %2232 = vmatpush1.msra.mxu0 0.0
  %2233 = vmatprep.subr.mxu0 0.0
  %2234 = vmatpush1.msra.mxu0 0.0
  %2235 = vmatprep.subr.mxu0 0.0
  %2236 = vmatpush1.msra.mxu0 0.0
  %2237 = vmatprep.subr.mxu0 0.0
  %2238 = vmatpush1.msra.mxu0 0.0
  %2239 = vmatprep.subr.mxu0 0.0
  %2240 = vmatpush1.msra.mxu0 0.0
  %2241 = vmatprep.subr.mxu0 0.0
  %2242 = vmatpush1.msra.mxu0 0.0
  %2243 = vmatprep.subr.mxu0 0.0
  %2244 = vmatpush1.msra.mxu0 0.0
  %2245 = vmatprep.subr.mxu0 0.0
  %2246 = vmatpush1.msra.mxu0 0.0
  %2247 = vmatprep.subr.mxu0 0.0
  %2248 = vmatpush1.msra.mxu0 0.0
  %2249 = vmatprep.subr.mxu0 0.0
  %2250 = vmatpush1.msra.mxu0 0.0
  %2251 = vmatprep.subr.mxu0 0.0
  %2252 = vmatpush1.msra.mxu0 0.0
  %2253 = vmatprep.subr.mxu0 0.0
  %2254 = vmatpush1.msra.mxu0 0.0
  %2255 = vmatprep.subr.mxu0 0.0
  %2256 = vmatpush1.msra.mxu0 %v51
  %2257 = vmatprep.subr.mxu0 0.0
  %2258 = vmatpush1.msra.mxu0 %v50
  %2259 = vmatprep.subr.mxu0 0.0
  %2260 = vmatpush2.msra.mxu0 0.0
  %2261 = vmatprep.subr.mxu0 0.0
  %2262 = vmatpush2.msra.mxu0 0.0
  %2263 = vmatprep.subr.mxu0 0.0
  %2264 = vmatpush2.msra.mxu0 0.0
  %2265 = vmatprep.subr.mxu0 0.0
  %2266 = vmatpush2.msra.mxu0 0.0
  %2267 = vmatprep.subr.mxu0 0.0
  %2268 = vmatpush2.msra.mxu0 0.0
  %2269 = vmatprep.subr.mxu0 0.0
  %2270 = vmatpush2.msra.mxu0 0.0
  %2271 = vmatprep.subr.mxu0 0.0
  %2272 = vmatpush2.msra.mxu0 0.0
  %2273 = vmatprep.subr.mxu0 0.0
  %2274 = vmatpush2.msra.mxu0 0.0
  %2275 = vmatprep.subr.mxu0 0.0
  %2276 = vmatpush2.msra.mxu0 0.0
  %2277 = vmatprep.subr.mxu0 0.0
  %2278 = vmatpush2.msra.mxu0 0.0
  %2279 = vmatprep.subr.mxu0 0.0
  %2280 = vmatpush2.msra.mxu0 0.0
  %2281 = vmatprep.subr.mxu0 0.0
  %2282 = vmatpush2.msra.mxu0 0.0
  %2283 = vmatprep.subr.mxu0 0.0
  %2284 = vmatpush2.msra.mxu0 0.0
  %2285 = vmatprep.subr.mxu0 0.0
  %2286 = vmatpush2.msra.mxu0 0.0
  %2287 = vmatprep.subr.mxu0 0.0
  %2288 = vmatpush2.msra.mxu0 0.0
  %2289 = vmatprep.subr.mxu0 0.0
  %2290 = vmatpush2.msra.mxu0 0.0
  %2291 = vmatprep.mubr.f32.mxu0 0.0
  %2292 = vmatmul.mubr.f32.gmra.mxu0 %v2219
  %v2293 = vpop.f32.mrf.mxu0
  %v2294 = vadd.f32 0.0, %v2293
  %v2295 = vpop.f32.mrf.mxu0
  %2296 = vmatprep.mubr.f32.mxu0 0.0
  %2297 = vmatmul.mubr.f32.gmra.mxu0 %v2222
  %v2298 = vpop.f32.mrf.mxu0
  %v2299 = vadd.f32 0.0, %v2298
  %v2300 = vpop.f32.mrf.mxu0
  %2301 = vmatprep.mubr.f32.mxu0 0.0
  %2302 = vmatmul.mubr.f32.gmra.mxu0 %v2225
  %v2303 = vpop.f32.mrf.mxu0
  %v2304 = vadd.f32 0.0, %v2303
  %v2305 = vpop.f32.mrf.mxu0
  %2306 = vdwg.mxu0
  %v2308 = vsel %vm120, %v1321, 0
  %v2311 = vsel %vm120, %v1326, 0
  %v2314 = vsel %vm120, %v1331, 0
  %2316 = vmatprep.subr.mxu0 0.0
  %2317 = vmatpush1.msra.mxu0 0.0
  %2318 = vmatprep.subr.mxu0 0.0
  %2319 = vmatpush1.msra.mxu0 0.0
  %2320 = vmatprep.subr.mxu0 0.0
  %2321 = vmatpush1.msra.mxu0 0.0
  %2322 = vmatprep.subr.mxu0 0.0
  %2323 = vmatpush1.msra.mxu0 0.0
  %2324 = vmatprep.subr.mxu0 0.0
  %2325 = vmatpush1.msra.mxu0 0.0
  %2326 = vmatprep.subr.mxu0 0.0
  %2327 = vmatpush1.msra.mxu0 0.0
  %2328 = vmatprep.subr.mxu0 0.0
  %2329 = vmatpush1.msra.mxu0 0.0
  %2330 = vmatprep.subr.mxu0 0.0
  %2331 = vmatpush1.msra.mxu0 0.0
  %2332 = vmatprep.subr.mxu0 0.0
  %2333 = vmatpush1.msra.mxu0 0.0
  %2334 = vmatprep.subr.mxu0 0.0
  %2335 = vmatpush1.msra.mxu0 0.0
  %2336 = vmatprep.subr.mxu0 0.0
  %2337 = vmatpush1.msra.mxu0 0.0
  %2338 = vmatprep.subr.mxu0 0.0
  %2339 = vmatpush1.msra.mxu0 0.0
  %2340 = vmatprep.subr.mxu0 0.0
  %2341 = vmatpush1.msra.mxu0 0.0
  %2342 = vmatprep.subr.mxu0 0.0
  %2343 = vmatpush1.msra.mxu0 0.0
  %2344 = vmatprep.subr.mxu0 0.0
  %2345 = vmatpush1.msra.mxu0 %v49
  %2346 = vmatprep.subr.mxu0 0.0
  %2347 = vmatpush1.msra.mxu0 %v48
  %2348 = vmatprep.subr.mxu0 0.0
  %2349 = vmatpush2.msra.mxu0 0.0
  %2350 = vmatprep.subr.mxu0 0.0
  %2351 = vmatpush2.msra.mxu0 0.0
  %2352 = vmatprep.subr.mxu0 0.0
  %2353 = vmatpush2.msra.mxu0 0.0
  %2354 = vmatprep.subr.mxu0 0.0
  %2355 = vmatpush2.msra.mxu0 0.0
  %2356 = vmatprep.subr.mxu0 0.0
  %2357 = vmatpush2.msra.mxu0 0.0
  %2358 = vmatprep.subr.mxu0 0.0
  %2359 = vmatpush2.msra.mxu0 0.0
  %2360 = vmatprep.subr.mxu0 0.0
  %2361 = vmatpush2.msra.mxu0 0.0
  %2362 = vmatprep.subr.mxu0 0.0
  %2363 = vmatpush2.msra.mxu0 0.0
  %2364 = vmatprep.subr.mxu0 0.0
  %2365 = vmatpush2.msra.mxu0 0.0
  %2366 = vmatprep.subr.mxu0 0.0
  %2367 = vmatpush2.msra.mxu0 0.0
  %2368 = vmatprep.subr.mxu0 0.0
  %2369 = vmatpush2.msra.mxu0 0.0
  %2370 = vmatprep.subr.mxu0 0.0
  %2371 = vmatpush2.msra.mxu0 0.0
  %2372 = vmatprep.subr.mxu0 0.0
  %2373 = vmatpush2.msra.mxu0 0.0
  %2374 = vmatprep.subr.mxu0 0.0
  %2375 = vmatpush2.msra.mxu0 0.0
  %2376 = vmatprep.subr.mxu0 0.0
  %2377 = vmatpush2.msra.mxu0 0.0
  %2378 = vmatprep.subr.mxu0 0.0
  %2379 = vmatpush2.msra.mxu0 0.0
  %2380 = vmatprep.mubr.f32.mxu0 0.0
  %2381 = vmatmul.mubr.f32.gmra.mxu0 %v2308
  %v2382 = vpop.f32.mrf.mxu0
  %v2383 = vadd.f32 %v2294, %v2382
  %v2384 = vpop.f32.mrf.mxu0
  %2385 = vmatprep.mubr.f32.mxu0 0.0
  %2386 = vmatmul.mubr.f32.gmra.mxu0 %v2311
  %v2387 = vpop.f32.mrf.mxu0
  %v2388 = vadd.f32 %v2299, %v2387
  %v2389 = vpop.f32.mrf.mxu0
  %2390 = vmatprep.mubr.f32.mxu0 0.0
  %2391 = vmatmul.mubr.f32.gmra.mxu0 %v2314
  %v2392 = vpop.f32.mrf.mxu0
  %v2393 = vadd.f32 %v2304, %v2392
  %v2394 = vpop.f32.mrf.mxu0
  %2395 = vdwg.mxu0
  %v2396 = vadd.f32 %v2383, %v115
  %v2397 = vadd.f32 %v2388, %v115
  %v2398 = vadd.f32 %v2393, %v115
  %v2399 = vmax.f32 %v2396, 0.0
  %v2400 = vmax.f32 %v2397, 0.0
  %v2401 = vmax.f32 %v2398, 0.0
  %v2403 = vsel %vm120, %v2399, 0
  %v2406 = vsel %vm120, %v2400, 0
  %v2409 = vsel %vm120, %v2401, 0
  %2411 = vmatprep.subr.mxu0 0.0
  %2412 = vmatpush1.msra.mxu0 0.0
  %2413 = vmatprep.subr.mxu0 0.0
  %2414 = vmatpush1.msra.mxu0 0.0
  %2415 = vmatprep.subr.mxu0 0.0
  %2416 = vmatpush1.msra.mxu0 0.0
  %2417 = vmatprep.subr.mxu0 0.0
  %2418 = vmatpush1.msra.mxu0 0.0
  %2419 = vmatprep.subr.mxu0 0.0
  %2420 = vmatpush1.msra.mxu0 0.0
  %2421 = vmatprep.subr.mxu0 0.0
  %2422 = vmatpush1.msra.mxu0 0.0
  %2423 = vmatprep.subr.mxu0 0.0
  %2424 = vmatpush1.msra.mxu0 0.0
  %2425 = vmatprep.subr.mxu0 0.0
  %2426 = vmatpush1.msra.mxu0 0.0
  %2427 = vmatprep.subr.mxu0 0.0
  %2428 = vmatpush1.msra.mxu0 0.0
  %2429 = vmatprep.subr.mxu0 0.0
  %2430 = vmatpush1.msra.mxu0 0.0
  %2431 = vmatprep.subr.mxu0 0.0
  %2432 = vmatpush1.msra.mxu0 0.0
  %2433 = vmatprep.subr.mxu0 0.0
  %2434 = vmatpush1.msra.mxu0 0.0
  %2435 = vmatprep.subr.mxu0 0.0
  %2436 = vmatpush1.msra.mxu0 0.0
  %2437 = vmatprep.subr.mxu0 0.0
  %2438 = vmatpush1.msra.mxu0 0.0
  %2439 = vmatprep.subr.mxu0 0.0
  %2440 = vmatpush1.msra.mxu0 %v53
  %2441 = vmatprep.subr.mxu0 0.0
  %2442 = vmatpush1.msra.mxu0 %v52
  %2443 = vmatprep.subr.mxu0 0.0
  %2444 = vmatpush2.msra.mxu0 0.0
  %2445 = vmatprep.subr.mxu0 0.0
  %2446 = vmatpush2.msra.mxu0 0.0
  %2447 = vmatprep.subr.mxu0 0.0
  %2448 = vmatpush2.msra.mxu0 0.0
  %2449 = vmatprep.subr.mxu0 0.0
  %2450 = vmatpush2.msra.mxu0 0.0
  %2451 = vmatprep.subr.mxu0 0.0
  %2452 = vmatpush2.msra.mxu0 0.0
  %2453 = vmatprep.subr.mxu0 0.0
  %2454 = vmatpush2.msra.mxu0 0.0
  %2455 = vmatprep.subr.mxu0 0.0
  %2456 = vmatpush2.msra.mxu0 0.0
  %2457 = vmatprep.subr.mxu0 0.0
  %2458 = vmatpush2.msra.mxu0 0.0
  %2459 = vmatprep.subr.mxu0 0.0
  %2460 = vmatpush2.msra.mxu0 0.0
  %2461 = vmatprep.subr.mxu0 0.0
  %2462 = vmatpush2.msra.mxu0 0.0
  %2463 = vmatprep.subr.mxu0 0.0
  %2464 = vmatpush2.msra.mxu0 0.0
  %2465 = vmatprep.subr.mxu0 0.0
  %2466 = vmatpush2.msra.mxu0 0.0
  %2467 = vmatprep.subr.mxu0 0.0
  %2468 = vmatpush2.msra.mxu0 0.0
  %2469 = vmatprep.subr.mxu0 0.0
  %2470 = vmatpush2.msra.mxu0 0.0
  %2471 = vmatprep.subr.mxu0 0.0
  %2472 = vmatpush2.msra.mxu0 0.0
  %2473 = vmatprep.subr.mxu0 0.0
  %2474 = vmatpush2.msra.mxu0 0.0
  %2475 = vmatprep.mubr.f32.mxu0 0.0
  %2476 = vmatmul.mubr.f32.gmra.mxu0 %v2403
  %v2477 = vpop.f32.mrf.mxu0
  %v2478 = vadd.f32 %v119, %v2477
  %v2479 = vpop.f32.mrf.mxu0
  %2480 = vmatprep.mubr.f32.mxu0 0.0
  %2481 = vmatmul.mubr.f32.gmra.mxu0 %v2406
  %v2482 = vpop.f32.mrf.mxu0
  %v2483 = vadd.f32 %v119, %v2482
  %v2484 = vpop.f32.mrf.mxu0
  %2485 = vmatprep.mubr.f32.mxu0 0.0
  %2486 = vmatmul.mubr.f32.gmra.mxu0 %v2409
  %v2487 = vpop.f32.mrf.mxu0
  %v2488 = vadd.f32 %v119, %v2487
  %v2489 = vpop.f32.mrf.mxu0
  %2490 = vdwg.mxu0
  %2491 = vmatprep.subr.mxu0 0.0
  %2492 = vmatpush1.msra.mxu0 0.0
  %2493 = vmatprep.subr.mxu0 0.0
  %2494 = vmatpush1.msra.mxu0 0.0
  %2495 = vmatprep.subr.mxu0 0.0
  %2496 = vmatpush1.msra.mxu0 0.0
  %2497 = vmatprep.subr.mxu0 0.0
  %2498 = vmatpush1.msra.mxu0 0.0
  %2499 = vmatprep.subr.mxu0 0.0
  %2500 = vmatpush1.msra.mxu0 0.0
  %2501 = vmatprep.subr.mxu0 0.0
  %2502 = vmatpush1.msra.mxu0 0.0
  %2503 = vmatprep.subr.mxu0 0.0
  %2504 = vmatpush1.msra.mxu0 0.0
  %2505 = vmatprep.subr.mxu0 0.0
  %2506 = vmatpush1.msra.mxu0 0.0
  %2507 = vmatprep.subr.mxu0 0.0
  %2508 = vmatpush1.msra.mxu0 0.0
  %2509 = vmatprep.subr.mxu0 0.0
  %2510 = vmatpush1.msra.mxu0 0.0
  %2511 = vmatprep.subr.mxu0 0.0
  %2512 = vmatpush1.msra.mxu0 0.0
  %2513 = vmatprep.subr.mxu0 0.0
  %2514 = vmatpush1.msra.mxu0 0.0
  %2515 = vmatprep.subr.mxu0 0.0
  %2516 = vmatpush1.msra.mxu0 0.0
  %2517 = vmatprep.subr.mxu0 0.0
  %2518 = vmatpush1.msra.mxu0 %v2488
  %2519 = vmatprep.subr.mxu0 0.0
  %2520 = vmatpush1.msra.mxu0 %v2483
  %2521 = vmatprep.subr.mxu0 0.0
  %2522 = vmatpush1.msra.mxu0 %v2478
  %2523 = vmatprep.subr.mxu0 0.0
  %2524 = vmatpush2.msra.mxu0 0.0
  %2525 = vmatprep.subr.mxu0 0.0
  %2526 = vmatpush2.msra.mxu0 0.0
  %2527 = vmatprep.subr.mxu0 0.0
  %2528 = vmatpush2.msra.mxu0 0.0
  %2529 = vmatprep.subr.mxu0 0.0
  %2530 = vmatpush2.msra.mxu0 0.0
  %2531 = vmatprep.subr.mxu0 0.0
  %2532 = vmatpush2.msra.mxu0 0.0
  %2533 = vmatprep.subr.mxu0 0.0
  %2534 = vmatpush2.msra.mxu0 0.0
  %2535 = vmatprep.subr.mxu0 0.0
  %2536 = vmatpush2.msra.mxu0 0.0
  %2537 = vmatprep.subr.mxu0 0.0
  %2538 = vmatpush2.msra.mxu0 0.0
  %2539 = vmatprep.subr.mxu0 0.0
  %2540 = vmatpush2.msra.mxu0 0.0
  %2541 = vmatprep.subr.mxu0 0.0
  %2542 = vmatpush2.msra.mxu0 0.0
  %2543 = vmatprep.subr.mxu0 0.0
  %2544 = vmatpush2.msra.mxu0 0.0
  %2545 = vmatprep.subr.mxu0 0.0
  %2546 = vmatpush2.msra.mxu0 0.0
  %2547 = vmatprep.subr.mxu0 0.0
  %2548 = vmatpush2.msra.mxu0 0.0
  %2549 = vmatprep.subr.mxu0 0.0
  %2550 = vmatpush2.msra.mxu0 0.0
  %2551 = vmatprep.subr.mxu0 0.0
  %2552 = vmatpush2.msra.mxu0 0.0
  %2553 = vmatprep.subr.mxu0 0.0
  %2554 = vmatpush2.msra.mxu0 0.0
  %2555 = vmatprep.mubr.f32.mxu0 0.0
  %2556 = vmatmul.mubr.f32.gmra.mxu0 %v418
  %v2557 = vpop.f32.mrf.mxu0
  %v2558 = vadd.f32 0.0, %v2557
  %v2559 = vpop.f32.mrf.mxu0
  %2560 = vmatprep.mubr.f32.mxu0 0.0
  %2561 = vmatmul.mubr.f32.gmra.mxu0 %v421
  %v2562 = vpop.f32.mrf.mxu0
  %v2563 = vadd.f32 0.0, %v2562
  %v2564 = vpop.f32.mrf.mxu0
  %2565 = vmatprep.mubr.f32.mxu0 0.0
  %2566 = vmatmul.mubr.f32.gmra.mxu0 %v424
  %v2567 = vpop.f32.mrf.mxu0
  %v2568 = vadd.f32 0.0, %v2567
  %v2569 = vpop.f32.mrf.mxu0
  %2570 = vmatprep.mubr.f32.mxu0 0.0
  %2571 = vmatmul.mubr.f32.gmra.mxu0 %v427
  %v2572 = vpop.f32.mrf.mxu0
  %v2573 = vadd.f32 0.0, %v2572
  %v2574 = vpop.f32.mrf.mxu0
  %2575 = vmatprep.mubr.f32.mxu0 0.0
  %2576 = vmatmul.mubr.f32.gmra.mxu0 %v430
  %v2577 = vpop.f32.mrf.mxu0
  %v2578 = vadd.f32 0.0, %v2577
  %v2579 = vpop.f32.mrf.mxu0
  %2580 = vmatprep.mubr.f32.mxu0 0.0
  %2581 = vmatmul.mubr.f32.gmra.mxu0 %v433
  %v2582 = vpop.f32.mrf.mxu0
  %v2583 = vadd.f32 0.0, %v2582
  %v2584 = vpop.f32.mrf.mxu0
  %2585 = vdwg.mxu0
  %v2587 = vsel %vm120, %v2573, 0
  %v2590 = vsel %vm120, %v2578, 0
  %v2593 = vsel %vm120, %v2583, 0
  %2595 = vmatprep.subr.mxu0 0.0
  %2596 = vmatpush1.msra.mxu0 0.0
  %2597 = vmatprep.subr.mxu0 0.0
  %2598 = vmatpush1.msra.mxu0 0.0
  %2599 = vmatprep.subr.mxu0 0.0
  %2600 = vmatpush1.msra.mxu0 0.0
  %2601 = vmatprep.subr.mxu0 0.0
  %2602 = vmatpush1.msra.mxu0 0.0
  %2603 = vmatprep.subr.mxu0 0.0
  %2604 = vmatpush1.msra.mxu0 0.0
  %2605 = vmatprep.subr.mxu0 0.0
  %2606 = vmatpush1.msra.mxu0 0.0
  %2607 = vmatprep.subr.mxu0 0.0
  %2608 = vmatpush1.msra.mxu0 0.0
  %2609 = vmatprep.subr.mxu0 0.0
  %2610 = vmatpush1.msra.mxu0 0.0
  %2611 = vmatprep.subr.mxu0 0.0
  %2612 = vmatpush1.msra.mxu0 0.0
  %2613 = vmatprep.subr.mxu0 0.0
  %2614 = vmatpush1.msra.mxu0 0.0
  %2615 = vmatprep.subr.mxu0 0.0
  %2616 = vmatpush1.msra.mxu0 0.0
  %2617 = vmatprep.subr.mxu0 0.0
  %2618 = vmatpush1.msra.mxu0 0.0
  %2619 = vmatprep.subr.mxu0 0.0
  %2620 = vmatpush1.msra.mxu0 0.0
  %2621 = vmatprep.subr.mxu0 0.0
  %2622 = vmatpush1.msra.mxu0 0.0
  %2623 = vmatprep.subr.mxu0 0.0
  %2624 = vmatpush1.msra.mxu0 %v82
  %2625 = vmatprep.subr.mxu0 0.0
  %2626 = vmatpush1.msra.mxu0 %v81
  %2627 = vmatprep.subr.mxu0 0.0
  %2628 = vmatpush2.msra.mxu0 0.0
  %2629 = vmatprep.subr.mxu0 0.0
  %2630 = vmatpush2.msra.mxu0 0.0
  %2631 = vmatprep.subr.mxu0 0.0
  %2632 = vmatpush2.msra.mxu0 0.0
  %2633 = vmatprep.subr.mxu0 0.0
  %2634 = vmatpush2.msra.mxu0 0.0
  %2635 = vmatprep.subr.mxu0 0.0
  %2636 = vmatpush2.msra.mxu0 0.0
  %2637 = vmatprep.subr.mxu0 0.0
  %2638 = vmatpush2.msra.mxu0 0.0
  %2639 = vmatprep.subr.mxu0 0.0
  %2640 = vmatpush2.msra.mxu0 0.0
  %2641 = vmatprep.subr.mxu0 0.0
  %2642 = vmatpush2.msra.mxu0 0.0
  %2643 = vmatprep.subr.mxu0 0.0
  %2644 = vmatpush2.msra.mxu0 0.0
  %2645 = vmatprep.subr.mxu0 0.0
  %2646 = vmatpush2.msra.mxu0 0.0
  %2647 = vmatprep.subr.mxu0 0.0
  %2648 = vmatpush2.msra.mxu0 0.0
  %2649 = vmatprep.subr.mxu0 0.0
  %2650 = vmatpush2.msra.mxu0 0.0
  %2651 = vmatprep.subr.mxu0 0.0
  %2652 = vmatpush2.msra.mxu0 0.0
  %2653 = vmatprep.subr.mxu0 0.0
  %2654 = vmatpush2.msra.mxu0 0.0
  %2655 = vmatprep.subr.mxu0 0.0
  %2656 = vmatpush2.msra.mxu0 0.0
  %2657 = vmatprep.subr.mxu0 0.0
  %2658 = vmatpush2.msra.mxu0 0.0
  %2659 = vmatprep.mubr.f32.mxu0 0.0
  %2660 = vmatmul.mubr.f32.gmra.mxu0 %v2587
  %v2661 = vpop.f32.mrf.mxu0
  %v2662 = vadd.f32 0.0, %v2661
  %v2663 = vpop.f32.mrf.mxu0
  %2664 = vmatprep.mubr.f32.mxu0 0.0
  %2665 = vmatmul.mubr.f32.gmra.mxu0 %v2590
  %v2666 = vpop.f32.mrf.mxu0
  %v2667 = vadd.f32 0.0, %v2666
  %v2668 = vpop.f32.mrf.mxu0
  %2669 = vmatprep.mubr.f32.mxu0 0.0
  %2670 = vmatmul.mubr.f32.gmra.mxu0 %v2593
  %v2671 = vpop.f32.mrf.mxu0
  %v2672 = vadd.f32 0.0, %v2671
  %v2673 = vpop.f32.mrf.mxu0
  %2674 = vdwg.mxu0
  %v2676 = vsel %vm120, %v2558, 0
  %v2679 = vsel %vm120, %v2563, 0
  %v2682 = vsel %vm120, %v2568, 0
  %2684 = vmatprep.subr.mxu0 0.0
  %2685 = vmatpush1.msra.mxu0 0.0
  %2686 = vmatprep.subr.mxu0 0.0
  %2687 = vmatpush1.msra.mxu0 0.0
  %2688 = vmatprep.subr.mxu0 0.0
  %2689 = vmatpush1.msra.mxu0 0.0
  %2690 = vmatprep.subr.mxu0 0.0
  %2691 = vmatpush1.msra.mxu0 0.0
  %2692 = vmatprep.subr.mxu0 0.0
  %2693 = vmatpush1.msra.mxu0 0.0
  %2694 = vmatprep.subr.mxu0 0.0
  %2695 = vmatpush1.msra.mxu0 0.0
  %2696 = vmatprep.subr.mxu0 0.0
  %2697 = vmatpush1.msra.mxu0 0.0
  %2698 = vmatprep.subr.mxu0 0.0
  %2699 = vmatpush1.msra.mxu0 0.0
  %2700 = vmatprep.subr.mxu0 0.0
  %2701 = vmatpush1.msra.mxu0 0.0
  %2702 = vmatprep.subr.mxu0 0.0
  %2703 = vmatpush1.msra.mxu0 0.0
  %2704 = vmatprep.subr.mxu0 0.0
  %2705 = vmatpush1.msra.mxu0 0.0
  %2706 = vmatprep.subr.mxu0 0.0
  %2707 = vmatpush1.msra.mxu0 0.0
  %2708 = vmatprep.subr.mxu0 0.0
  %2709 = vmatpush1.msra.mxu0 0.0
  %2710 = vmatprep.subr.mxu0 0.0
  %2711 = vmatpush1.msra.mxu0 0.0
  %2712 = vmatprep.subr.mxu0 0.0
  %2713 = vmatpush1.msra.mxu0 %v80
  %2714 = vmatprep.subr.mxu0 0.0
  %2715 = vmatpush1.msra.mxu0 %v79
  %2716 = vmatprep.subr.mxu0 0.0
  %2717 = vmatpush2.msra.mxu0 0.0
  %2718 = vmatprep.subr.mxu0 0.0
  %2719 = vmatpush2.msra.mxu0 0.0
  %2720 = vmatprep.subr.mxu0 0.0
  %2721 = vmatpush2.msra.mxu0 0.0
  %2722 = vmatprep.subr.mxu0 0.0
  %2723 = vmatpush2.msra.mxu0 0.0
  %2724 = vmatprep.subr.mxu0 0.0
  %2725 = vmatpush2.msra.mxu0 0.0
  %2726 = vmatprep.subr.mxu0 0.0
  %2727 = vmatpush2.msra.mxu0 0.0
  %2728 = vmatprep.subr.mxu0 0.0
  %2729 = vmatpush2.msra.mxu0 0.0
  %2730 = vmatprep.subr.mxu0 0.0
  %2731 = vmatpush2.msra.mxu0 0.0
  %2732 = vmatprep.subr.mxu0 0.0
  %2733 = vmatpush2.msra.mxu0 0.0
  %2734 = vmatprep.subr.mxu0 0.0
  %2735 = vmatpush2.msra.mxu0 0.0
  %2736 = vmatprep.subr.mxu0 0.0
  %2737 = vmatpush2.msra.mxu0 0.0
  %2738 = vmatprep.subr.mxu0 0.0
  %2739 = vmatpush2.msra.mxu0 0.0
  %2740 = vmatprep.subr.mxu0 0.0
  %2741 = vmatpush2.msra.mxu0 0.0
  %2742 = vmatprep.subr.mxu0 0.0
  %2743 = vmatpush2.msra.mxu0 0.0
  %2744 = vmatprep.subr.mxu0 0.0
  %2745 = vmatpush2.msra.mxu0 0.0
  %2746 = vmatprep.subr.mxu0 0.0
  %2747 = vmatpush2.msra.mxu0 0.0
  %2748 = vmatprep.mubr.f32.mxu0 0.0
  %2749 = vmatmul.mubr.f32.gmra.mxu0 %v2676
  %v2750 = vpop.f32.mrf.mxu0
  %v2751 = vadd.f32 %v2662, %v2750
  %v2752 = vpop.f32.mrf.mxu0
  %2753 = vmatprep.mubr.f32.mxu0 0.0
  %2754 = vmatmul.mubr.f32.gmra.mxu0 %v2679
  %v2755 = vpop.f32.mrf.mxu0
  %v2756 = vadd.f32 %v2667, %v2755
  %v2757 = vpop.f32.mrf.mxu0
  %2758 = vmatprep.mubr.f32.mxu0 0.0
  %2759 = vmatmul.mubr.f32.gmra.mxu0 %v2682
  %v2760 = vpop.f32.mrf.mxu0
  %v2761 = vadd.f32 %v2672, %v2760
  %v2762 = vpop.f32.mrf.mxu0
  %2763 = vdwg.mxu0
  %v2764 = vadd.f32 %v2751, %v1870
  %v2765 = vadd.f32 %v2756, %v1875
  %v2766 = vadd.f32 %v2761, %v1880
  %v2767 = vmax.f32 %v2764, 0.0
  %v2768 = vmax.f32 %v2765, 0.0
  %v2769 = vmax.f32 %v2766, 0.0
  %v2771 = vsel %vm326, %v2767, 0
  %v2774 = vsel %vm326, %v2768, 0
  %v2777 = vsel %vm326, %v2769, 0
  %2779 = vmatprep.subr.mxu0 0.0
  %2780 = vmatpush1.msra.mxu0 0.0
  %2781 = vmatprep.subr.mxu0 0.0
  %2782 = vmatpush1.msra.mxu0 0.0
  %2783 = vmatprep.subr.mxu0 0.0
  %2784 = vmatpush1.msra.mxu0 0.0
  %2785 = vmatprep.subr.mxu0 0.0
  %2786 = vmatpush1.msra.mxu0 0.0
  %2787 = vmatprep.subr.mxu0 0.0
  %2788 = vmatpush1.msra.mxu0 0.0
  %2789 = vmatprep.subr.mxu0 0.0
  %2790 = vmatpush1.msra.mxu0 0.0
  %2791 = vmatprep.subr.mxu0 0.0
  %2792 = vmatpush1.msra.mxu0 0.0
  %2793 = vmatprep.subr.mxu0 0.0
  %2794 = vmatpush1.msra.mxu0 0.0
  %2795 = vmatprep.subr.mxu0 0.0
  %2796 = vmatpush1.msra.mxu0 0.0
  %2797 = vmatprep.subr.mxu0 0.0
  %2798 = vmatpush1.msra.mxu0 0.0
  %2799 = vmatprep.subr.mxu0 0.0
  %2800 = vmatpush1.msra.mxu0 0.0
  %2801 = vmatprep.subr.mxu0 0.0
  %2802 = vmatpush1.msra.mxu0 0.0
  %2803 = vmatprep.subr.mxu0 0.0
  %2804 = vmatpush1.msra.mxu0 %v65
  %2805 = vmatprep.subr.mxu0 0.0
  %2806 = vmatpush1.msra.mxu0 %v64
  %2807 = vmatprep.subr.mxu0 0.0
  %2808 = vmatpush1.msra.mxu0 %v63
  %2809 = vmatprep.subr.mxu0 0.0
  %2810 = vmatpush1.msra.mxu0 %v62
  %2811 = vmatprep.subr.mxu0 0.0
  %2812 = vmatpush2.msra.mxu0 0.0
  %2813 = vmatprep.subr.mxu0 0.0
  %2814 = vmatpush2.msra.mxu0 0.0
  %2815 = vmatprep.subr.mxu0 0.0
  %2816 = vmatpush2.msra.mxu0 0.0
  %2817 = vmatprep.subr.mxu0 0.0
  %2818 = vmatpush2.msra.mxu0 0.0
  %2819 = vmatprep.subr.mxu0 0.0
  %2820 = vmatpush2.msra.mxu0 0.0
  %2821 = vmatprep.subr.mxu0 0.0
  %2822 = vmatpush2.msra.mxu0 0.0
  %2823 = vmatprep.subr.mxu0 0.0
  %2824 = vmatpush2.msra.mxu0 0.0
  %2825 = vmatprep.subr.mxu0 0.0
  %2826 = vmatpush2.msra.mxu0 0.0
  %2827 = vmatprep.subr.mxu0 0.0
  %2828 = vmatpush2.msra.mxu0 0.0
  %2829 = vmatprep.subr.mxu0 0.0
  %2830 = vmatpush2.msra.mxu0 0.0
  %2831 = vmatprep.subr.mxu0 0.0
  %2832 = vmatpush2.msra.mxu0 0.0
  %2833 = vmatprep.subr.mxu0 0.0
  %2834 = vmatpush2.msra.mxu0 0.0
  %2835 = vmatprep.subr.mxu0 0.0
  %2836 = vmatpush2.msra.mxu0 0.0
  %2837 = vmatprep.subr.mxu0 0.0
  %2838 = vmatpush2.msra.mxu0 0.0
  %2839 = vmatprep.subr.mxu0 0.0
  %2840 = vmatpush2.msra.mxu0 0.0
  %2841 = vmatprep.subr.mxu0 0.0
  %2842 = vmatpush2.msra.mxu0 0.0
  %2843 = vmatprep.mubr.f32.mxu0 0.0
  %2844 = vmatmul.mubr.f32.gmra.mxu0 %v2771
  %v2845 = vpop.f32.mrf.mxu0
  %v2846 = vadd.f32 %v111, %v2845
  %v2847 = vpop.f32.mrf.mxu0
  %2848 = vmatprep.mubr.f32.mxu0 0.0
  %2849 = vmatmul.mubr.f32.gmra.mxu0 %v2774
  %v2850 = vpop.f32.mrf.mxu0
  %v2851 = vadd.f32 %v111, %v2850
  %v2852 = vpop.f32.mrf.mxu0
  %2853 = vmatprep.mubr.f32.mxu0 0.0
  %2854 = vmatmul.mubr.f32.gmra.mxu0 %v2777
  %v2855 = vpop.f32.mrf.mxu0
  %v2856 = vadd.f32 %v111, %v2855
  %v2857 = vpop.f32.mrf.mxu0
  %2858 = vdwg.mxu0
  %v2860 = vsel %vm120, %v2846, 0
  %v2863 = vsel %vm120, %v2851, 0
  %v2866 = vsel %vm120, %v2856, 0
  %2868 = vmatprep.subr.mxu0 0.0
  %2869 = vmatpush1.msra.mxu0 0.0
  %2870 = vmatprep.subr.mxu0 0.0
  %2871 = vmatpush1.msra.mxu0 0.0
  %2872 = vmatprep.subr.mxu0 0.0
  %2873 = vmatpush1.msra.mxu0 0.0
  %2874 = vmatprep.subr.mxu0 0.0
  %2875 = vmatpush1.msra.mxu0 0.0
  %2876 = vmatprep.subr.mxu0 0.0
  %2877 = vmatpush1.msra.mxu0 0.0
  %2878 = vmatprep.subr.mxu0 0.0
  %2879 = vmatpush1.msra.mxu0 0.0
  %2880 = vmatprep.subr.mxu0 0.0
  %2881 = vmatpush1.msra.mxu0 0.0
  %2882 = vmatprep.subr.mxu0 0.0
  %2883 = vmatpush1.msra.mxu0 0.0
  %2884 = vmatprep.subr.mxu0 0.0
  %2885 = vmatpush1.msra.mxu0 0.0
  %2886 = vmatprep.subr.mxu0 0.0
  %2887 = vmatpush1.msra.mxu0 0.0
  %2888 = vmatprep.subr.mxu0 0.0
  %2889 = vmatpush1.msra.mxu0 0.0
  %2890 = vmatprep.subr.mxu0 0.0
  %2891 = vmatpush1.msra.mxu0 0.0
  %2892 = vmatprep.subr.mxu0 0.0
  %2893 = vmatpush1.msra.mxu0 0.0
  %2894 = vmatprep.subr.mxu0 0.0
  %2895 = vmatpush1.msra.mxu0 0.0
  %2896 = vmatprep.subr.mxu0 0.0
  %2897 = vmatpush1.msra.mxu0 %v78
  %2898 = vmatprep.subr.mxu0 0.0
  %2899 = vmatpush1.msra.mxu0 %v77
  %2900 = vmatprep.subr.mxu0 0.0
  %2901 = vmatpush2.msra.mxu0 0.0
  %2902 = vmatprep.subr.mxu0 0.0
  %2903 = vmatpush2.msra.mxu0 0.0
  %2904 = vmatprep.subr.mxu0 0.0
  %2905 = vmatpush2.msra.mxu0 0.0
  %2906 = vmatprep.subr.mxu0 0.0
  %2907 = vmatpush2.msra.mxu0 0.0
  %2908 = vmatprep.subr.mxu0 0.0
  %2909 = vmatpush2.msra.mxu0 0.0
  %2910 = vmatprep.subr.mxu0 0.0
  %2911 = vmatpush2.msra.mxu0 0.0
  %2912 = vmatprep.subr.mxu0 0.0
  %2913 = vmatpush2.msra.mxu0 0.0
  %2914 = vmatprep.subr.mxu0 0.0
  %2915 = vmatpush2.msra.mxu0 0.0
  %2916 = vmatprep.subr.mxu0 0.0
  %2917 = vmatpush2.msra.mxu0 0.0
  %2918 = vmatprep.subr.mxu0 0.0
  %2919 = vmatpush2.msra.mxu0 0.0
  %2920 = vmatprep.subr.mxu0 0.0
  %2921 = vmatpush2.msra.mxu0 0.0
  %2922 = vmatprep.subr.mxu0 0.0
  %2923 = vmatpush2.msra.mxu0 0.0
  %2924 = vmatprep.subr.mxu0 0.0
  %2925 = vmatpush2.msra.mxu0 0.0
  %2926 = vmatprep.subr.mxu0 0.0
  %2927 = vmatpush2.msra.mxu0 0.0
  %2928 = vmatprep.subr.mxu0 0.0
  %2929 = vmatpush2.msra.mxu0 0.0
  %2930 = vmatprep.subr.mxu0 0.0
  %2931 = vmatpush2.msra.mxu0 0.0
  %2932 = vmatprep.mubr.f32.mxu0 0.0
  %2933 = vmatmul.mubr.f32.gmra.mxu0 %v2860
  %v2934 = vpop.f32.mrf.mxu0
  %v2935 = vadd.f32 %v95, %v2934
  %v2936 = vpop.f32.mrf.mxu0
  %2937 = vmatprep.mubr.f32.mxu0 0.0
  %2938 = vmatmul.mubr.f32.gmra.mxu0 %v2863
  %v2939 = vpop.f32.mrf.mxu0
  %v2940 = vadd.f32 %v95, %v2939
  %v2941 = vpop.f32.mrf.mxu0
  %2942 = vmatprep.mubr.f32.mxu0 0.0
  %2943 = vmatmul.mubr.f32.gmra.mxu0 %v2866
  %v2944 = vpop.f32.mrf.mxu0
  %v2945 = vadd.f32 %v95, %v2944
  %v2946 = vpop.f32.mrf.mxu0
  %2947 = vdwg.mxu0
  %v2948 = vmax.f32 %v2935, 0.0
  %v2949 = vmax.f32 %v2940, 0.0
  %v2950 = vmax.f32 %v2945, 0.0
  %v2952 = vsel %vm326, %v2948, 0
  %v2955 = vsel %vm326, %v2949, 0
  %v2958 = vsel %vm326, %v2950, 0
  %2960 = vmatprep.subr.mxu0 0.0
  %2961 = vmatpush1.msra.mxu0 0.0
  %2962 = vmatprep.subr.mxu0 0.0
  %2963 = vmatpush1.msra.mxu0 0.0
  %2964 = vmatprep.subr.mxu0 0.0
  %2965 = vmatpush1.msra.mxu0 0.0
  %2966 = vmatprep.subr.mxu0 0.0
  %2967 = vmatpush1.msra.mxu0 0.0
  %2968 = vmatprep.subr.mxu0 0.0
  %2969 = vmatpush1.msra.mxu0 0.0
  %2970 = vmatprep.subr.mxu0 0.0
  %2971 = vmatpush1.msra.mxu0 0.0
  %2972 = vmatprep.subr.mxu0 0.0
  %2973 = vmatpush1.msra.mxu0 0.0
  %2974 = vmatprep.subr.mxu0 0.0
  %2975 = vmatpush1.msra.mxu0 0.0
  %2976 = vmatprep.subr.mxu0 0.0
  %2977 = vmatpush1.msra.mxu0 0.0
  %2978 = vmatprep.subr.mxu0 0.0
  %2979 = vmatpush1.msra.mxu0 0.0
  %2980 = vmatprep.subr.mxu0 0.0
  %2981 = vmatpush1.msra.mxu0 0.0
  %2982 = vmatprep.subr.mxu0 0.0
  %2983 = vmatpush1.msra.mxu0 0.0
  %2984 = vmatprep.subr.mxu0 0.0
  %2985 = vmatpush1.msra.mxu0 %v86
  %2986 = vmatprep.subr.mxu0 0.0
  %2987 = vmatpush1.msra.mxu0 %v85
  %2988 = vmatprep.subr.mxu0 0.0
  %2989 = vmatpush1.msra.mxu0 %v84
  %2990 = vmatprep.subr.mxu0 0.0
  %2991 = vmatpush1.msra.mxu0 %v83
  %2992 = vmatprep.subr.mxu0 0.0
  %2993 = vmatpush2.msra.mxu0 0.0
  %2994 = vmatprep.subr.mxu0 0.0
  %2995 = vmatpush2.msra.mxu0 0.0
  %2996 = vmatprep.subr.mxu0 0.0
  %2997 = vmatpush2.msra.mxu0 0.0
  %2998 = vmatprep.subr.mxu0 0.0
  %2999 = vmatpush2.msra.mxu0 0.0
  %3000 = vmatprep.subr.mxu0 0.0
  %3001 = vmatpush2.msra.mxu0 0.0
  %3002 = vmatprep.subr.mxu0 0.0
  %3003 = vmatpush2.msra.mxu0 0.0
  %3004 = vmatprep.subr.mxu0 0.0
  %3005 = vmatpush2.msra.mxu0 0.0
  %3006 = vmatprep.subr.mxu0 0.0
  %3007 = vmatpush2.msra.mxu0 0.0
  %3008 = vmatprep.subr.mxu0 0.0
  %3009 = vmatpush2.msra.mxu0 0.0
  %3010 = vmatprep.subr.mxu0 0.0
  %3011 = vmatpush2.msra.mxu0 0.0
  %3012 = vmatprep.subr.mxu0 0.0
  %3013 = vmatpush2.msra.mxu0 0.0
  %3014 = vmatprep.subr.mxu0 0.0
  %3015 = vmatpush2.msra.mxu0 0.0
  %3016 = vmatprep.subr.mxu0 0.0
  %3017 = vmatpush2.msra.mxu0 0.0
  %3018 = vmatprep.subr.mxu0 0.0
  %3019 = vmatpush2.msra.mxu0 0.0
  %3020 = vmatprep.subr.mxu0 0.0
  %3021 = vmatpush2.msra.mxu0 0.0
  %3022 = vmatprep.subr.mxu0 0.0
  %3023 = vmatpush2.msra.mxu0 0.0
  %3024 = vmatprep.mubr.f32.mxu0 0.0
  %3025 = vmatmul.mubr.f32.gmra.mxu0 %v2952
  %v3026 = vpop.f32.mrf.mxu0
  %v3027 = vadd.f32 %v99, %v3026
  %v3028 = vpop.f32.mrf.mxu0
  %3029 = vmatprep.mubr.f32.mxu0 0.0
  %3030 = vmatmul.mubr.f32.gmra.mxu0 %v2955
  %v3031 = vpop.f32.mrf.mxu0
  %v3032 = vadd.f32 %v99, %v3031
  %v3033 = vpop.f32.mrf.mxu0
  %3034 = vmatprep.mubr.f32.mxu0 0.0
  %3035 = vmatmul.mubr.f32.gmra.mxu0 %v2958
  %v3036 = vpop.f32.mrf.mxu0
  %v3037 = vadd.f32 %v99, %v3036
  %v3038 = vpop.f32.mrf.mxu0
  %3039 = vdwg.mxu0
  %v3040 = vadd.f32 %v2751, %v3027
  %v3041 = vadd.f32 %v2756, %v3032
  %v3042 = vadd.f32 %v2761, %v3037
  %v3043 = vmax.f32 %v3040, 0.0
  %v3044 = vmax.f32 %v3041, 0.0
  %v3045 = vmax.f32 %v3042, 0.0
  %v3047 = vsel %vm326, %v3043, 0
  %v3050 = vsel %vm326, %v3044, 0
  %v3053 = vsel %vm326, %v3045, 0
  %3055 = vmatprep.subr.mxu0 0.0
  %3056 = vmatpush1.msra.mxu0 0.0
  %3057 = vmatprep.subr.mxu0 0.0
  %3058 = vmatpush1.msra.mxu0 0.0
  %3059 = vmatprep.subr.mxu0 0.0
  %3060 = vmatpush1.msra.mxu0 0.0
  %3061 = vmatprep.subr.mxu0 0.0
  %3062 = vmatpush1.msra.mxu0 0.0
  %3063 = vmatprep.subr.mxu0 0.0
  %3064 = vmatpush1.msra.mxu0 0.0
  %3065 = vmatprep.subr.mxu0 0.0
  %3066 = vmatpush1.msra.mxu0 0.0
  %3067 = vmatprep.subr.mxu0 0.0
  %3068 = vmatpush1.msra.mxu0 0.0
  %3069 = vmatprep.subr.mxu0 0.0
  %3070 = vmatpush1.msra.mxu0 0.0
  %3071 = vmatprep.subr.mxu0 0.0
  %3072 = vmatpush1.msra.mxu0 0.0
  %3073 = vmatprep.subr.mxu0 0.0
  %3074 = vmatpush1.msra.mxu0 0.0
  %3075 = vmatprep.subr.mxu0 0.0
  %3076 = vmatpush1.msra.mxu0 0.0
  %3077 = vmatprep.subr.mxu0 0.0
  %3078 = vmatpush1.msra.mxu0 0.0
  %3079 = vmatprep.subr.mxu0 0.0
  %3080 = vmatpush1.msra.mxu0 %v57
  %3081 = vmatprep.subr.mxu0 0.0
  %3082 = vmatpush1.msra.mxu0 %v56
  %3083 = vmatprep.subr.mxu0 0.0
  %3084 = vmatpush1.msra.mxu0 %v55
  %3085 = vmatprep.subr.mxu0 0.0
  %3086 = vmatpush1.msra.mxu0 %v54
  %3087 = vmatprep.subr.mxu0 0.0
  %3088 = vmatpush2.msra.mxu0 0.0
  %3089 = vmatprep.subr.mxu0 0.0
  %3090 = vmatpush2.msra.mxu0 0.0
  %3091 = vmatprep.subr.mxu0 0.0
  %3092 = vmatpush2.msra.mxu0 0.0
  %3093 = vmatprep.subr.mxu0 0.0
  %3094 = vmatpush2.msra.mxu0 0.0
  %3095 = vmatprep.subr.mxu0 0.0
  %3096 = vmatpush2.msra.mxu0 0.0
  %3097 = vmatprep.subr.mxu0 0.0
  %3098 = vmatpush2.msra.mxu0 0.0
  %3099 = vmatprep.subr.mxu0 0.0
  %3100 = vmatpush2.msra.mxu0 0.0
  %3101 = vmatprep.subr.mxu0 0.0
  %3102 = vmatpush2.msra.mxu0 0.0
  %3103 = vmatprep.subr.mxu0 0.0
  %3104 = vmatpush2.msra.mxu0 0.0
  %3105 = vmatprep.subr.mxu0 0.0
  %3106 = vmatpush2.msra.mxu0 0.0
  %3107 = vmatprep.subr.mxu0 0.0
  %3108 = vmatpush2.msra.mxu0 0.0
  %3109 = vmatprep.subr.mxu0 0.0
  %3110 = vmatpush2.msra.mxu0 0.0
  %3111 = vmatprep.subr.mxu0 0.0
  %3112 = vmatpush2.msra.mxu0 0.0
  %3113 = vmatprep.subr.mxu0 0.0
  %3114 = vmatpush2.msra.mxu0 0.0
  %3115 = vmatprep.subr.mxu0 0.0
  %3116 = vmatpush2.msra.mxu0 0.0
  %3117 = vmatprep.subr.mxu0 0.0
  %3118 = vmatpush2.msra.mxu0 0.0
  %3119 = vmatprep.mubr.f32.mxu0 0.0
  %3120 = vmatmul.mubr.f32.gmra.mxu0 %v3047
  %v3121 = vpop.f32.mrf.mxu0
  %v3122 = vadd.f32 %v103, %v3121
  %v3123 = vpop.f32.mrf.mxu0
  %3124 = vmatprep.mubr.f32.mxu0 0.0
  %3125 = vmatmul.mubr.f32.gmra.mxu0 %v3050
  %v3126 = vpop.f32.mrf.mxu0
  %v3127 = vadd.f32 %v103, %v3126
  %v3128 = vpop.f32.mrf.mxu0
  %3129 = vmatprep.mubr.f32.mxu0 0.0
  %3130 = vmatmul.mubr.f32.gmra.mxu0 %v3053
  %v3131 = vpop.f32.mrf.mxu0
  %v3132 = vadd.f32 %v103, %v3131
  %v3133 = vpop.f32.mrf.mxu0
  %3134 = vdwg.mxu0
  %3135 = vmatprep.subr.mxu0 0.0
  %3136 = vmatpush1.msra.mxu0 0.0
  %3137 = vmatprep.subr.mxu0 0.0
  %3138 = vmatpush1.msra.mxu0 0.0
  %3139 = vmatprep.subr.mxu0 0.0
  %3140 = vmatpush1.msra.mxu0 0.0
  %3141 = vmatprep.subr.mxu0 0.0
  %3142 = vmatpush1.msra.mxu0 0.0
  %3143 = vmatprep.subr.mxu0 0.0
  %3144 = vmatpush1.msra.mxu0 0.0
  %3145 = vmatprep.subr.mxu0 0.0
  %3146 = vmatpush1.msra.mxu0 0.0
  %3147 = vmatprep.subr.mxu0 0.0
  %3148 = vmatpush1.msra.mxu0 0.0
  %3149 = vmatprep.subr.mxu0 0.0
  %3150 = vmatpush1.msra.mxu0 0.0
  %3151 = vmatprep.subr.mxu0 0.0
  %3152 = vmatpush1.msra.mxu0 0.0
  %3153 = vmatprep.subr.mxu0 0.0
  %3154 = vmatpush1.msra.mxu0 0.0
  %3155 = vmatprep.subr.mxu0 0.0
  %3156 = vmatpush1.msra.mxu0 0.0
  %3157 = vmatprep.subr.mxu0 0.0
  %3158 = vmatpush1.msra.mxu0 0.0
  %3159 = vmatprep.subr.mxu0 0.0
  %3160 = vmatpush1.msra.mxu0 %v61
  %3161 = vmatprep.subr.mxu0 0.0
  %3162 = vmatpush1.msra.mxu0 %v60
  %3163 = vmatprep.subr.mxu0 0.0
  %3164 = vmatpush1.msra.mxu0 %v59
  %3165 = vmatprep.subr.mxu0 0.0
  %3166 = vmatpush1.msra.mxu0 %v58
  %3167 = vmatprep.subr.mxu0 0.0
  %3168 = vmatpush2.msra.mxu0 0.0
  %3169 = vmatprep.subr.mxu0 0.0
  %3170 = vmatpush2.msra.mxu0 0.0
  %3171 = vmatprep.subr.mxu0 0.0
  %3172 = vmatpush2.msra.mxu0 0.0
  %3173 = vmatprep.subr.mxu0 0.0
  %3174 = vmatpush2.msra.mxu0 0.0
  %3175 = vmatprep.subr.mxu0 0.0
  %3176 = vmatpush2.msra.mxu0 0.0
  %3177 = vmatprep.subr.mxu0 0.0
  %3178 = vmatpush2.msra.mxu0 0.0
  %3179 = vmatprep.subr.mxu0 0.0
  %3180 = vmatpush2.msra.mxu0 0.0
  %3181 = vmatprep.subr.mxu0 0.0
  %3182 = vmatpush2.msra.mxu0 0.0
  %3183 = vmatprep.subr.mxu0 0.0
  %3184 = vmatpush2.msra.mxu0 0.0
  %3185 = vmatprep.subr.mxu0 0.0
  %3186 = vmatpush2.msra.mxu0 0.0
  %3187 = vmatprep.subr.mxu0 0.0
  %3188 = vmatpush2.msra.mxu0 0.0
  %3189 = vmatprep.subr.mxu0 0.0
  %3190 = vmatpush2.msra.mxu0 0.0
  %3191 = vmatprep.subr.mxu0 0.0
  %3192 = vmatpush2.msra.mxu0 0.0
  %3193 = vmatprep.subr.mxu0 0.0
  %3194 = vmatpush2.msra.mxu0 0.0
  %3195 = vmatprep.subr.mxu0 0.0
  %3196 = vmatpush2.msra.mxu0 0.0
  %3197 = vmatprep.subr.mxu0 0.0
  %3198 = vmatpush2.msra.mxu0 0.0
  %3199 = vmatprep.mubr.f32.mxu0 0.0
  %3200 = vmatmul.mubr.f32.gmra.mxu0 %v3047
  %v3201 = vpop.f32.mrf.mxu0
  %v3202 = vadd.f32 %v107, %v3201
  %v3203 = vpop.f32.mrf.mxu0
  %3204 = vmatprep.mubr.f32.mxu0 0.0
  %3205 = vmatmul.mubr.f32.gmra.mxu0 %v3050
  %v3206 = vpop.f32.mrf.mxu0
  %v3207 = vadd.f32 %v107, %v3206
  %v3208 = vpop.f32.mrf.mxu0
  %3209 = vmatprep.mubr.f32.mxu0 0.0
  %3210 = vmatmul.mubr.f32.gmra.mxu0 %v3053
  %v3211 = vpop.f32.mrf.mxu0
  %v3212 = vadd.f32 %v107, %v3211
  %v3213 = vpop.f32.mrf.mxu0
  %3214 = vdwg.mxu0
  %3215 = vmatprep.subr.mxu0 0.0
  %3216 = vmatpush1.msra.mxu0 0.0
  %3217 = vmatprep.subr.mxu0 0.0
  %3218 = vmatpush1.msra.mxu0 0.0
  %3219 = vmatprep.subr.mxu0 0.0
  %3220 = vmatpush1.msra.mxu0 0.0
  %3221 = vmatprep.subr.mxu0 0.0
  %3222 = vmatpush1.msra.mxu0 0.0
  %3223 = vmatprep.subr.mxu0 0.0
  %3224 = vmatpush1.msra.mxu0 0.0
  %3225 = vmatprep.subr.mxu0 0.0
  %3226 = vmatpush1.msra.mxu0 0.0
  %3227 = vmatprep.subr.mxu0 0.0
  %3228 = vmatpush1.msra.mxu0 0.0
  %3229 = vmatprep.subr.mxu0 0.0
  %3230 = vmatpush1.msra.mxu0 0.0
  %3231 = vmatprep.subr.mxu0 0.0
  %3232 = vmatpush1.msra.mxu0 0.0
  %3233 = vmatprep.subr.mxu0 0.0
  %3234 = vmatpush1.msra.mxu0 0.0
  %3235 = vmatprep.subr.mxu0 0.0
  %3236 = vmatpush1.msra.mxu0 0.0
  %3237 = vmatprep.subr.mxu0 0.0
  %3238 = vmatpush1.msra.mxu0 0.0
  %3239 = vmatprep.subr.mxu0 0.0
  %3240 = vmatpush1.msra.mxu0 0.0
  %3241 = vmatprep.subr.mxu0 0.0
  %3242 = vmatpush1.msra.mxu0 %v3212
  %3243 = vmatprep.subr.mxu0 0.0
  %3244 = vmatpush1.msra.mxu0 %v3207
  %3245 = vmatprep.subr.mxu0 0.0
  %3246 = vmatpush1.msra.mxu0 %v3202
  %3247 = vmatprep.subr.mxu0 0.0
  %3248 = vmatpush2.msra.mxu0 0.0
  %3249 = vmatprep.subr.mxu0 0.0
  %3250 = vmatpush2.msra.mxu0 0.0
  %3251 = vmatprep.subr.mxu0 0.0
  %3252 = vmatpush2.msra.mxu0 0.0
  %3253 = vmatprep.subr.mxu0 0.0
  %3254 = vmatpush2.msra.mxu0 0.0
  %3255 = vmatprep.subr.mxu0 0.0
  %3256 = vmatpush2.msra.mxu0 0.0
  %3257 = vmatprep.subr.mxu0 0.0
  %3258 = vmatpush2.msra.mxu0 0.0
  %3259 = vmatprep.subr.mxu0 0.0
  %3260 = vmatpush2.msra.mxu0 0.0
  %3261 = vmatprep.subr.mxu0 0.0
  %3262 = vmatpush2.msra.mxu0 0.0
  %3263 = vmatprep.subr.mxu0 0.0
  %3264 = vmatpush2.msra.mxu0 0.0
  %3265 = vmatprep.subr.mxu0 0.0
  %3266 = vmatpush2.msra.mxu0 0.0
  %3267 = vmatprep.subr.mxu0 0.0
  %3268 = vmatpush2.msra.mxu0 0.0
  %3269 = vmatprep.subr.mxu0 0.0
  %3270 = vmatpush2.msra.mxu0 0.0
  %3271 = vmatprep.subr.mxu0 0.0
  %3272 = vmatpush2.msra.mxu0 0.0
  %3273 = vmatprep.subr.mxu0 0.0
  %3274 = vmatpush2.msra.mxu0 0.0
  %3275 = vmatprep.subr.mxu0 0.0
  %3276 = vmatpush2.msra.mxu0 0.0
  %3277 = vmatprep.subr.mxu0 0.0
  %3278 = vmatpush2.msra.mxu0 0.0
  %3279 = vmatprep.mubr.f32.mxu0 0.0
  %3280 = vmatmul.mubr.f32.gmra.mxu0 %v884
  %v3281 = vpop.f32.mrf.mxu0
  %v3282 = vadd.f32 0.0, %v3281
  %v3283 = vpop.f32.mrf.mxu0
  %3284 = vmatprep.mubr.f32.mxu0 0.0
  %3285 = vmatmul.mubr.f32.gmra.mxu0 %v887
  %v3286 = vpop.f32.mrf.mxu0
  %v3287 = vadd.f32 0.0, %v3286
  %v3288 = vpop.f32.mrf.mxu0
  %3289 = vmatprep.mubr.f32.mxu0 0.0
  %3290 = vmatmul.mubr.f32.gmra.mxu0 %v890
  %v3291 = vpop.f32.mrf.mxu0
  %v3292 = vadd.f32 0.0, %v3291
  %v3293 = vpop.f32.mrf.mxu0
  %3294 = vdwg.mxu0
  %3295 = vmatprep.subr.mxu0 0.0
  %3296 = vmatpush1.msra.mxu0 0.0
  %3297 = vmatprep.subr.mxu0 0.0
  %3298 = vmatpush1.msra.mxu0 0.0
  %3299 = vmatprep.subr.mxu0 0.0
  %3300 = vmatpush1.msra.mxu0 0.0
  %3301 = vmatprep.subr.mxu0 0.0
  %3302 = vmatpush1.msra.mxu0 0.0
  %3303 = vmatprep.subr.mxu0 0.0
  %3304 = vmatpush1.msra.mxu0 0.0
  %3305 = vmatprep.subr.mxu0 0.0
  %3306 = vmatpush1.msra.mxu0 0.0
  %3307 = vmatprep.subr.mxu0 0.0
  %3308 = vmatpush1.msra.mxu0 0.0
  %3309 = vmatprep.subr.mxu0 0.0
  %3310 = vmatpush1.msra.mxu0 0.0
  %3311 = vmatprep.subr.mxu0 0.0
  %3312 = vmatpush1.msra.mxu0 0.0
  %3313 = vmatprep.subr.mxu0 0.0
  %3314 = vmatpush1.msra.mxu0 0.0
  %3315 = vmatprep.subr.mxu0 0.0
  %3316 = vmatpush1.msra.mxu0 0.0
  %3317 = vmatprep.subr.mxu0 0.0
  %3318 = vmatpush1.msra.mxu0 0.0
  %3319 = vmatprep.subr.mxu0 0.0
  %3320 = vmatpush1.msra.mxu0 0.0
  %3321 = vmatprep.subr.mxu0 0.0
  %3322 = vmatpush1.msra.mxu0 %v3132
  %3323 = vmatprep.subr.mxu0 0.0
  %3324 = vmatpush1.msra.mxu0 %v3127
  %3325 = vmatprep.subr.mxu0 0.0
  %3326 = vmatpush1.msra.mxu0 %v3122
  %3327 = vmatprep.subr.mxu0 0.0
  %3328 = vmatpush2.msra.mxu0 0.0
  %3329 = vmatprep.subr.mxu0 0.0
  %3330 = vmatpush2.msra.mxu0 0.0
  %3331 = vmatprep.subr.mxu0 0.0
  %3332 = vmatpush2.msra.mxu0 0.0
  %3333 = vmatprep.subr.mxu0 0.0
  %3334 = vmatpush2.msra.mxu0 0.0
  %3335 = vmatprep.subr.mxu0 0.0
  %3336 = vmatpush2.msra.mxu0 0.0
  %3337 = vmatprep.subr.mxu0 0.0
  %3338 = vmatpush2.msra.mxu0 0.0
  %3339 = vmatprep.subr.mxu0 0.0
  %3340 = vmatpush2.msra.mxu0 0.0
  %3341 = vmatprep.subr.mxu0 0.0
  %3342 = vmatpush2.msra.mxu0 0.0
  %3343 = vmatprep.subr.mxu0 0.0
  %3344 = vmatpush2.msra.mxu0 0.0
  %3345 = vmatprep.subr.mxu0 0.0
  %3346 = vmatpush2.msra.mxu0 0.0
  %3347 = vmatprep.subr.mxu0 0.0
  %3348 = vmatpush2.msra.mxu0 0.0
  %3349 = vmatprep.subr.mxu0 0.0
  %3350 = vmatpush2.msra.mxu0 0.0
  %3351 = vmatprep.subr.mxu0 0.0
  %3352 = vmatpush2.msra.mxu0 0.0
  %3353 = vmatprep.subr.mxu0 0.0
  %3354 = vmatpush2.msra.mxu0 0.0
  %3355 = vmatprep.subr.mxu0 0.0
  %3356 = vmatpush2.msra.mxu0 0.0
  %3357 = vmatprep.subr.mxu0 0.0
  %3358 = vmatpush2.msra.mxu0 0.0
  %3359 = vmatprep.mubr.f32.mxu0 0.0
  %3360 = vmatmul.mubr.f32.gmra.mxu0 %v973
  %v3361 = vpop.f32.mrf.mxu0
  %v3362 = vadd.f32 %v3282, %v3361
  %v3363 = vpop.f32.mrf.mxu0
  %3364 = vmatprep.mubr.f32.mxu0 0.0
  %3365 = vmatmul.mubr.f32.gmra.mxu0 %v976
  %v3366 = vpop.f32.mrf.mxu0
  %v3367 = vadd.f32 %v3287, %v3366
  %v3368 = vpop.f32.mrf.mxu0
  %3369 = vmatprep.mubr.f32.mxu0 0.0
  %3370 = vmatmul.mubr.f32.gmra.mxu0 %v979
  %v3371 = vpop.f32.mrf.mxu0
  %v3372 = vadd.f32 %v3292, %v3371
  %v3373 = vpop.f32.mrf.mxu0
  %3374 = vdwg.mxu0
  %v3376 = vsel %vm120, %v3362, 0
  %v3379 = vsel %vm120, %v3367, 0
  %v3382 = vsel %vm120, %v3372, 0
  %3384 = vmatprep.subr.mxu0 0.0
  %3385 = vmatpush1.msra.mxu0 0.0
  %3386 = vmatprep.subr.mxu0 0.0
  %3387 = vmatpush1.msra.mxu0 0.0
  %3388 = vmatprep.subr.mxu0 0.0
  %3389 = vmatpush1.msra.mxu0 0.0
  %3390 = vmatprep.subr.mxu0 0.0
  %3391 = vmatpush1.msra.mxu0 0.0
  %3392 = vmatprep.subr.mxu0 0.0
  %3393 = vmatpush1.msra.mxu0 0.0
  %3394 = vmatprep.subr.mxu0 0.0
  %3395 = vmatpush1.msra.mxu0 0.0
  %3396 = vmatprep.subr.mxu0 0.0
  %3397 = vmatpush1.msra.mxu0 0.0
  %3398 = vmatprep.subr.mxu0 0.0
  %3399 = vmatpush1.msra.mxu0 0.0
  %3400 = vmatprep.subr.mxu0 0.0
  %3401 = vmatpush1.msra.mxu0 0.0
  %3402 = vmatprep.subr.mxu0 0.0
  %3403 = vmatpush1.msra.mxu0 0.0
  %3404 = vmatprep.subr.mxu0 0.0
  %3405 = vmatpush1.msra.mxu0 0.0
  %3406 = vmatprep.subr.mxu0 0.0
  %3407 = vmatpush1.msra.mxu0 0.0
  %3408 = vmatprep.subr.mxu0 0.0
  %3409 = vmatpush1.msra.mxu0 0.0
  %3410 = vmatprep.subr.mxu0 0.0
  %3411 = vmatpush1.msra.mxu0 0.0
  %3412 = vmatprep.subr.mxu0 0.0
  %3413 = vmatpush1.msra.mxu0 %v51
  %3414 = vmatprep.subr.mxu0 0.0
  %3415 = vmatpush1.msra.mxu0 %v50
  %3416 = vmatprep.subr.mxu0 0.0
  %3417 = vmatpush2.msra.mxu0 0.0
  %3418 = vmatprep.subr.mxu0 0.0
  %3419 = vmatpush2.msra.mxu0 0.0
  %3420 = vmatprep.subr.mxu0 0.0
  %3421 = vmatpush2.msra.mxu0 0.0
  %3422 = vmatprep.subr.mxu0 0.0
  %3423 = vmatpush2.msra.mxu0 0.0
  %3424 = vmatprep.subr.mxu0 0.0
  %3425 = vmatpush2.msra.mxu0 0.0
  %3426 = vmatprep.subr.mxu0 0.0
  %3427 = vmatpush2.msra.mxu0 0.0
  %3428 = vmatprep.subr.mxu0 0.0
  %3429 = vmatpush2.msra.mxu0 0.0
  %3430 = vmatprep.subr.mxu0 0.0
  %3431 = vmatpush2.msra.mxu0 0.0
  %3432 = vmatprep.subr.mxu0 0.0
  %3433 = vmatpush2.msra.mxu0 0.0
  %3434 = vmatprep.subr.mxu0 0.0
  %3435 = vmatpush2.msra.mxu0 0.0
  %3436 = vmatprep.subr.mxu0 0.0
  %3437 = vmatpush2.msra.mxu0 0.0
  %3438 = vmatprep.subr.mxu0 0.0
  %3439 = vmatpush2.msra.mxu0 0.0
  %3440 = vmatprep.subr.mxu0 0.0
  %3441 = vmatpush2.msra.mxu0 0.0
  %3442 = vmatprep.subr.mxu0 0.0
  %3443 = vmatpush2.msra.mxu0 0.0
  %3444 = vmatprep.subr.mxu0 0.0
  %3445 = vmatpush2.msra.mxu0 0.0
  %3446 = vmatprep.subr.mxu0 0.0
  %3447 = vmatpush2.msra.mxu0 0.0
  %3448 = vmatprep.mubr.f32.mxu0 0.0
  %3449 = vmatmul.mubr.f32.gmra.mxu0 %v3376
  %v3450 = vpop.f32.mrf.mxu0
  %v3451 = vadd.f32 0.0, %v3450
  %v3452 = vpop.f32.mrf.mxu0
  %3453 = vmatprep.mubr.f32.mxu0 0.0
  %3454 = vmatmul.mubr.f32.gmra.mxu0 %v3379
  %v3455 = vpop.f32.mrf.mxu0
  %v3456 = vadd.f32 0.0, %v3455
  %v3457 = vpop.f32.mrf.mxu0
  %3458 = vmatprep.mubr.f32.mxu0 0.0
  %3459 = vmatmul.mubr.f32.gmra.mxu0 %v3382
  %v3460 = vpop.f32.mrf.mxu0
  %v3461 = vadd.f32 0.0, %v3460
  %v3462 = vpop.f32.mrf.mxu0
  %3463 = vdwg.mxu0
  %v3465 = vsel %vm120, %v2478, 0
  %v3468 = vsel %vm120, %v2483, 0
  %v3471 = vsel %vm120, %v2488, 0
  %3473 = vmatprep.subr.mxu0 0.0
  %3474 = vmatpush1.msra.mxu0 0.0
  %3475 = vmatprep.subr.mxu0 0.0
  %3476 = vmatpush1.msra.mxu0 0.0
  %3477 = vmatprep.subr.mxu0 0.0
  %3478 = vmatpush1.msra.mxu0 0.0
  %3479 = vmatprep.subr.mxu0 0.0
  %3480 = vmatpush1.msra.mxu0 0.0
  %3481 = vmatprep.subr.mxu0 0.0
  %3482 = vmatpush1.msra.mxu0 0.0
  %3483 = vmatprep.subr.mxu0 0.0
  %3484 = vmatpush1.msra.mxu0 0.0
  %3485 = vmatprep.subr.mxu0 0.0
  %3486 = vmatpush1.msra.mxu0 0.0
  %3487 = vmatprep.subr.mxu0 0.0
  %3488 = vmatpush1.msra.mxu0 0.0
  %3489 = vmatprep.subr.mxu0 0.0
  %3490 = vmatpush1.msra.mxu0 0.0
  %3491 = vmatprep.subr.mxu0 0.0
  %3492 = vmatpush1.msra.mxu0 0.0
  %3493 = vmatprep.subr.mxu0 0.0
  %3494 = vmatpush1.msra.mxu0 0.0
  %3495 = vmatprep.subr.mxu0 0.0
  %3496 = vmatpush1.msra.mxu0 0.0
  %3497 = vmatprep.subr.mxu0 0.0
  %3498 = vmatpush1.msra.mxu0 0.0
  %3499 = vmatprep.subr.mxu0 0.0
  %3500 = vmatpush1.msra.mxu0 0.0
  %3501 = vmatprep.subr.mxu0 0.0
  %3502 = vmatpush1.msra.mxu0 %v49
  %3503 = vmatprep.subr.mxu0 0.0
  %3504 = vmatpush1.msra.mxu0 %v48
  %3505 = vmatprep.subr.mxu0 0.0
  %3506 = vmatpush2.msra.mxu0 0.0
  %3507 = vmatprep.subr.mxu0 0.0
  %3508 = vmatpush2.msra.mxu0 0.0
  %3509 = vmatprep.subr.mxu0 0.0
  %3510 = vmatpush2.msra.mxu0 0.0
  %3511 = vmatprep.subr.mxu0 0.0
  %3512 = vmatpush2.msra.mxu0 0.0
  %3513 = vmatprep.subr.mxu0 0.0
  %3514 = vmatpush2.msra.mxu0 0.0
  %3515 = vmatprep.subr.mxu0 0.0
  %3516 = vmatpush2.msra.mxu0 0.0
  %3517 = vmatprep.subr.mxu0 0.0
  %3518 = vmatpush2.msra.mxu0 0.0
  %3519 = vmatprep.subr.mxu0 0.0
  %3520 = vmatpush2.msra.mxu0 0.0
  %3521 = vmatprep.subr.mxu0 0.0
  %3522 = vmatpush2.msra.mxu0 0.0
  %3523 = vmatprep.subr.mxu0 0.0
  %3524 = vmatpush2.msra.mxu0 0.0
  %3525 = vmatprep.subr.mxu0 0.0
  %3526 = vmatpush2.msra.mxu0 0.0
  %3527 = vmatprep.subr.mxu0 0.0
  %3528 = vmatpush2.msra.mxu0 0.0
  %3529 = vmatprep.subr.mxu0 0.0
  %3530 = vmatpush2.msra.mxu0 0.0
  %3531 = vmatprep.subr.mxu0 0.0
  %3532 = vmatpush2.msra.mxu0 0.0
  %3533 = vmatprep.subr.mxu0 0.0
  %3534 = vmatpush2.msra.mxu0 0.0
  %3535 = vmatprep.subr.mxu0 0.0
  %3536 = vmatpush2.msra.mxu0 0.0
  %3537 = vmatprep.mubr.f32.mxu0 0.0
  %3538 = vmatmul.mubr.f32.gmra.mxu0 %v3465
  %v3539 = vpop.f32.mrf.mxu0
  %v3540 = vadd.f32 %v3451, %v3539
  %v3541 = vpop.f32.mrf.mxu0
  %3542 = vmatprep.mubr.f32.mxu0 0.0
  %3543 = vmatmul.mubr.f32.gmra.mxu0 %v3468
  %v3544 = vpop.f32.mrf.mxu0
  %v3545 = vadd.f32 %v3456, %v3544
  %v3546 = vpop.f32.mrf.mxu0
  %3547 = vmatprep.mubr.f32.mxu0 0.0
  %3548 = vmatmul.mubr.f32.gmra.mxu0 %v3471
  %v3549 = vpop.f32.mrf.mxu0
  %v3550 = vadd.f32 %v3461, %v3549
  %v3551 = vpop.f32.mrf.mxu0
  %3552 = vdwg.mxu0
  %v3553 = vadd.f32 %v3540, %v115
  %v3554 = vadd.f32 %v3545, %v115
  %v3555 = vadd.f32 %v3550, %v115
  %v3556 = vmax.f32 %v3553, 0.0
  %v3557 = vmax.f32 %v3554, 0.0
  %v3558 = vmax.f32 %v3555, 0.0
  %v3560 = vsel %vm120, %v3556, 0
  %v3563 = vsel %vm120, %v3557, 0
  %v3566 = vsel %vm120, %v3558, 0
  %3568 = vmatprep.subr.mxu0 0.0
  %3569 = vmatpush1.msra.mxu0 0.0
  %3570 = vmatprep.subr.mxu0 0.0
  %3571 = vmatpush1.msra.mxu0 0.0
  %3572 = vmatprep.subr.mxu0 0.0
  %3573 = vmatpush1.msra.mxu0 0.0
  %3574 = vmatprep.subr.mxu0 0.0
  %3575 = vmatpush1.msra.mxu0 0.0
  %3576 = vmatprep.subr.mxu0 0.0
  %3577 = vmatpush1.msra.mxu0 0.0
  %3578 = vmatprep.subr.mxu0 0.0
  %3579 = vmatpush1.msra.mxu0 0.0
  %3580 = vmatprep.subr.mxu0 0.0
  %3581 = vmatpush1.msra.mxu0 0.0
  %3582 = vmatprep.subr.mxu0 0.0
  %3583 = vmatpush1.msra.mxu0 0.0
  %3584 = vmatprep.subr.mxu0 0.0
  %3585 = vmatpush1.msra.mxu0 0.0
  %3586 = vmatprep.subr.mxu0 0.0
  %3587 = vmatpush1.msra.mxu0 0.0
  %3588 = vmatprep.subr.mxu0 0.0
  %3589 = vmatpush1.msra.mxu0 0.0
  %3590 = vmatprep.subr.mxu0 0.0
  %3591 = vmatpush1.msra.mxu0 0.0
  %3592 = vmatprep.subr.mxu0 0.0
  %3593 = vmatpush1.msra.mxu0 0.0
  %3594 = vmatprep.subr.mxu0 0.0
  %3595 = vmatpush1.msra.mxu0 0.0
  %3596 = vmatprep.subr.mxu0 0.0
  %3597 = vmatpush1.msra.mxu0 %v53
  %3598 = vmatprep.subr.mxu0 0.0
  %3599 = vmatpush1.msra.mxu0 %v52
  %3600 = vmatprep.subr.mxu0 0.0
  %3601 = vmatpush2.msra.mxu0 0.0
  %3602 = vmatprep.subr.mxu0 0.0
  %3603 = vmatpush2.msra.mxu0 0.0
  %3604 = vmatprep.subr.mxu0 0.0
  %3605 = vmatpush2.msra.mxu0 0.0
  %3606 = vmatprep.subr.mxu0 0.0
  %3607 = vmatpush2.msra.mxu0 0.0
  %3608 = vmatprep.subr.mxu0 0.0
  %3609 = vmatpush2.msra.mxu0 0.0
  %3610 = vmatprep.subr.mxu0 0.0
  %3611 = vmatpush2.msra.mxu0 0.0
  %3612 = vmatprep.subr.mxu0 0.0
  %3613 = vmatpush2.msra.mxu0 0.0
  %3614 = vmatprep.subr.mxu0 0.0
  %3615 = vmatpush2.msra.mxu0 0.0
  %3616 = vmatprep.subr.mxu0 0.0
  %3617 = vmatpush2.msra.mxu0 0.0
  %3618 = vmatprep.subr.mxu0 0.0
  %3619 = vmatpush2.msra.mxu0 0.0
  %3620 = vmatprep.subr.mxu0 0.0
  %3621 = vmatpush2.msra.mxu0 0.0
  %3622 = vmatprep.subr.mxu0 0.0
  %3623 = vmatpush2.msra.mxu0 0.0
  %3624 = vmatprep.subr.mxu0 0.0
  %3625 = vmatpush2.msra.mxu0 0.0
  %3626 = vmatprep.subr.mxu0 0.0
  %3627 = vmatpush2.msra.mxu0 0.0
  %3628 = vmatprep.subr.mxu0 0.0
  %3629 = vmatpush2.msra.mxu0 0.0
  %3630 = vmatprep.subr.mxu0 0.0
  %3631 = vmatpush2.msra.mxu0 0.0
  %3632 = vmatprep.mubr.f32.mxu0 0.0
  %3633 = vmatmul.mubr.f32.gmra.mxu0 %v3560
  %v3634 = vpop.f32.mrf.mxu0
  %v3635 = vadd.f32 %v119, %v3634
  %v3636 = vpop.f32.mrf.mxu0
  %3637 = vmatprep.mubr.f32.mxu0 0.0
  %3638 = vmatmul.mubr.f32.gmra.mxu0 %v3563
  %v3639 = vpop.f32.mrf.mxu0
  %v3640 = vadd.f32 %v119, %v3639
  %v3641 = vpop.f32.mrf.mxu0
  %3642 = vmatprep.mubr.f32.mxu0 0.0
  %3643 = vmatmul.mubr.f32.gmra.mxu0 %v3566
  %v3644 = vpop.f32.mrf.mxu0
  %v3645 = vadd.f32 %v119, %v3644
  %v3646 = vpop.f32.mrf.mxu0
  %3647 = vdwg.mxu0
  %3648 = vmatprep.subr.mxu0 0.0
  %3649 = vmatpush1.msra.mxu0 0.0
  %3650 = vmatprep.subr.mxu0 0.0
  %3651 = vmatpush1.msra.mxu0 0.0
  %3652 = vmatprep.subr.mxu0 0.0
  %3653 = vmatpush1.msra.mxu0 0.0
  %3654 = vmatprep.subr.mxu0 0.0
  %3655 = vmatpush1.msra.mxu0 0.0
  %3656 = vmatprep.subr.mxu0 0.0
  %3657 = vmatpush1.msra.mxu0 0.0
  %3658 = vmatprep.subr.mxu0 0.0
  %3659 = vmatpush1.msra.mxu0 0.0
  %3660 = vmatprep.subr.mxu0 0.0
  %3661 = vmatpush1.msra.mxu0 0.0
  %3662 = vmatprep.subr.mxu0 0.0
  %3663 = vmatpush1.msra.mxu0 0.0
  %3664 = vmatprep.subr.mxu0 0.0
  %3665 = vmatpush1.msra.mxu0 0.0
  %3666 = vmatprep.subr.mxu0 0.0
  %3667 = vmatpush1.msra.mxu0 0.0
  %3668 = vmatprep.subr.mxu0 0.0
  %3669 = vmatpush1.msra.mxu0 0.0
  %3670 = vmatprep.subr.mxu0 0.0
  %3671 = vmatpush1.msra.mxu0 0.0
  %3672 = vmatprep.subr.mxu0 0.0
  %3673 = vmatpush1.msra.mxu0 0.0
  %3674 = vmatprep.subr.mxu0 0.0
  %3675 = vmatpush1.msra.mxu0 %v3645
  %3676 = vmatprep.subr.mxu0 0.0
  %3677 = vmatpush1.msra.mxu0 %v3640
  %3678 = vmatprep.subr.mxu0 0.0
  %3679 = vmatpush1.msra.mxu0 %v3635
  %3680 = vmatprep.subr.mxu0 0.0
  %3681 = vmatpush2.msra.mxu0 0.0
  %3682 = vmatprep.subr.mxu0 0.0
  %3683 = vmatpush2.msra.mxu0 0.0
  %3684 = vmatprep.subr.mxu0 0.0
  %3685 = vmatpush2.msra.mxu0 0.0
  %3686 = vmatprep.subr.mxu0 0.0
  %3687 = vmatpush2.msra.mxu0 0.0
  %3688 = vmatprep.subr.mxu0 0.0
  %3689 = vmatpush2.msra.mxu0 0.0
  %3690 = vmatprep.subr.mxu0 0.0
  %3691 = vmatpush2.msra.mxu0 0.0
  %3692 = vmatprep.subr.mxu0 0.0
  %3693 = vmatpush2.msra.mxu0 0.0
  %3694 = vmatprep.subr.mxu0 0.0
  %3695 = vmatpush2.msra.mxu0 0.0
  %3696 = vmatprep.subr.mxu0 0.0
  %3697 = vmatpush2.msra.mxu0 0.0
  %3698 = vmatprep.subr.mxu0 0.0
  %3699 = vmatpush2.msra.mxu0 0.0
  %3700 = vmatprep.subr.mxu0 0.0
  %3701 = vmatpush2.msra.mxu0 0.0
  %3702 = vmatprep.subr.mxu0 0.0
  %3703 = vmatpush2.msra.mxu0 0.0
  %3704 = vmatprep.subr.mxu0 0.0
  %3705 = vmatpush2.msra.mxu0 0.0
  %3706 = vmatprep.subr.mxu0 0.0
  %3707 = vmatpush2.msra.mxu0 0.0
  %3708 = vmatprep.subr.mxu0 0.0
  %3709 = vmatpush2.msra.mxu0 0.0
  %3710 = vmatprep.subr.mxu0 0.0
  %3711 = vmatpush2.msra.mxu0 0.0
  %3712 = vmatprep.mubr.f32.mxu0 0.0
  %3713 = vmatmul.mubr.f32.gmra.mxu0 %v418
  %v3714 = vpop.f32.mrf.mxu0
  %v3715 = vadd.f32 0.0, %v3714
  %v3716 = vpop.f32.mrf.mxu0
  %3717 = vmatprep.mubr.f32.mxu0 0.0
  %3718 = vmatmul.mubr.f32.gmra.mxu0 %v421
  %v3719 = vpop.f32.mrf.mxu0
  %v3720 = vadd.f32 0.0, %v3719
  %v3721 = vpop.f32.mrf.mxu0
  %3722 = vmatprep.mubr.f32.mxu0 0.0
  %3723 = vmatmul.mubr.f32.gmra.mxu0 %v424
  %v3724 = vpop.f32.mrf.mxu0
  %v3725 = vadd.f32 0.0, %v3724
  %v3726 = vpop.f32.mrf.mxu0
  %3727 = vmatprep.mubr.f32.mxu0 0.0
  %3728 = vmatmul.mubr.f32.gmra.mxu0 %v427
  %v3729 = vpop.f32.mrf.mxu0
  %v3730 = vadd.f32 0.0, %v3729
  %v3731 = vpop.f32.mrf.mxu0
  %3732 = vmatprep.mubr.f32.mxu0 0.0
  %3733 = vmatmul.mubr.f32.gmra.mxu0 %v430
  %v3734 = vpop.f32.mrf.mxu0
  %v3735 = vadd.f32 0.0, %v3734
  %v3736 = vpop.f32.mrf.mxu0
  %3737 = vmatprep.mubr.f32.mxu0 0.0
  %3738 = vmatmul.mubr.f32.gmra.mxu0 %v433
  %v3739 = vpop.f32.mrf.mxu0
  %v3740 = vadd.f32 0.0, %v3739
  %v3741 = vpop.f32.mrf.mxu0
  %3742 = vdwg.mxu0
  %v3744 = vsel %vm120, %v3730, 0
  %v3747 = vsel %vm120, %v3735, 0
  %v3750 = vsel %vm120, %v3740, 0
  %3752 = vmatprep.subr.mxu0 0.0
  %3753 = vmatpush1.msra.mxu0 0.0
  %3754 = vmatprep.subr.mxu0 0.0
  %3755 = vmatpush1.msra.mxu0 0.0
  %3756 = vmatprep.subr.mxu0 0.0
  %3757 = vmatpush1.msra.mxu0 0.0
  %3758 = vmatprep.subr.mxu0 0.0
  %3759 = vmatpush1.msra.mxu0 0.0
  %3760 = vmatprep.subr.mxu0 0.0
  %3761 = vmatpush1.msra.mxu0 0.0
  %3762 = vmatprep.subr.mxu0 0.0
  %3763 = vmatpush1.msra.mxu0 0.0
  %3764 = vmatprep.subr.mxu0 0.0
  %3765 = vmatpush1.msra.mxu0 0.0
  %3766 = vmatprep.subr.mxu0 0.0
  %3767 = vmatpush1.msra.mxu0 0.0
  %3768 = vmatprep.subr.mxu0 0.0
  %3769 = vmatpush1.msra.mxu0 0.0
  %3770 = vmatprep.subr.mxu0 0.0
  %3771 = vmatpush1.msra.mxu0 0.0
  %3772 = vmatprep.subr.mxu0 0.0
  %3773 = vmatpush1.msra.mxu0 0.0
  %3774 = vmatprep.subr.mxu0 0.0
  %3775 = vmatpush1.msra.mxu0 0.0
  %3776 = vmatprep.subr.mxu0 0.0
  %3777 = vmatpush1.msra.mxu0 0.0
  %3778 = vmatprep.subr.mxu0 0.0
  %3779 = vmatpush1.msra.mxu0 0.0
  %3780 = vmatprep.subr.mxu0 0.0
  %3781 = vmatpush1.msra.mxu0 %v82
  %3782 = vmatprep.subr.mxu0 0.0
  %3783 = vmatpush1.msra.mxu0 %v81
  %3784 = vmatprep.subr.mxu0 0.0
  %3785 = vmatpush2.msra.mxu0 0.0
  %3786 = vmatprep.subr.mxu0 0.0
  %3787 = vmatpush2.msra.mxu0 0.0
  %3788 = vmatprep.subr.mxu0 0.0
  %3789 = vmatpush2.msra.mxu0 0.0
  %3790 = vmatprep.subr.mxu0 0.0
  %3791 = vmatpush2.msra.mxu0 0.0
  %3792 = vmatprep.subr.mxu0 0.0
  %3793 = vmatpush2.msra.mxu0 0.0
  %3794 = vmatprep.subr.mxu0 0.0
  %3795 = vmatpush2.msra.mxu0 0.0
  %3796 = vmatprep.subr.mxu0 0.0
  %3797 = vmatpush2.msra.mxu0 0.0
  %3798 = vmatprep.subr.mxu0 0.0
  %3799 = vmatpush2.msra.mxu0 0.0
  %3800 = vmatprep.subr.mxu0 0.0
  %3801 = vmatpush2.msra.mxu0 0.0
  %3802 = vmatprep.subr.mxu0 0.0
  %3803 = vmatpush2.msra.mxu0 0.0
  %3804 = vmatprep.subr.mxu0 0.0
  %3805 = vmatpush2.msra.mxu0 0.0
  %3806 = vmatprep.subr.mxu0 0.0
  %3807 = vmatpush2.msra.mxu0 0.0
  %3808 = vmatprep.subr.mxu0 0.0
  %3809 = vmatpush2.msra.mxu0 0.0
  %3810 = vmatprep.subr.mxu0 0.0
  %3811 = vmatpush2.msra.mxu0 0.0
  %3812 = vmatprep.subr.mxu0 0.0
  %3813 = vmatpush2.msra.mxu0 0.0
  %3814 = vmatprep.subr.mxu0 0.0
  %3815 = vmatpush2.msra.mxu0 0.0
  %3816 = vmatprep.mubr.f32.mxu0 0.0
  %3817 = vmatmul.mubr.f32.gmra.mxu0 %v3744
  %v3818 = vpop.f32.mrf.mxu0
  %v3819 = vadd.f32 0.0, %v3818
  %v3820 = vpop.f32.mrf.mxu0
  %3821 = vmatprep.mubr.f32.mxu0 0.0
  %3822 = vmatmul.mubr.f32.gmra.mxu0 %v3747
  %v3823 = vpop.f32.mrf.mxu0
  %v3824 = vadd.f32 0.0, %v3823
  %v3825 = vpop.f32.mrf.mxu0
  %3826 = vmatprep.mubr.f32.mxu0 0.0
  %3827 = vmatmul.mubr.f32.gmra.mxu0 %v3750
  %v3828 = vpop.f32.mrf.mxu0
  %v3829 = vadd.f32 0.0, %v3828
  %v3830 = vpop.f32.mrf.mxu0
  %3831 = vdwg.mxu0
  %v3833 = vsel %vm120, %v3715, 0
  %v3836 = vsel %vm120, %v3720, 0
  %v3839 = vsel %vm120, %v3725, 0
  %3841 = vmatprep.subr.mxu0 0.0
  %3842 = vmatpush1.msra.mxu0 0.0
  %3843 = vmatprep.subr.mxu0 0.0
  %3844 = vmatpush1.msra.mxu0 0.0
  %3845 = vmatprep.subr.mxu0 0.0
  %3846 = vmatpush1.msra.mxu0 0.0
  %3847 = vmatprep.subr.mxu0 0.0
  %3848 = vmatpush1.msra.mxu0 0.0
  %3849 = vmatprep.subr.mxu0 0.0
  %3850 = vmatpush1.msra.mxu0 0.0
  %3851 = vmatprep.subr.mxu0 0.0
  %3852 = vmatpush1.msra.mxu0 0.0
  %3853 = vmatprep.subr.mxu0 0.0
  %3854 = vmatpush1.msra.mxu0 0.0
  %3855 = vmatprep.subr.mxu0 0.0
  %3856 = vmatpush1.msra.mxu0 0.0
  %3857 = vmatprep.subr.mxu0 0.0
  %3858 = vmatpush1.msra.mxu0 0.0
  %3859 = vmatprep.subr.mxu0 0.0
  %3860 = vmatpush1.msra.mxu0 0.0
  %3861 = vmatprep.subr.mxu0 0.0
  %3862 = vmatpush1.msra.mxu0 0.0
  %3863 = vmatprep.subr.mxu0 0.0
  %3864 = vmatpush1.msra.mxu0 0.0
  %3865 = vmatprep.subr.mxu0 0.0
  %3866 = vmatpush1.msra.mxu0 0.0
  %3867 = vmatprep.subr.mxu0 0.0
  %3868 = vmatpush1.msra.mxu0 0.0
  %3869 = vmatprep.subr.mxu0 0.0
  %3870 = vmatpush1.msra.mxu0 %v80
  %3871 = vmatprep.subr.mxu0 0.0
  %3872 = vmatpush1.msra.mxu0 %v79
  %3873 = vmatprep.subr.mxu0 0.0
  %3874 = vmatpush2.msra.mxu0 0.0
  %3875 = vmatprep.subr.mxu0 0.0
  %3876 = vmatpush2.msra.mxu0 0.0
  %3877 = vmatprep.subr.mxu0 0.0
  %3878 = vmatpush2.msra.mxu0 0.0
  %3879 = vmatprep.subr.mxu0 0.0
  %3880 = vmatpush2.msra.mxu0 0.0
  %3881 = vmatprep.subr.mxu0 0.0
  %3882 = vmatpush2.msra.mxu0 0.0
  %3883 = vmatprep.subr.mxu0 0.0
  %3884 = vmatpush2.msra.mxu0 0.0
  %3885 = vmatprep.subr.mxu0 0.0
  %3886 = vmatpush2.msra.mxu0 0.0
  %3887 = vmatprep.subr.mxu0 0.0
  %3888 = vmatpush2.msra.mxu0 0.0
  %3889 = vmatprep.subr.mxu0 0.0
  %3890 = vmatpush2.msra.mxu0 0.0
  %3891 = vmatprep.subr.mxu0 0.0
  %3892 = vmatpush2.msra.mxu0 0.0
  %3893 = vmatprep.subr.mxu0 0.0
  %3894 = vmatpush2.msra.mxu0 0.0
  %3895 = vmatprep.subr.mxu0 0.0
  %3896 = vmatpush2.msra.mxu0 0.0
  %3897 = vmatprep.subr.mxu0 0.0
  %3898 = vmatpush2.msra.mxu0 0.0
  %3899 = vmatprep.subr.mxu0 0.0
  %3900 = vmatpush2.msra.mxu0 0.0
  %3901 = vmatprep.subr.mxu0 0.0
  %3902 = vmatpush2.msra.mxu0 0.0
  %3903 = vmatprep.subr.mxu0 0.0
  %3904 = vmatpush2.msra.mxu0 0.0
  %3905 = vmatprep.mubr.f32.mxu0 0.0
  %3906 = vmatmul.mubr.f32.gmra.mxu0 %v3833
  %v3907 = vpop.f32.mrf.mxu0
  %v3908 = vadd.f32 %v3819, %v3907
  %v3909 = vpop.f32.mrf.mxu0
  %3910 = vmatprep.mubr.f32.mxu0 0.0
  %3911 = vmatmul.mubr.f32.gmra.mxu0 %v3836
  %v3912 = vpop.f32.mrf.mxu0
  %v3913 = vadd.f32 %v3824, %v3912
  %v3914 = vpop.f32.mrf.mxu0
  %3915 = vmatprep.mubr.f32.mxu0 0.0
  %3916 = vmatmul.mubr.f32.gmra.mxu0 %v3839
  %v3917 = vpop.f32.mrf.mxu0
  %v3918 = vadd.f32 %v3829, %v3917
  %v3919 = vpop.f32.mrf.mxu0
  %3920 = vdwg.mxu0
  %v3921 = vadd.f32 %v3908, %v3027
  %v3922 = vadd.f32 %v3913, %v3032
  %v3923 = vadd.f32 %v3918, %v3037
  %v3924 = vmax.f32 %v3921, 0.0
  %v3925 = vmax.f32 %v3922, 0.0
  %v3926 = vmax.f32 %v3923, 0.0
  %v3928 = vsel %vm326, %v3924, 0
  %v3931 = vsel %vm326, %v3925, 0
  %v3934 = vsel %vm326, %v3926, 0
  %3936 = vmatprep.subr.mxu0 0.0
  %3937 = vmatpush1.msra.mxu0 0.0
  %3938 = vmatprep.subr.mxu0 0.0
  %3939 = vmatpush1.msra.mxu0 0.0
  %3940 = vmatprep.subr.mxu0 0.0
  %3941 = vmatpush1.msra.mxu0 0.0
  %3942 = vmatprep.subr.mxu0 0.0
  %3943 = vmatpush1.msra.mxu0 0.0
  %3944 = vmatprep.subr.mxu0 0.0
  %3945 = vmatpush1.msra.mxu0 0.0
  %3946 = vmatprep.subr.mxu0 0.0
  %3947 = vmatpush1.msra.mxu0 0.0
  %3948 = vmatprep.subr.mxu0 0.0
  %3949 = vmatpush1.msra.mxu0 0.0
  %3950 = vmatprep.subr.mxu0 0.0
  %3951 = vmatpush1.msra.mxu0 0.0
  %3952 = vmatprep.subr.mxu0 0.0
  %3953 = vmatpush1.msra.mxu0 0.0
  %3954 = vmatprep.subr.mxu0 0.0
  %3955 = vmatpush1.msra.mxu0 0.0
  %3956 = vmatprep.subr.mxu0 0.0
  %3957 = vmatpush1.msra.mxu0 0.0
  %3958 = vmatprep.subr.mxu0 0.0
  %3959 = vmatpush1.msra.mxu0 0.0
  %3960 = vmatprep.subr.mxu0 0.0
  %3961 = vmatpush1.msra.mxu0 %v65
  %3962 = vmatprep.subr.mxu0 0.0
  %3963 = vmatpush1.msra.mxu0 %v64
  %3964 = vmatprep.subr.mxu0 0.0
  %3965 = vmatpush1.msra.mxu0 %v63
  %3966 = vmatprep.subr.mxu0 0.0
  %3967 = vmatpush1.msra.mxu0 %v62
  %3968 = vmatprep.subr.mxu0 0.0
  %3969 = vmatpush2.msra.mxu0 0.0
  %3970 = vmatprep.subr.mxu0 0.0
  %3971 = vmatpush2.msra.mxu0 0.0
  %3972 = vmatprep.subr.mxu0 0.0
  %3973 = vmatpush2.msra.mxu0 0.0
  %3974 = vmatprep.subr.mxu0 0.0
  %3975 = vmatpush2.msra.mxu0 0.0
  %3976 = vmatprep.subr.mxu0 0.0
  %3977 = vmatpush2.msra.mxu0 0.0
  %3978 = vmatprep.subr.mxu0 0.0
  %3979 = vmatpush2.msra.mxu0 0.0
  %3980 = vmatprep.subr.mxu0 0.0
  %3981 = vmatpush2.msra.mxu0 0.0
  %3982 = vmatprep.subr.mxu0 0.0
  %3983 = vmatpush2.msra.mxu0 0.0
  %3984 = vmatprep.subr.mxu0 0.0
  %3985 = vmatpush2.msra.mxu0 0.0
  %3986 = vmatprep.subr.mxu0 0.0
  %3987 = vmatpush2.msra.mxu0 0.0
  %3988 = vmatprep.subr.mxu0 0.0
  %3989 = vmatpush2.msra.mxu0 0.0
  %3990 = vmatprep.subr.mxu0 0.0
  %3991 = vmatpush2.msra.mxu0 0.0
  %3992 = vmatprep.subr.mxu0 0.0
  %3993 = vmatpush2.msra.mxu0 0.0
  %3994 = vmatprep.subr.mxu0 0.0
  %3995 = vmatpush2.msra.mxu0 0.0
  %3996 = vmatprep.subr.mxu0 0.0
  %3997 = vmatpush2.msra.mxu0 0.0
  %3998 = vmatprep.subr.mxu0 0.0
  %3999 = vmatpush2.msra.mxu0 0.0
  %4000 = vmatprep.mubr.f32.mxu0 0.0
  %4001 = vmatmul.mubr.f32.gmra.mxu0 %v3928
  %v4002 = vpop.f32.mrf.mxu0
  %v4003 = vadd.f32 %v111, %v4002
  %v4004 = vpop.f32.mrf.mxu0
  %4005 = vmatprep.mubr.f32.mxu0 0.0
  %4006 = vmatmul.mubr.f32.gmra.mxu0 %v3931
  %v4007 = vpop.f32.mrf.mxu0
  %v4008 = vadd.f32 %v111, %v4007
  %v4009 = vpop.f32.mrf.mxu0
  %4010 = vmatprep.mubr.f32.mxu0 0.0
  %4011 = vmatmul.mubr.f32.gmra.mxu0 %v3934
  %v4012 = vpop.f32.mrf.mxu0
  %v4013 = vadd.f32 %v111, %v4012
  %v4014 = vpop.f32.mrf.mxu0
  %4015 = vdwg.mxu0
  %v4017 = vsel %vm416, %v42, 0
  %v4020 = vsel %vm416, %v43, 0
  %v4023 = vsel %vm416, %v44, 0
  %v4026 = vsel %vm416, %v45, 0
  %4028 = vmatprep.subr.mxu0 0.0
  %4029 = vmatpush1.msra.mxu0 0.0
  %4030 = vmatprep.subr.mxu0 0.0
  %4031 = vmatpush1.msra.mxu0 0.0
  %4032 = vmatprep.subr.mxu0 0.0
  %4033 = vmatpush1.msra.mxu0 0.0
  %4034 = vmatprep.subr.mxu0 0.0
  %4035 = vmatpush1.msra.mxu0 0.0
  %4036 = vmatprep.subr.mxu0 0.0
  %4037 = vmatpush1.msra.mxu0 0.0
  %4038 = vmatprep.subr.mxu0 0.0
  %4039 = vmatpush1.msra.mxu0 0.0
  %4040 = vmatprep.subr.mxu0 0.0
  %4041 = vmatpush1.msra.mxu0 0.0
  %4042 = vmatprep.subr.mxu0 0.0
  %4043 = vmatpush1.msra.mxu0 0.0
  %4044 = vmatprep.subr.mxu0 0.0
  %4045 = vmatpush1.msra.mxu0 0.0
  %4046 = vmatprep.subr.mxu0 0.0
  %4047 = vmatpush1.msra.mxu0 0.0
  %4048 = vmatprep.subr.mxu0 0.0
  %4049 = vmatpush1.msra.mxu0 0.0
  %4050 = vmatprep.subr.mxu0 0.0
  %4051 = vmatpush1.msra.mxu0 0.0
  %4052 = vmatprep.subr.mxu0 0.0
  %4053 = vmatpush1.msra.mxu0 0.0
  %4054 = vmatprep.subr.mxu0 0.0
  %4055 = vmatpush1.msra.mxu0 %v4013
  %4056 = vmatprep.subr.mxu0 0.0
  %4057 = vmatpush1.msra.mxu0 %v4008
  %4058 = vmatprep.subr.mxu0 0.0
  %4059 = vmatpush1.msra.mxu0 %v4003
  %4060 = vmatprep.subr.mxu0 0.0
  %4061 = vmatpush2.msra.mxu0 0.0
  %4062 = vmatprep.subr.mxu0 0.0
  %4063 = vmatpush2.msra.mxu0 0.0
  %4064 = vmatprep.subr.mxu0 0.0
  %4065 = vmatpush2.msra.mxu0 0.0
  %4066 = vmatprep.subr.mxu0 0.0
  %4067 = vmatpush2.msra.mxu0 0.0
  %4068 = vmatprep.subr.mxu0 0.0
  %4069 = vmatpush2.msra.mxu0 0.0
  %4070 = vmatprep.subr.mxu0 0.0
  %4071 = vmatpush2.msra.mxu0 0.0
  %4072 = vmatprep.subr.mxu0 0.0
  %4073 = vmatpush2.msra.mxu0 0.0
  %4074 = vmatprep.subr.mxu0 0.0
  %4075 = vmatpush2.msra.mxu0 0.0
  %4076 = vmatprep.subr.mxu0 0.0
  %4077 = vmatpush2.msra.mxu0 0.0
  %4078 = vmatprep.subr.mxu0 0.0
  %4079 = vmatpush2.msra.mxu0 0.0
  %4080 = vmatprep.subr.mxu0 0.0
  %4081 = vmatpush2.msra.mxu0 0.0
  %4082 = vmatprep.subr.mxu0 0.0
  %4083 = vmatpush2.msra.mxu0 0.0
  %4084 = vmatprep.subr.mxu0 0.0
  %4085 = vmatpush2.msra.mxu0 0.0
  %4086 = vmatprep.subr.mxu0 0.0
  %4087 = vmatpush2.msra.mxu0 0.0
  %4088 = vmatprep.subr.mxu0 0.0
  %4089 = vmatpush2.msra.mxu0 0.0
  %4090 = vmatprep.subr.mxu0 0.0
  %4091 = vmatpush2.msra.mxu0 0.0
  %4092 = vmatprep.mubr.f32.mxu0 0.0
  %4093 = vmatmul.mubr.f32.gmra.mxu0 %v4017
  %v4094 = vpop.f32.mrf.mxu0
  %v4095 = vadd.f32 0.0, %v4094
  %v4096 = vpop.f32.mrf.mxu0
  %4097 = vmatprep.mubr.f32.mxu0 0.0
  %4098 = vmatmul.mubr.f32.gmra.mxu0 %v4020
  %v4099 = vpop.f32.mrf.mxu0
  %v4100 = vadd.f32 0.0, %v4099
  %v4101 = vpop.f32.mrf.mxu0
  %4102 = vmatprep.mubr.f32.mxu0 0.0
  %4103 = vmatmul.mubr.f32.gmra.mxu0 %v4023
  %v4104 = vpop.f32.mrf.mxu0
  %v4105 = vadd.f32 0.0, %v4104
  %v4106 = vpop.f32.mrf.mxu0
  %4107 = vmatprep.mubr.f32.mxu0 0.0
  %4108 = vmatmul.mubr.f32.gmra.mxu0 %v4026
  %v4109 = vpop.f32.mrf.mxu0
  %v4110 = vadd.f32 0.0, %v4109
  %v4111 = vpop.f32.mrf.mxu0
  %4112 = vdwg.mxu0
  %v4113 = vlaneseq
  %v4114 = vshrl.u32 %v4113, 7
  %v4115 = vsub.s32 0, %v4114
  %v4116 = vrot.slane %v75, %v4115
  %v4118 = vsel %vm120, %v4095, 0
  %v4121 = vsel %vm120, %v4100, 0
  %v4124 = vsel %vm120, %v4105, 0
  %v4127 = vsel %vm120, %v4110, 0
  %4129 = vmatprep.subr.mxu0 0.0
  %4130 = vmatpush1.msra.mxu0 0.0
  %4131 = vmatprep.subr.mxu0 0.0
  %4132 = vmatpush1.msra.mxu0 0.0
  %4133 = vmatprep.subr.mxu0 0.0
  %4134 = vmatpush1.msra.mxu0 0.0
  %4135 = vmatprep.subr.mxu0 0.0
  %4136 = vmatpush1.msra.mxu0 0.0
  %4137 = vmatprep.subr.mxu0 0.0
  %4138 = vmatpush1.msra.mxu0 0.0
  %4139 = vmatprep.subr.mxu0 0.0
  %4140 = vmatpush1.msra.mxu0 0.0
  %4141 = vmatprep.subr.mxu0 0.0
  %4142 = vmatpush1.msra.mxu0 0.0
  %4143 = vmatprep.subr.mxu0 0.0
  %4144 = vmatpush1.msra.mxu0 0.0
  %4145 = vmatprep.subr.mxu0 0.0
  %4146 = vmatpush1.msra.mxu0 0.0
  %4147 = vmatprep.subr.mxu0 0.0
  %4148 = vmatpush1.msra.mxu0 0.0
  %4149 = vmatprep.subr.mxu0 0.0
  %4150 = vmatpush1.msra.mxu0 0.0
  %4151 = vmatprep.subr.mxu0 0.0
  %4152 = vmatpush1.msra.mxu0 0.0
  %4153 = vmatprep.subr.mxu0 0.0
  %4154 = vmatpush1.msra.mxu0 0.0
  %4155 = vmatprep.subr.mxu0 0.0
  %4156 = vmatpush1.msra.mxu0 0.0
  %4157 = vmatprep.subr.mxu0 0.0
  %4158 = vmatpush1.msra.mxu0 %v67
  %4159 = vmatprep.subr.mxu0 0.0
  %4160 = vmatpush1.msra.mxu0 %v66
  %4161 = vmatprep.subr.mxu0 0.0
  %4162 = vmatpush2.msra.mxu0 0.0
  %4163 = vmatprep.subr.mxu0 0.0
  %4164 = vmatpush2.msra.mxu0 0.0
  %4165 = vmatprep.subr.mxu0 0.0
  %4166 = vmatpush2.msra.mxu0 0.0
  %4167 = vmatprep.subr.mxu0 0.0
  %4168 = vmatpush2.msra.mxu0 0.0
  %4169 = vmatprep.subr.mxu0 0.0
  %4170 = vmatpush2.msra.mxu0 0.0
  %4171 = vmatprep.subr.mxu0 0.0
  %4172 = vmatpush2.msra.mxu0 0.0
  %4173 = vmatprep.subr.mxu0 0.0
  %4174 = vmatpush2.msra.mxu0 0.0
  %4175 = vmatprep.subr.mxu0 0.0
  %4176 = vmatpush2.msra.mxu0 0.0
  %4177 = vmatprep.subr.mxu0 0.0
  %4178 = vmatpush2.msra.mxu0 0.0
  %4179 = vmatprep.subr.mxu0 0.0
  %4180 = vmatpush2.msra.mxu0 0.0
  %4181 = vmatprep.subr.mxu0 0.0
  %4182 = vmatpush2.msra.mxu0 0.0
  %4183 = vmatprep.subr.mxu0 0.0
  %4184 = vmatpush2.msra.mxu0 0.0
  %4185 = vmatprep.subr.mxu0 0.0
  %4186 = vmatpush2.msra.mxu0 0.0
  %4187 = vmatprep.subr.mxu0 0.0
  %4188 = vmatpush2.msra.mxu0 0.0
  %4189 = vmatprep.subr.mxu0 0.0
  %4190 = vmatpush2.msra.mxu0 0.0
  %4191 = vmatprep.subr.mxu0 0.0
  %4192 = vmatpush2.msra.mxu0 0.0
  %4193 = vmatprep.mubr.f32.mxu0 0.0
  %4194 = vmatmul.mubr.f32.gmra.mxu0 %v4118
  %v4195 = vpop.f32.mrf.mxu0
  %v4196 = vadd.f32 %v4116, %v4195
  %v4197 = vpop.f32.mrf.mxu0
  %4198 = vmatprep.mubr.f32.mxu0 0.0
  %4199 = vmatmul.mubr.f32.gmra.mxu0 %v4121
  %v4200 = vpop.f32.mrf.mxu0
  %v4201 = vadd.f32 %v4116, %v4200
  %v4202 = vpop.f32.mrf.mxu0
  %4203 = vmatprep.mubr.f32.mxu0 0.0
  %4204 = vmatmul.mubr.f32.gmra.mxu0 %v4124
  %v4205 = vpop.f32.mrf.mxu0
  %v4206 = vadd.f32 %v4116, %v4205
  %v4207 = vpop.f32.mrf.mxu0
  %4208 = vmatprep.mubr.f32.mxu0 0.0
  %4209 = vmatmul.mubr.f32.gmra.mxu0 %v4127
  %v4210 = vpop.f32.mrf.mxu0
  %v4211 = vadd.f32 %v4116, %v4210
  %v4212 = vpop.f32.mrf.mxu0
  %4213 = vdwg.mxu0
  %v4214 = vmax.f32 %v4196, 0.0
  %v4215 = vmax.f32 %v4201, 0.0
  %v4216 = vmax.f32 %v4206, 0.0
  %v4217 = vmax.f32 %v4211, 0.0
  %v4218 = vlaneseq
  %v4219 = vshrl.u32 %v4218, 7
  %v4220 = vsub.s32 0, %v4219
  %v4221 = vrot.slane %v76, %v4220
  %v4223 = vsel %vm120, %v4214, 0
  %v4226 = vsel %vm120, %v4215, 0
  %v4229 = vsel %vm120, %v4216, 0
  %v4232 = vsel %vm120, %v4217, 0
  %4234 = vmatprep.subr.mxu0 0.0
  %4235 = vmatpush1.msra.mxu0 0.0
  %4236 = vmatprep.subr.mxu0 0.0
  %4237 = vmatpush1.msra.mxu0 0.0
  %4238 = vmatprep.subr.mxu0 0.0
  %4239 = vmatpush1.msra.mxu0 0.0
  %4240 = vmatprep.subr.mxu0 0.0
  %4241 = vmatpush1.msra.mxu0 0.0
  %4242 = vmatprep.subr.mxu0 0.0
  %4243 = vmatpush1.msra.mxu0 0.0
  %4244 = vmatprep.subr.mxu0 0.0
  %4245 = vmatpush1.msra.mxu0 0.0
  %4246 = vmatprep.subr.mxu0 0.0
  %4247 = vmatpush1.msra.mxu0 0.0
  %4248 = vmatprep.subr.mxu0 0.0
  %4249 = vmatpush1.msra.mxu0 0.0
  %4250 = vmatprep.subr.mxu0 0.0
  %4251 = vmatpush1.msra.mxu0 0.0
  %4252 = vmatprep.subr.mxu0 0.0
  %4253 = vmatpush1.msra.mxu0 0.0
  %4254 = vmatprep.subr.mxu0 0.0
  %4255 = vmatpush1.msra.mxu0 0.0
  %4256 = vmatprep.subr.mxu0 0.0
  %4257 = vmatpush1.msra.mxu0 0.0
  %4258 = vmatprep.subr.mxu0 0.0
  %4259 = vmatpush1.msra.mxu0 0.0
  %4260 = vmatprep.subr.mxu0 0.0
  %4261 = vmatpush1.msra.mxu0 0.0
  %4262 = vmatprep.subr.mxu0 0.0
  %4263 = vmatpush1.msra.mxu0 %v69
  %4264 = vmatprep.subr.mxu0 0.0
  %4265 = vmatpush1.msra.mxu0 %v68
  %4266 = vmatprep.subr.mxu0 0.0
  %4267 = vmatpush2.msra.mxu0 0.0
  %4268 = vmatprep.subr.mxu0 0.0
  %4269 = vmatpush2.msra.mxu0 0.0
  %4270 = vmatprep.subr.mxu0 0.0
  %4271 = vmatpush2.msra.mxu0 0.0
  %4272 = vmatprep.subr.mxu0 0.0
  %4273 = vmatpush2.msra.mxu0 0.0
  %4274 = vmatprep.subr.mxu0 0.0
  %4275 = vmatpush2.msra.mxu0 0.0
  %4276 = vmatprep.subr.mxu0 0.0
  %4277 = vmatpush2.msra.mxu0 0.0
  %4278 = vmatprep.subr.mxu0 0.0
  %4279 = vmatpush2.msra.mxu0 0.0
  %4280 = vmatprep.subr.mxu0 0.0
  %4281 = vmatpush2.msra.mxu0 0.0
  %4282 = vmatprep.subr.mxu0 0.0
  %4283 = vmatpush2.msra.mxu0 0.0
  %4284 = vmatprep.subr.mxu0 0.0
  %4285 = vmatpush2.msra.mxu0 0.0
  %4286 = vmatprep.subr.mxu0 0.0
  %4287 = vmatpush2.msra.mxu0 0.0
  %4288 = vmatprep.subr.mxu0 0.0
  %4289 = vmatpush2.msra.mxu0 0.0
  %4290 = vmatprep.subr.mxu0 0.0
  %4291 = vmatpush2.msra.mxu0 0.0
  %4292 = vmatprep.subr.mxu0 0.0
  %4293 = vmatpush2.msra.mxu0 0.0
  %4294 = vmatprep.subr.mxu0 0.0
  %4295 = vmatpush2.msra.mxu0 0.0
  %4296 = vmatprep.subr.mxu0 0.0
  %4297 = vmatpush2.msra.mxu0 0.0
  %4298 = vmatprep.mubr.f32.mxu0 0.0
  %4299 = vmatmul.mubr.f32.gmra.mxu0 %v4223
  %v4300 = vpop.f32.mrf.mxu0
  %v4301 = vadd.f32 %v4221, %v4300
  %v4302 = vpop.f32.mrf.mxu0
  %4303 = vmatprep.mubr.f32.mxu0 0.0
  %4304 = vmatmul.mubr.f32.gmra.mxu0 %v4226
  %v4305 = vpop.f32.mrf.mxu0
  %v4306 = vadd.f32 %v4221, %v4305
  %v4307 = vpop.f32.mrf.mxu0
  %4308 = vmatprep.mubr.f32.mxu0 0.0
  %4309 = vmatmul.mubr.f32.gmra.mxu0 %v4229
  %v4310 = vpop.f32.mrf.mxu0
  %v4311 = vadd.f32 %v4221, %v4310
  %v4312 = vpop.f32.mrf.mxu0
  %4313 = vmatprep.mubr.f32.mxu0 0.0
  %4314 = vmatmul.mubr.f32.gmra.mxu0 %v4232
  %v4315 = vpop.f32.mrf.mxu0
  %v4316 = vadd.f32 %v4221, %v4315
  %v4317 = vpop.f32.mrf.mxu0
  %4318 = vdwg.mxu0
  %v4319 = vmul.f32 %v4301, %v26
  %v4320 = vmul.f32 %v4306, %v27
  %v4321 = vmul.f32 %v4311, %v28
  %v4322 = vmul.f32 %v4316, %v29
  %v4324 = vsel %vm120, %v4319, 0
  %v4327 = vsel %vm120, %v4320, 0
  %v4330 = vsel %vm120, %v4321, 0
  %v4333 = vsel %vm120, %v4322, 0
  %4335 = vmatprep.subr.mxu0 0.0
  %4336 = vmatpush1.xpose.msra.mxu0 0.0
  %4337 = vmatprep.subr.mxu0 0.0
  %4338 = vmatpush1.xpose.msra.mxu0 0.0
  %4339 = vmatprep.subr.mxu0 0.0
  %4340 = vmatpush1.xpose.msra.mxu0 0.0
  %4341 = vmatprep.subr.mxu0 0.0
  %4342 = vmatpush1.xpose.msra.mxu0 0.0
  %4343 = vmatprep.subr.mxu0 0.0
  %4344 = vmatpush1.xpose.msra.mxu0 0.0
  %4345 = vmatprep.subr.mxu0 0.0
  %4346 = vmatpush1.xpose.msra.mxu0 0.0
  %4347 = vmatprep.subr.mxu0 0.0
  %4348 = vmatpush1.xpose.msra.mxu0 0.0
  %4349 = vmatprep.subr.mxu0 0.0
  %4350 = vmatpush1.xpose.msra.mxu0 0.0
  %4351 = vmatprep.subr.mxu0 0.0
  %4352 = vmatpush1.xpose.msra.mxu0 0.0
  %4353 = vmatprep.subr.mxu0 0.0
  %4354 = vmatpush1.xpose.msra.mxu0 0.0
  %4355 = vmatprep.subr.mxu0 0.0
  %4356 = vmatpush1.xpose.msra.mxu0 0.0
  %4357 = vmatprep.subr.mxu0 0.0
  %4358 = vmatpush1.xpose.msra.mxu0 0.0
  %4359 = vmatprep.subr.mxu0 0.0
  %4360 = vmatpush1.xpose.msra.mxu0 0.0
  %4361 = vmatprep.subr.mxu0 0.0
  %4362 = vmatpush1.xpose.msra.mxu0 0.0
  %4363 = vmatprep.subr.mxu0 0.0
  %4364 = vmatpush1.xpose.msra.mxu0 %v4333
  %4365 = vmatprep.subr.mxu0 0.0
  %4366 = vmatpush1.xpose.msra.mxu0 %v4330
  %4367 = vmatprep.subr.mxu0 0.0
  %4368 = vmatpush2.xpose.msra.mxu0 0.0
  %4369 = vmatprep.subr.mxu0 0.0
  %4370 = vmatpush2.xpose.msra.mxu0 0.0
  %4371 = vmatprep.subr.mxu0 0.0
  %4372 = vmatpush2.xpose.msra.mxu0 0.0
  %4373 = vmatprep.subr.mxu0 0.0
  %4374 = vmatpush2.xpose.msra.mxu0 0.0
  %4375 = vmatprep.subr.mxu0 0.0
  %4376 = vmatpush2.xpose.msra.mxu0 0.0
  %4377 = vmatprep.subr.mxu0 0.0
  %4378 = vmatpush2.xpose.msra.mxu0 0.0
  %4379 = vmatprep.subr.mxu0 0.0
  %4380 = vmatpush2.xpose.msra.mxu0 0.0
  %4381 = vmatprep.subr.mxu0 0.0
  %4382 = vmatpush2.xpose.msra.mxu0 0.0
  %4383 = vmatprep.subr.mxu0 0.0
  %4384 = vmatpush2.xpose.msra.mxu0 0.0
  %4385 = vmatprep.subr.mxu0 0.0
  %4386 = vmatpush2.xpose.msra.mxu0 0.0
  %4387 = vmatprep.subr.mxu0 0.0
  %4388 = vmatpush2.xpose.msra.mxu0 0.0
  %4389 = vmatprep.subr.mxu0 0.0
  %4390 = vmatpush2.xpose.msra.mxu0 0.0
  %4391 = vmatprep.subr.mxu0 0.0
  %4392 = vmatpush2.xpose.msra.mxu0 0.0
  %4393 = vmatprep.subr.mxu0 0.0
  %4394 = vmatpush2.xpose.msra.mxu0 0.0
  %4395 = vmatprep.subr.mxu0 0.0
  %4396 = vmatpush2.xpose.msra.mxu0 0.0
  %4397 = vmatprep.subr.mxu0 0.0
  %4398 = vmatpush2.xpose.msra.mxu0 0.0
  %4399 = vmatprep.mubr.f32.mxu0 0.0
  %4400 = vmatmul.mubr.f32.gmra.mxu0 %v4324
  %v4401 = vpop.f32.mrf.mxu0
  %v4402 = vadd.f32 0.0, %v4401
  %v4403 = vpop.f32.mrf.mxu0
  %4404 = vmatprep.mubr.f32.mxu0 0.0
  %4405 = vmatmul.mubr.f32.gmra.mxu0 %v4327
  %v4406 = vpop.f32.mrf.mxu0
  %v4407 = vadd.f32 0.0, %v4406
  %v4408 = vpop.f32.mrf.mxu0
  %4409 = vdwg.mxu0
  %v4410 = vmul.f32 %v4402, 10.0
  %v4411 = vmul.f32 %v4407, 10.0
  %v4412 = vadd.f32 %v4410, %v89
  %v4413 = vadd.f32 %v4411, %v90
  %v4414 = vsel %vm120, %v4412, -inf
  %4415 = vmax.xlane.f32.xlu0 %v4414
  %v4416 = vpop.xlane.xlu0 %4415
  %v4417 = vsel %vm120, %v4413, -inf
  %4418 = vmax.xlane.f32.xlu0 %v4417
  %v4419 = vpop.xlane.xlu0 %4418
  %v4420 = vsub.f32 %v4412, %v4416
  %v4421 = vsub.f32 %v4413, %v4419
  %v4422 = vmul.f32 %v4420, 1.442695
  %v4423 = vpow.pop %v4422
  %v4424 = vmul.f32 %v4421, 1.442695
  %v4425 = vpow.pop %v4424
  %v4426 = vsel %vm120, %v4423, 0.0
  %4427 = vadd.xlane.f32.xlu0 %v4426
  %v4428 = vpop.xlane.xlu0 %4427
  %v4429 = vsel %vm120, %v4425, 0.0
  %4430 = vadd.xlane.f32.xlu0 %v4429
  %v4431 = vpop.xlane.xlu0 %4430
  %v4432 = vlog2.pop %v4428
  %v4433 = vmul.f32 %v4432, 0.6931472
  %v4434 = vlog2.pop %v4431
  %v4435 = vmul.f32 %v4434, 0.6931472
  %v4436 = vadd.f32 %v4416, %v4433
  %v4437 = vadd.f32 %v4419, %v4435
  %v4438 = vsub.f32 %v4412, %v4436
  %v4439 = vsub.f32 %v4413, %v4437
  %v4440 = vsel %vm120, %v4438, -inf
  %v4441 = vsel %vm120, %v4439, -inf
  %v4442 = vmax.f32 %v4440, %v4441
  %v4443 = vrot.slane %v4442, 4
  %v4444 = vmax.f32 %v4442, %v4443
  %v4445 = vrot.slane %v4444, 2
  %v4446 = vmax.f32 %v4444, %v4445
  %v4447 = vrot.slane %v4446, 1
  %v4448 = vmax.f32 %v4446, %v4447
  %v4449 = vsub.f32 %v4438, %v4448
  %v4450 = vsub.f32 %v4439, %v4448
  %v4451 = vmul.f32 %v4449, 1.442695
  %v4452 = vpow.pop %v4451
  %v4453 = vmul.f32 %v4450, 1.442695
  %v4454 = vpow.pop %v4453
  %v4455 = vsel %vm120, %v4452, 0.0
  %v4456 = vsel %vm120, %v4454, 0.0
  %v4457 = vadd.f32 %v4455, %v4456
  %v4458 = vrot.slane %v4457, 4
  %v4459 = vadd.f32 %v4457, %v4458
  %v4460 = vrot.slane %v4459, 2
  %v4461 = vadd.f32 %v4459, %v4460
  %v4462 = vrot.slane %v4461, 1
  %v4463 = vadd.f32 %v4461, %v4462
  %v4464 = vlog2.pop %v4463
  %v4465 = vmul.f32 %v4464, 0.6931472
  %v4466 = vadd.f32 %v4448, %v4465
  %v4467 = vsub.f32 %v4438, %v4466
  %v4468 = vsub.f32 %v4439, %v4466
  %v4469 = vsel %vm120, %v4467, -inf
  %4470 = vmax.xlane.f32.xlu0 %v4469
  %v4471 = vpop.xlane.xlu0 %4470
  %v4472 = vsel %vm120, %v4468, -inf
  %4473 = vmax.xlane.f32.xlu0 %v4472
  %v4474 = vpop.xlane.xlu0 %4473
  %v4475 = vsub.f32 %v4467, %v4471
  %v4476 = vsub.f32 %v4468, %v4474
  %v4477 = vmul.f32 %v4475, 1.442695
  %v4478 = vpow.pop %v4477
  %v4479 = vmul.f32 %v4476, 1.442695
  %v4480 = vpow.pop %v4479
  %v4481 = vsel %vm120, %v4478, 0.0
  %4482 = vadd.xlane.f32.xlu0 %v4481
  %v4483 = vpop.xlane.xlu0 %4482
  %v4484 = vsel %vm120, %v4480, 0.0
  %4485 = vadd.xlane.f32.xlu0 %v4484
  %v4486 = vpop.xlane.xlu0 %4485
  %v4487 = vlog2.pop %v4483
  %v4488 = vmul.f32 %v4487, 0.6931472
  %v4489 = vlog2.pop %v4486
  %v4490 = vmul.f32 %v4489, 0.6931472
  %v4491 = vadd.f32 %v4471, %v4488
  %v4492 = vadd.f32 %v4474, %v4490
  %v4493 = vsub.f32 %v4467, %v4491
  %v4494 = vsub.f32 %v4468, %v4492
  %v4495 = vsel %vm120, %v4493, -inf
  %v4496 = vsel %vm120, %v4494, -inf
  %v4497 = vmax.f32 %v4495, %v4496
  %v4498 = vrot.slane %v4497, 4
  %v4499 = vmax.f32 %v4497, %v4498
  %v4500 = vrot.slane %v4499, 2
  %v4501 = vmax.f32 %v4499, %v4500
  %v4502 = vrot.slane %v4501, 1
  %v4503 = vmax.f32 %v4501, %v4502
  %v4504 = vsub.f32 %v4493, %v4503
  %v4505 = vsub.f32 %v4494, %v4503
  %v4506 = vmul.f32 %v4504, 1.442695
  %v4507 = vpow.pop %v4506
  %v4508 = vmul.f32 %v4505, 1.442695
  %v4509 = vpow.pop %v4508
  %v4510 = vsel %vm120, %v4507, 0.0
  %v4511 = vsel %vm120, %v4509, 0.0
  %v4512 = vadd.f32 %v4510, %v4511
  %v4513 = vrot.slane %v4512, 4
  %v4514 = vadd.f32 %v4512, %v4513
  %v4515 = vrot.slane %v4514, 2
  %v4516 = vadd.f32 %v4514, %v4515
  %v4517 = vrot.slane %v4516, 1
  %v4518 = vadd.f32 %v4516, %v4517
  %v4519 = vlog2.pop %v4518
  %v4520 = vmul.f32 %v4519, 0.6931472
  %v4521 = vadd.f32 %v4503, %v4520
  %v4522 = vsub.f32 %v4493, %v4521
  %v4523 = vsub.f32 %v4494, %v4521
  %v4524 = vsel %vm120, %v4522, -inf
  %4525 = vmax.xlane.f32.xlu0 %v4524
  %v4526 = vpop.xlane.xlu0 %4525
  %v4527 = vsel %vm120, %v4523, -inf
  %4528 = vmax.xlane.f32.xlu0 %v4527
  %v4529 = vpop.xlane.xlu0 %4528
  %v4530 = vsub.f32 %v4522, %v4526
  %v4531 = vsub.f32 %v4523, %v4529
  %v4532 = vmul.f32 %v4530, 1.442695
  %v4533 = vpow.pop %v4532
  %v4534 = vmul.f32 %v4531, 1.442695
  %v4535 = vpow.pop %v4534
  %v4536 = vsel %vm120, %v4533, 0.0
  %4537 = vadd.xlane.f32.xlu0 %v4536
  %v4538 = vpop.xlane.xlu0 %4537
  %v4539 = vsel %vm120, %v4535, 0.0
  %4540 = vadd.xlane.f32.xlu0 %v4539
  %v4541 = vpop.xlane.xlu0 %4540
  %v4542 = vlog2.pop %v4538
  %v4543 = vmul.f32 %v4542, 0.6931472
  %v4544 = vlog2.pop %v4541
  %v4545 = vmul.f32 %v4544, 0.6931472
  %v4546 = vadd.f32 %v4526, %v4543
  %v4547 = vadd.f32 %v4529, %v4545
  %v4548 = vsub.f32 %v4522, %v4546
  %v4549 = vsub.f32 %v4523, %v4547
  %v4550 = vsel %vm120, %v4548, -inf
  %v4551 = vsel %vm120, %v4549, -inf
  %v4552 = vmax.f32 %v4550, %v4551
  %v4553 = vrot.slane %v4552, 4
  %v4554 = vmax.f32 %v4552, %v4553
  %v4555 = vrot.slane %v4554, 2
  %v4556 = vmax.f32 %v4554, %v4555
  %v4557 = vrot.slane %v4556, 1
  %v4558 = vmax.f32 %v4556, %v4557
  %v4559 = vsub.f32 %v4548, %v4558
  %v4560 = vsub.f32 %v4549, %v4558
  %v4561 = vmul.f32 %v4559, 1.442695
  %v4562 = vpow.pop %v4561
  %v4563 = vmul.f32 %v4560, 1.442695
  %v4564 = vpow.pop %v4563
  %v4565 = vsel %vm120, %v4562, 0.0
  %v4566 = vsel %vm120, %v4564, 0.0
  %v4567 = vadd.f32 %v4565, %v4566
  %v4568 = vrot.slane %v4567, 4
  %v4569 = vadd.f32 %v4567, %v4568
  %v4570 = vrot.slane %v4569, 2
  %v4571 = vadd.f32 %v4569, %v4570
  %v4572 = vrot.slane %v4571, 1
  %v4573 = vadd.f32 %v4571, %v4572
  %v4574 = vlog2.pop %v4573
  %v4575 = vmul.f32 %v4574, 0.6931472
  %v4576 = vadd.f32 %v4558, %v4575
  %v4577 = vsub.f32 %v4548, %v4576
  %v4578 = vsub.f32 %v4549, %v4576
  %v4579 = vsel %vm120, %v4577, -inf
  %4580 = vmax.xlane.f32.xlu0 %v4579
  %v4581 = vpop.xlane.xlu0 %4580
  %v4582 = vsel %vm120, %v4578, -inf
  %4583 = vmax.xlane.f32.xlu0 %v4582
  %v4584 = vpop.xlane.xlu0 %4583
  %v4585 = vsub.f32 %v4577, %v4581
  %v4586 = vsub.f32 %v4578, %v4584
  %v4587 = vmul.f32 %v4585, 1.442695
  %v4588 = vpow.pop %v4587
  %v4589 = vmul.f32 %v4586, 1.442695
  %v4590 = vpow.pop %v4589
  %v4591 = vsel %vm120, %v4588, 0.0
  %4592 = vadd.xlane.f32.xlu0 %v4591
  %v4593 = vpop.xlane.xlu0 %4592
  %v4594 = vsel %vm120, %v4590, 0.0
  %4595 = vadd.xlane.f32.xlu0 %v4594
  %v4596 = vpop.xlane.xlu0 %4595
  %v4597 = vlog2.pop %v4593
  %v4598 = vmul.f32 %v4597, 0.6931472
  %v4599 = vlog2.pop %v4596
  %v4600 = vmul.f32 %v4599, 0.6931472
  %v4601 = vadd.f32 %v4581, %v4598
  %v4602 = vadd.f32 %v4584, %v4600
  %v4603 = vsub.f32 %v4577, %v4601
  %v4604 = vsub.f32 %v4578, %v4602
  %v4605 = vsel %vm120, %v4603, -inf
  %v4606 = vsel %vm120, %v4604, -inf
  %v4607 = vmax.f32 %v4605, %v4606
  %v4608 = vrot.slane %v4607, 4
  %v4609 = vmax.f32 %v4607, %v4608
  %v4610 = vrot.slane %v4609, 2
  %v4611 = vmax.f32 %v4609, %v4610
  %v4612 = vrot.slane %v4611, 1
  %v4613 = vmax.f32 %v4611, %v4612
  %v4614 = vsub.f32 %v4603, %v4613
  %v4615 = vsub.f32 %v4604, %v4613
  %v4616 = vmul.f32 %v4614, 1.442695
  %v4617 = vpow.pop %v4616
  %v4618 = vmul.f32 %v4615, 1.442695
  %v4619 = vpow.pop %v4618
  %v4620 = vsel %vm120, %v4617, 0.0
  %v4621 = vsel %vm120, %v4619, 0.0
  %v4622 = vadd.f32 %v4620, %v4621
  %v4623 = vrot.slane %v4622, 4
  %v4624 = vadd.f32 %v4622, %v4623
  %v4625 = vrot.slane %v4624, 2
  %v4626 = vadd.f32 %v4624, %v4625
  %v4627 = vrot.slane %v4626, 1
  %v4628 = vadd.f32 %v4626, %v4627
  %v4629 = vlog2.pop %v4628
  %v4630 = vmul.f32 %v4629, 0.6931472
  %v4631 = vadd.f32 %v4613, %v4630
  %v4632 = vsub.f32 %v4603, %v4631
  %v4633 = vsub.f32 %v4604, %v4631
  %v4634 = vsel %vm120, %v4632, -inf
  %4635 = vmax.xlane.f32.xlu0 %v4634
  %v4636 = vpop.xlane.xlu0 %4635
  %v4637 = vsel %vm120, %v4633, -inf
  %4638 = vmax.xlane.f32.xlu0 %v4637
  %v4639 = vpop.xlane.xlu0 %4638
  %v4640 = vsub.f32 %v4632, %v4636
  %v4641 = vsub.f32 %v4633, %v4639
  %v4642 = vmul.f32 %v4640, 1.442695
  %v4643 = vpow.pop %v4642
  %v4644 = vmul.f32 %v4641, 1.442695
  %v4645 = vpow.pop %v4644
  %v4646 = vsel %vm120, %v4643, 0.0
  %4647 = vadd.xlane.f32.xlu0 %v4646
  %v4648 = vpop.xlane.xlu0 %4647
  %v4649 = vsel %vm120, %v4645, 0.0
  %4650 = vadd.xlane.f32.xlu0 %v4649
  %v4651 = vpop.xlane.xlu0 %4650
  %v4652 = vlog2.pop %v4648
  %v4653 = vmul.f32 %v4652, 0.6931472
  %v4654 = vlog2.pop %v4651
  %v4655 = vmul.f32 %v4654, 0.6931472
  %v4656 = vadd.f32 %v4636, %v4653
  %v4657 = vadd.f32 %v4639, %v4655
  %v4658 = vsub.f32 %v4632, %v4656
  %v4659 = vsub.f32 %v4633, %v4657
  %v4660 = vsel %vm120, %v4658, -inf
  %v4661 = vsel %vm120, %v4659, -inf
  %v4662 = vmax.f32 %v4660, %v4661
  %v4663 = vrot.slane %v4662, 4
  %v4664 = vmax.f32 %v4662, %v4663
  %v4665 = vrot.slane %v4664, 2
  %v4666 = vmax.f32 %v4664, %v4665
  %v4667 = vrot.slane %v4666, 1
  %v4668 = vmax.f32 %v4666, %v4667
  %v4669 = vsub.f32 %v4658, %v4668
  %v4670 = vsub.f32 %v4659, %v4668
  %v4671 = vmul.f32 %v4669, 1.442695
  %v4672 = vpow.pop %v4671
  %v4673 = vmul.f32 %v4670, 1.442695
  %v4674 = vpow.pop %v4673
  %v4675 = vsel %vm120, %v4672, 0.0
  %v4676 = vsel %vm120, %v4674, 0.0
  %v4677 = vadd.f32 %v4675, %v4676
  %v4678 = vrot.slane %v4677, 4
  %v4679 = vadd.f32 %v4677, %v4678
  %v4680 = vrot.slane %v4679, 2
  %v4681 = vadd.f32 %v4679, %v4680
  %v4682 = vrot.slane %v4681, 1
  %v4683 = vadd.f32 %v4681, %v4682
  %v4684 = vlog2.pop %v4683
  %v4685 = vmul.f32 %v4684, 0.6931472
  %v4686 = vadd.f32 %v4668, %v4685
  %v4687 = vsub.f32 %v4658, %v4686
  %v4688 = vsub.f32 %v4659, %v4686
  %v4689 = vsel %vm120, %v4687, -inf
  %4690 = vmax.xlane.f32.xlu0 %v4689
  %v4691 = vpop.xlane.xlu0 %4690
  %v4692 = vsel %vm120, %v4688, -inf
  %4693 = vmax.xlane.f32.xlu0 %v4692
  %v4694 = vpop.xlane.xlu0 %4693
  %v4695 = vsub.f32 %v4687, %v4691
  %v4696 = vsub.f32 %v4688, %v4694
  %v4697 = vmul.f32 %v4695, 1.442695
  %v4698 = vpow.pop %v4697
  %v4699 = vmul.f32 %v4696, 1.442695
  %v4700 = vpow.pop %v4699
  %v4701 = vsel %vm120, %v4698, 0.0
  %4702 = vadd.xlane.f32.xlu0 %v4701
  %v4703 = vpop.xlane.xlu0 %4702
  %v4704 = vsel %vm120, %v4700, 0.0
  %4705 = vadd.xlane.f32.xlu0 %v4704
  %v4706 = vpop.xlane.xlu0 %4705
  %v4707 = vlog2.pop %v4703
  %v4708 = vmul.f32 %v4707, 0.6931472
  %v4709 = vlog2.pop %v4706
  %v4710 = vmul.f32 %v4709, 0.6931472
  %v4711 = vadd.f32 %v4691, %v4708
  %v4712 = vadd.f32 %v4694, %v4710
  %v4713 = vsub.f32 %v4687, %v4711
  %v4714 = vsub.f32 %v4688, %v4712
  %v4715 = vsel %vm120, %v4713, -inf
  %v4716 = vsel %vm120, %v4714, -inf
  %v4717 = vmax.f32 %v4715, %v4716
  %v4718 = vrot.slane %v4717, 4
  %v4719 = vmax.f32 %v4717, %v4718
  %v4720 = vrot.slane %v4719, 2
  %v4721 = vmax.f32 %v4719, %v4720
  %v4722 = vrot.slane %v4721, 1
  %v4723 = vmax.f32 %v4721, %v4722
  %v4724 = vsub.f32 %v4713, %v4723
  %v4725 = vsub.f32 %v4714, %v4723
  %v4726 = vmul.f32 %v4724, 1.442695
  %v4727 = vpow.pop %v4726
  %v4728 = vmul.f32 %v4725, 1.442695
  %v4729 = vpow.pop %v4728
  %v4730 = vsel %vm120, %v4727, 0.0
  %v4731 = vsel %vm120, %v4729, 0.0
  %v4732 = vadd.f32 %v4730, %v4731
  %v4733 = vrot.slane %v4732, 4
  %v4734 = vadd.f32 %v4732, %v4733
  %v4735 = vrot.slane %v4734, 2
  %v4736 = vadd.f32 %v4734, %v4735
  %v4737 = vrot.slane %v4736, 1
  %v4738 = vadd.f32 %v4736, %v4737
  %v4739 = vlog2.pop %v4738
  %v4740 = vmul.f32 %v4739, 0.6931472
  %v4741 = vadd.f32 %v4723, %v4740
  %v4742 = vsub.f32 %v4713, %v4741
  %v4743 = vsub.f32 %v4714, %v4741
  %v4744 = vsel %vm120, %v4742, -inf
  %4745 = vmax.xlane.f32.xlu0 %v4744
  %v4746 = vpop.xlane.xlu0 %4745
  %v4747 = vsel %vm120, %v4743, -inf
  %4748 = vmax.xlane.f32.xlu0 %v4747
  %v4749 = vpop.xlane.xlu0 %4748
  %v4750 = vsub.f32 %v4742, %v4746
  %v4751 = vsub.f32 %v4743, %v4749
  %v4752 = vmul.f32 %v4750, 1.442695
  %v4753 = vpow.pop %v4752
  %v4754 = vmul.f32 %v4751, 1.442695
  %v4755 = vpow.pop %v4754
  %v4756 = vsel %vm120, %v4753, 0.0
  %4757 = vadd.xlane.f32.xlu0 %v4756
  %v4758 = vpop.xlane.xlu0 %4757
  %v4759 = vsel %vm120, %v4755, 0.0
  %4760 = vadd.xlane.f32.xlu0 %v4759
  %v4761 = vpop.xlane.xlu0 %4760
  %v4762 = vlog2.pop %v4758
  %v4763 = vmul.f32 %v4762, 0.6931472
  %v4764 = vlog2.pop %v4761
  %v4765 = vmul.f32 %v4764, 0.6931472
  %v4766 = vadd.f32 %v4746, %v4763
  %v4767 = vadd.f32 %v4749, %v4765
  %v4768 = vsub.f32 %v4742, %v4766
  %v4769 = vsub.f32 %v4743, %v4767
  %v4770 = vsel %vm120, %v4768, -inf
  %v4771 = vsel %vm120, %v4769, -inf
  %v4772 = vmax.f32 %v4770, %v4771
  %v4773 = vrot.slane %v4772, 4
  %v4774 = vmax.f32 %v4772, %v4773
  %v4775 = vrot.slane %v4774, 2
  %v4776 = vmax.f32 %v4774, %v4775
  %v4777 = vrot.slane %v4776, 1
  %v4778 = vmax.f32 %v4776, %v4777
  %v4779 = vsub.f32 %v4768, %v4778
  %v4780 = vsub.f32 %v4769, %v4778
  %v4781 = vmul.f32 %v4779, 1.442695
  %v4782 = vpow.pop %v4781
  %v4783 = vmul.f32 %v4780, 1.442695
  %v4784 = vpow.pop %v4783
  %v4785 = vsel %vm120, %v4782, 0.0
  %v4786 = vsel %vm120, %v4784, 0.0
  %v4787 = vadd.f32 %v4785, %v4786
  %v4788 = vrot.slane %v4787, 4
  %v4789 = vadd.f32 %v4787, %v4788
  %v4790 = vrot.slane %v4789, 2
  %v4791 = vadd.f32 %v4789, %v4790
  %v4792 = vrot.slane %v4791, 1
  %v4793 = vadd.f32 %v4791, %v4792
  %v4794 = vlog2.pop %v4793
  %v4795 = vmul.f32 %v4794, 0.6931472
  %v4796 = vadd.f32 %v4778, %v4795
  %v4797 = vsub.f32 %v4768, %v4796
  %v4798 = vsub.f32 %v4769, %v4796
  %v4799 = vsel %vm120, %v4797, -inf
  %4800 = vmax.xlane.f32.xlu0 %v4799
  %v4801 = vpop.xlane.xlu0 %4800
  %v4802 = vsel %vm120, %v4798, -inf
  %4803 = vmax.xlane.f32.xlu0 %v4802
  %v4804 = vpop.xlane.xlu0 %4803
  %v4805 = vsub.f32 %v4797, %v4801
  %v4806 = vsub.f32 %v4798, %v4804
  %v4807 = vmul.f32 %v4805, 1.442695
  %v4808 = vpow.pop %v4807
  %v4809 = vmul.f32 %v4806, 1.442695
  %v4810 = vpow.pop %v4809
  %v4811 = vsel %vm120, %v4808, 0.0
  %4812 = vadd.xlane.f32.xlu0 %v4811
  %v4813 = vpop.xlane.xlu0 %4812
  %v4814 = vsel %vm120, %v4810, 0.0
  %4815 = vadd.xlane.f32.xlu0 %v4814
  %v4816 = vpop.xlane.xlu0 %4815
  %v4817 = vlog2.pop %v4813
  %v4818 = vmul.f32 %v4817, 0.6931472
  %v4819 = vlog2.pop %v4816
  %v4820 = vmul.f32 %v4819, 0.6931472
  %v4821 = vadd.f32 %v4801, %v4818
  %v4822 = vadd.f32 %v4804, %v4820
  %v4823 = vsub.f32 %v4797, %v4821
  %v4824 = vsub.f32 %v4798, %v4822
  %v4825 = vsel %vm120, %v4823, -inf
  %v4826 = vsel %vm120, %v4824, -inf
  %v4827 = vmax.f32 %v4825, %v4826
  %v4828 = vrot.slane %v4827, 4
  %v4829 = vmax.f32 %v4827, %v4828
  %v4830 = vrot.slane %v4829, 2
  %v4831 = vmax.f32 %v4829, %v4830
  %v4832 = vrot.slane %v4831, 1
  %v4833 = vmax.f32 %v4831, %v4832
  %v4834 = vsub.f32 %v4823, %v4833
  %v4835 = vsub.f32 %v4824, %v4833
  %v4836 = vmul.f32 %v4834, 1.442695
  %v4837 = vpow.pop %v4836
  %v4838 = vmul.f32 %v4835, 1.442695
  %v4839 = vpow.pop %v4838
  %v4840 = vsel %vm120, %v4837, 0.0
  %v4841 = vsel %vm120, %v4839, 0.0
  %v4842 = vadd.f32 %v4840, %v4841
  %v4843 = vrot.slane %v4842, 4
  %v4844 = vadd.f32 %v4842, %v4843
  %v4845 = vrot.slane %v4844, 2
  %v4846 = vadd.f32 %v4844, %v4845
  %v4847 = vrot.slane %v4846, 1
  %v4848 = vadd.f32 %v4846, %v4847
  %v4849 = vlog2.pop %v4848
  %v4850 = vmul.f32 %v4849, 0.6931472
  %v4851 = vadd.f32 %v4833, %v4850
  %v4852 = vsub.f32 %v4823, %v4851
  %v4853 = vsub.f32 %v4824, %v4851
  %v4854 = vsel %vm120, %v4852, -inf
  %4855 = vmax.xlane.f32.xlu0 %v4854
  %v4856 = vpop.xlane.xlu0 %4855
  %v4857 = vsel %vm120, %v4853, -inf
  %4858 = vmax.xlane.f32.xlu0 %v4857
  %v4859 = vpop.xlane.xlu0 %4858
  %v4860 = vsub.f32 %v4852, %v4856
  %v4861 = vsub.f32 %v4853, %v4859
  %v4862 = vmul.f32 %v4860, 1.442695
  %v4863 = vpow.pop %v4862
  %v4864 = vmul.f32 %v4861, 1.442695
  %v4865 = vpow.pop %v4864
  %v4866 = vsel %vm120, %v4863, 0.0
  %4867 = vadd.xlane.f32.xlu0 %v4866
  %v4868 = vpop.xlane.xlu0 %4867
  %v4869 = vsel %vm120, %v4865, 0.0
  %4870 = vadd.xlane.f32.xlu0 %v4869
  %v4871 = vpop.xlane.xlu0 %4870
  %v4872 = vlog2.pop %v4868
  %v4873 = vmul.f32 %v4872, 0.6931472
  %v4874 = vlog2.pop %v4871
  %v4875 = vmul.f32 %v4874, 0.6931472
  %v4876 = vadd.f32 %v4856, %v4873
  %v4877 = vadd.f32 %v4859, %v4875
  %v4878 = vsub.f32 %v4852, %v4876
  %v4879 = vsub.f32 %v4853, %v4877
  %v4880 = vsel %vm120, %v4878, -inf
  %v4881 = vsel %vm120, %v4879, -inf
  %v4882 = vmax.f32 %v4880, %v4881
  %v4883 = vrot.slane %v4882, 4
  %v4884 = vmax.f32 %v4882, %v4883
  %v4885 = vrot.slane %v4884, 2
  %v4886 = vmax.f32 %v4884, %v4885
  %v4887 = vrot.slane %v4886, 1
  %v4888 = vmax.f32 %v4886, %v4887
  %v4889 = vsub.f32 %v4878, %v4888
  %v4890 = vsub.f32 %v4879, %v4888
  %v4891 = vmul.f32 %v4889, 1.442695
  %v4892 = vpow.pop %v4891
  %v4893 = vmul.f32 %v4890, 1.442695
  %v4894 = vpow.pop %v4893
  %v4895 = vsel %vm120, %v4892, 0.0
  %v4896 = vsel %vm120, %v4894, 0.0
  %v4897 = vadd.f32 %v4895, %v4896
  %v4898 = vrot.slane %v4897, 4
  %v4899 = vadd.f32 %v4897, %v4898
  %v4900 = vrot.slane %v4899, 2
  %v4901 = vadd.f32 %v4899, %v4900
  %v4902 = vrot.slane %v4901, 1
  %v4903 = vadd.f32 %v4901, %v4902
  %v4904 = vlog2.pop %v4903
  %v4905 = vmul.f32 %v4904, 0.6931472
  %v4906 = vadd.f32 %v4888, %v4905
  %v4907 = vsub.f32 %v4878, %v4906
  %v4908 = vsub.f32 %v4879, %v4906
  %v4909 = vsel %vm120, %v4907, -inf
  %4910 = vmax.xlane.f32.xlu0 %v4909
  %v4911 = vpop.xlane.xlu0 %4910
  %v4912 = vsel %vm120, %v4908, -inf
  %4913 = vmax.xlane.f32.xlu0 %v4912
  %v4914 = vpop.xlane.xlu0 %4913
  %v4915 = vsub.f32 %v4907, %v4911
  %v4916 = vsub.f32 %v4908, %v4914
  %v4917 = vmul.f32 %v4915, 1.442695
  %v4918 = vpow.pop %v4917
  %v4919 = vmul.f32 %v4916, 1.442695
  %v4920 = vpow.pop %v4919
  %v4921 = vsel %vm120, %v4918, 0.0
  %4922 = vadd.xlane.f32.xlu0 %v4921
  %v4923 = vpop.xlane.xlu0 %4922
  %v4924 = vsel %vm120, %v4920, 0.0
  %4925 = vadd.xlane.f32.xlu0 %v4924
  %v4926 = vpop.xlane.xlu0 %4925
  %v4927 = vlog2.pop %v4923
  %v4928 = vmul.f32 %v4927, 0.6931472
  %v4929 = vlog2.pop %v4926
  %v4930 = vmul.f32 %v4929, 0.6931472
  %v4931 = vadd.f32 %v4911, %v4928
  %v4932 = vadd.f32 %v4914, %v4930
  %v4933 = vsub.f32 %v4907, %v4931
  %v4934 = vsub.f32 %v4908, %v4932
  %v4935 = vsel %vm120, %v4933, -inf
  %v4936 = vsel %vm120, %v4934, -inf
  %v4937 = vmax.f32 %v4935, %v4936
  %v4938 = vrot.slane %v4937, 4
  %v4939 = vmax.f32 %v4937, %v4938
  %v4940 = vrot.slane %v4939, 2
  %v4941 = vmax.f32 %v4939, %v4940
  %v4942 = vrot.slane %v4941, 1
  %v4943 = vmax.f32 %v4941, %v4942
  %v4944 = vsub.f32 %v4933, %v4943
  %v4945 = vsub.f32 %v4934, %v4943
  %v4946 = vmul.f32 %v4944, 1.442695
  %v4947 = vpow.pop %v4946
  %v4948 = vmul.f32 %v4945, 1.442695
  %v4949 = vpow.pop %v4948
  %v4950 = vsel %vm120, %v4947, 0.0
  %v4951 = vsel %vm120, %v4949, 0.0
  %v4952 = vadd.f32 %v4950, %v4951
  %v4953 = vrot.slane %v4952, 4
  %v4954 = vadd.f32 %v4952, %v4953
  %v4955 = vrot.slane %v4954, 2
  %v4956 = vadd.f32 %v4954, %v4955
  %v4957 = vrot.slane %v4956, 1
  %v4958 = vadd.f32 %v4956, %v4957
  %v4959 = vlog2.pop %v4958
  %v4960 = vmul.f32 %v4959, 0.6931472
  %v4961 = vadd.f32 %v4943, %v4960
  %v4962 = vsub.f32 %v4933, %v4961
  %v4963 = vsub.f32 %v4934, %v4961
  %v4964 = vmul.f32 %v4962, 1.442695
  %v4965 = vpow.pop %v4964
  %v4966 = vmul.f32 %v4963, 1.442695
  %v4967 = vpow.pop %v4966
  %v4969 = vsel %vm120, %v4965, 0
  %v4972 = vsel %vm120, %v4967, 0
  %4974 = vmatprep.subr.mxu0 0.0
  %4975 = vmatpush1.msra.mxu0 0.0
  %4976 = vmatprep.subr.mxu0 0.0
  %4977 = vmatpush1.msra.mxu0 0.0
  %4978 = vmatprep.subr.mxu0 0.0
  %4979 = vmatpush1.msra.mxu0 0.0
  %4980 = vmatprep.subr.mxu0 0.0
  %4981 = vmatpush1.msra.mxu0 0.0
  %4982 = vmatprep.subr.mxu0 0.0
  %4983 = vmatpush1.msra.mxu0 0.0
  %4984 = vmatprep.subr.mxu0 0.0
  %4985 = vmatpush1.msra.mxu0 0.0
  %4986 = vmatprep.subr.mxu0 0.0
  %4987 = vmatpush1.msra.mxu0 0.0
  %4988 = vmatprep.subr.mxu0 0.0
  %4989 = vmatpush1.msra.mxu0 0.0
  %4990 = vmatprep.subr.mxu0 0.0
  %4991 = vmatpush1.msra.mxu0 0.0
  %4992 = vmatprep.subr.mxu0 0.0
  %4993 = vmatpush1.msra.mxu0 0.0
  %4994 = vmatprep.subr.mxu0 0.0
  %4995 = vmatpush1.msra.mxu0 0.0
  %4996 = vmatprep.subr.mxu0 0.0
  %4997 = vmatpush1.msra.mxu0 0.0
  %4998 = vmatprep.subr.mxu0 0.0
  %4999 = vmatpush1.msra.mxu0 0.0
  %5000 = vmatprep.subr.mxu0 0.0
  %5001 = vmatpush1.msra.mxu0 0.0
  %5002 = vmatprep.subr.mxu0 0.0
  %5003 = vmatpush1.msra.mxu0 %v4110
  %5004 = vmatprep.subr.mxu0 0.0
  %5005 = vmatpush1.msra.mxu0 %v4105
  %5006 = vmatprep.subr.mxu0 0.0
  %5007 = vmatpush2.msra.mxu0 0.0
  %5008 = vmatprep.subr.mxu0 0.0
  %5009 = vmatpush2.msra.mxu0 0.0
  %5010 = vmatprep.subr.mxu0 0.0
  %5011 = vmatpush2.msra.mxu0 0.0
  %5012 = vmatprep.subr.mxu0 0.0
  %5013 = vmatpush2.msra.mxu0 0.0
  %5014 = vmatprep.subr.mxu0 0.0
  %5015 = vmatpush2.msra.mxu0 0.0
  %5016 = vmatprep.subr.mxu0 0.0
  %5017 = vmatpush2.msra.mxu0 0.0
  %5018 = vmatprep.subr.mxu0 0.0
  %5019 = vmatpush2.msra.mxu0 0.0
  %5020 = vmatprep.subr.mxu0 0.0
  %5021 = vmatpush2.msra.mxu0 0.0
  %5022 = vmatprep.subr.mxu0 0.0
  %5023 = vmatpush2.msra.mxu0 0.0
  %5024 = vmatprep.subr.mxu0 0.0
  %5025 = vmatpush2.msra.mxu0 0.0
  %5026 = vmatprep.subr.mxu0 0.0
  %5027 = vmatpush2.msra.mxu0 0.0
  %5028 = vmatprep.subr.mxu0 0.0
  %5029 = vmatpush2.msra.mxu0 0.0
  %5030 = vmatprep.subr.mxu0 0.0
  %5031 = vmatpush2.msra.mxu0 0.0
  %5032 = vmatprep.subr.mxu0 0.0
  %5033 = vmatpush2.msra.mxu0 0.0
  %5034 = vmatprep.subr.mxu0 0.0
  %5035 = vmatpush2.msra.mxu0 0.0
  %5036 = vmatprep.subr.mxu0 0.0
  %5037 = vmatpush2.msra.mxu0 0.0
  %5038 = vmatprep.mubr.f32.mxu0 0.0
  %5039 = vmatmul.mubr.f32.gmra.mxu0 %v4969
  %v5040 = vpop.f32.mrf.mxu0
  %v5041 = vadd.f32 0.0, %v5040
  %v5042 = vpop.f32.mrf.mxu0
  %5043 = vmatprep.mubr.f32.mxu0 0.0
  %5044 = vmatmul.mubr.f32.gmra.mxu0 %v4972
  %v5045 = vpop.f32.mrf.mxu0
  %v5046 = vadd.f32 0.0, %v5045
  %v5047 = vpop.f32.mrf.mxu0
  %5048 = vdwg.mxu0
  %v5049 = vsub.f32 %v4095, %v5041
  %v5050 = vsub.f32 %v4100, %v5046
  %v5051 = vmax.f32 %v5049, 0.0
  %v5052 = vmax.f32 %v5050, 0.0
  %v5054 = vsel %vm120, %v91, 0
  %5056 = vmatprep.subr.mxu0 0.0
  %5057 = vmatpush1.msra.mxu0 0.0
  %5058 = vmatprep.subr.mxu0 0.0
  %5059 = vmatpush1.msra.mxu0 0.0
  %5060 = vmatprep.subr.mxu0 0.0
  %5061 = vmatpush1.msra.mxu0 0.0
  %5062 = vmatprep.subr.mxu0 0.0
  %5063 = vmatpush1.msra.mxu0 0.0
  %5064 = vmatprep.subr.mxu0 0.0
  %5065 = vmatpush1.msra.mxu0 0.0
  %5066 = vmatprep.subr.mxu0 0.0
  %5067 = vmatpush1.msra.mxu0 0.0
  %5068 = vmatprep.subr.mxu0 0.0
  %5069 = vmatpush1.msra.mxu0 0.0
  %5070 = vmatprep.subr.mxu0 0.0
  %5071 = vmatpush1.msra.mxu0 0.0
  %5072 = vmatprep.subr.mxu0 0.0
  %5073 = vmatpush1.msra.mxu0 0.0
  %5074 = vmatprep.subr.mxu0 0.0
  %5075 = vmatpush1.msra.mxu0 0.0
  %5076 = vmatprep.subr.mxu0 0.0
  %5077 = vmatpush1.msra.mxu0 0.0
  %5078 = vmatprep.subr.mxu0 0.0
  %5079 = vmatpush1.msra.mxu0 0.0
  %5080 = vmatprep.subr.mxu0 0.0
  %5081 = vmatpush1.msra.mxu0 0.0
  %5082 = vmatprep.subr.mxu0 0.0
  %5083 = vmatpush1.msra.mxu0 0.0
  %5084 = vmatprep.subr.mxu0 0.0
  %5085 = vmatpush1.msra.mxu0 %v5052
  %5086 = vmatprep.subr.mxu0 0.0
  %5087 = vmatpush1.msra.mxu0 %v5051
  %5088 = vmatprep.subr.mxu0 0.0
  %5089 = vmatpush2.msra.mxu0 0.0
  %5090 = vmatprep.subr.mxu0 0.0
  %5091 = vmatpush2.msra.mxu0 0.0
  %5092 = vmatprep.subr.mxu0 0.0
  %5093 = vmatpush2.msra.mxu0 0.0
  %5094 = vmatprep.subr.mxu0 0.0
  %5095 = vmatpush2.msra.mxu0 0.0
  %5096 = vmatprep.subr.mxu0 0.0
  %5097 = vmatpush2.msra.mxu0 0.0
  %5098 = vmatprep.subr.mxu0 0.0
  %5099 = vmatpush2.msra.mxu0 0.0
  %5100 = vmatprep.subr.mxu0 0.0
  %5101 = vmatpush2.msra.mxu0 0.0
  %5102 = vmatprep.subr.mxu0 0.0
  %5103 = vmatpush2.msra.mxu0 0.0
  %5104 = vmatprep.subr.mxu0 0.0
  %5105 = vmatpush2.msra.mxu0 0.0
  %5106 = vmatprep.subr.mxu0 0.0
  %5107 = vmatpush2.msra.mxu0 0.0
  %5108 = vmatprep.subr.mxu0 0.0
  %5109 = vmatpush2.msra.mxu0 0.0
  %5110 = vmatprep.subr.mxu0 0.0
  %5111 = vmatpush2.msra.mxu0 0.0
  %5112 = vmatprep.subr.mxu0 0.0
  %5113 = vmatpush2.msra.mxu0 0.0
  %5114 = vmatprep.subr.mxu0 0.0
  %5115 = vmatpush2.msra.mxu0 0.0
  %5116 = vmatprep.subr.mxu0 0.0
  %5117 = vmatpush2.msra.mxu0 0.0
  %5118 = vmatprep.subr.mxu0 0.0
  %5119 = vmatpush2.msra.mxu0 0.0
  %5120 = vmatprep.mubr.f32.mxu0 0.0
  %5121 = vmatmul.mubr.f32.gmra.mxu0 %v5054
  %v5122 = vpop.f32.mrf.mxu0
  %v5123 = vadd.f32 0.0, %v5122
  %v5124 = vpop.f32.mrf.mxu0
  %5125 = vdwg.mxu0
  %v5126 = vsel %vm120, %v5123, 0.0
  %5127 = vadd.xlane.f32.xlu0 %v5126
  %v5128 = vpop.xlane.xlu0 %5127
  %vm5129 = vcmask 7168
  %5130 = vst.msk [vmem:[%s5] sm:$0xff] %vm5129, %v5128
  // Predicated region
  $region22: #{tpu_custom_call.1} parent=0 // pred_check
    _
  $region23: #{tpu_custom_call.1} parent=0 // pred_check_branch
    %5132 = sbr.rel (0) target = $region25
  $region24: #{tpu_custom_call.1} parent=0 // pred_region
    _
  $region25: #{tpu_custom_call.1} parent=0 // pred_fallthru
    _
  // Predicated region
  $region26: #{tpu_custom_call.1} parent=0 // pred_check
    _
  $region27: #{tpu_custom_call.1} parent=0 // pred_check_branch
    %5134 = sbr.rel (0) target = $region29
  $region28: #{tpu_custom_call.1} parent=0 // pred_region
    _
  $region29: #{tpu_custom_call.1} parent=0 // pred_fallthru
    _

</llo_original>
